<compile_context>
chip_gen: v7x
topology: tpu7x:2x2x1
jax: 0.10.0
libtpu: 0.0.40
codegen_flags: <defaults>
</compile_context>

<pallas_src>
import functools
import math

import jax
import jax.numpy as jnp
from jax.experimental import pallas as pl
from jax.experimental.pallas import tpu as pltpu  # noqa: F401  (TPU backend)

# ---------------- small synthetic "whisper-like" configuration ----------------
BATCH = 2
N_FFT = 64
HOP = 32
N_FREQ = N_FFT // 2 + 1          # 33 onesided rfft bins
N_MELS = 16
AUDIO_LEN = 512                  # -> 16 mel frames (whisper drops last STFT frame)
N_STATE = 32
N_HEAD = 4
N_LAYER = 2
T_MEL = AUDIO_LEN // HOP         # 16
N_CTX = (T_MEL + 2 - 3) // 2 + 1 # 8 frames after conv2(k=3, stride=2, pad=1)

INV_LN10 = 1.0 / math.log(10.0)
INV_SQRT2 = 1.0 / math.sqrt(2.0)

# MXU operand dtype (f32 accumulation everywhere).  bf16 per the v6e/v7x
# review; set to jnp.float32 for strict f32 parity.
DOT_DT = jnp.bfloat16
F32 = jnp.float32


# ------------------------------ in-kernel helpers ------------------------------
def _erf(x):
    # Abramowitz & Stegun 7.1.26 erf polynomial (|err| < 1.5e-7 ~ f32 eps) so the
    # exact (erf-based) PyTorch GELU lowers with plain VPU/EUP ops.
    ax = jnp.abs(x)
    t = 1.0 / (1.0 + 0.3275911 * ax)
    poly = t * (0.254829592 + t * (-0.284496736 + t * (1.421413741
               + t * (-1.453152027 + t * 1.061405429))))
    y = 1.0 - poly * jnp.exp(-ax * ax)
    return jnp.where(x >= 0, y, -y)


def _gelu(x):
    # matches torch.nn.functional.gelu (default, erf-based); kept in f32
    return 0.5 * x * (1.0 + _erf(x * INV_SQRT2))


def _layernorm_val(x, g, b, eps=1e-5):
    mean = jnp.mean(x, axis=-1, keepdims=True)
    var = jnp.mean(jnp.square(x - mean), axis=-1, keepdims=True)
    return (x - mean) * jax.lax.rsqrt(var + eps) * g + b


def _dot(a, b):
    return jnp.dot(a, b, preferred_element_type=jnp.float32)


# ------------------------------ Pallas kernels ------------------------------
def _logmel_kernel(fr_ref, dft_ref, fb2_ref, o_ref):
    # fr: (B*T, n_fft) raw frames; dft: (n_fft, 2*n_freq) = hann ⊙ [cos | -sin];
    # fb2: (2*n_freq, n_mels) = [fb; fb]  so  power @ fb == (y*y) @ fb2.
    # Kept in f32: DFT/log path is precision sensitive and tiny.
    y = _dot(fr_ref[...], dft_ref[...])                    # (B*T, 2*n_freq)
    mel = _dot(y * y, fb2_ref[...])                        # (B*T, n_mels)
    log_spec = jnp.log(jnp.maximum(mel, 1e-10)) * INV_LN10
    # whisper: tensor-wide max over the whole (batched) spectrogram
    log_spec = jnp.maximum(log_spec, jnp.max(log_spec) - 8.0)
    o_ref[...] = (log_spec + 4.0) / 4.0


def _frontend_kernel(mel_ref, w1_ref, b1_ref, w2_ref, b2_ref, pos_ref, o_ref,
                     *, batch, t_in, t_out):
    # mel: (B*T_in, n_mels); w1: (3, n_mels, C) bf16; w2: (3, C, C) bf16;
    # out: (B*T_out, C) = gelu(conv2(gelu(conv1(mel)))) + pos_emb
    pos = pos_ref[...]                                     # (t_out, C)  f32
    b1 = b1_ref[...]                                       # (1, C)      f32
    b2 = b2_ref[...]
    c_in = mel_ref.shape[1]
    w1 = [w1_ref[k] for k in range(3)]
    w2 = [w2_ref[k] for k in range(3)]

    # stride-2 selection matrices: out position t gathers conv1 rows
    # 2t-1 / 2t / 2t+1 (zero row where out of range == zero padding).
    row = jax.lax.broadcasted_iota(jnp.int32, (t_out, t_in), 0)
    col = jax.lax.broadcasted_iota(jnp.int32, (t_out, t_in), 1)
    sel_m1 = jnp.where(col == 2 * row - 1, 1.0, 0.0).astype(DOT_DT)
    sel_0 = jnp.where(col == 2 * row, 1.0, 0.0).astype(DOT_DT)
    sel_p1 = jnp.where(col == 2 * row + 1, 1.0, 0.0).astype(DOT_DT)

    for b in range(batch):                                 # static unroll (B=2)
        xb = mel_ref[b * t_in:(b + 1) * t_in, :].astype(DOT_DT)   # (t_in, c_in)
        zr = jnp.zeros((1, c_in), DOT_DT)
        x_m1 = jnp.concatenate([zr, xb[:-1]], axis=0)      # x[t-1]  (pad=1)
        x_p1 = jnp.concatenate([xb[1:], zr], axis=0)       # x[t+1]
        h = _dot(x_m1, w1[0]) + _dot(xb, w1[1]) + _dot(x_p1, w1[2]) + b1
        h = _gelu(h).astype(DOT_DT)                        # (t_in, C)

        h_m1 = _dot(sel_m1, h).astype(DOT_DT)              # rows 2t-1
        h_0 = _dot(sel_0, h).astype(DOT_DT)                # rows 2t
        h_p1 = _dot(sel_p1, h).astype(DOT_DT)              # rows 2t+1
        y = _dot(h_m1, w2[0]) + _dot(h_0, w2[1]) + _dot(h_p1, w2[2]) + b2
        o_ref[b * t_out:(b + 1) * t_out, :] = _gelu(y) + pos


def _block_kernel(x_ref, ln1g_ref, ln1b_ref, wqkv_ref, bqkv_ref, wo_ref, bo_ref,
                  ln2g_ref, ln2b_ref, fc1w_ref, fc1b_ref, fc2w_ref, fc2b_ref,
                  o_ref, *, batch, seq, heads, dh):
    # One full Whisper residual attention block; x: (B*T, C) slab.
    C = x_ref.shape[1]
    x = x_ref[...]                                         # f32

    # ---- pre-LN multi-head self-attention ----
    y = _layernorm_val(x, ln1g_ref[...], ln1b_ref[...])
    # fused QKV projection; Dh^-0.25 scale pre-folded into q/k weights & bias
    qkv = (_dot(y.astype(DOT_DT), wqkv_ref[...]) + bqkv_ref[...]).astype(DOT_DT)
    wo = wo_ref[...]                                       # (C, C) bf16
    bo = bo_ref[...]                                       # (1, C) f32

    rows = []
    for b in range(batch):                                 # static unroll
        r0 = b * seq
        acc = x[r0:r0 + seq, :] + bo                       # residual + out-proj bias
        for h in range(heads):                             # static unroll
            c0 = h * dh
            q = qkv[r0:r0 + seq, c0:c0 + dh]
            k = qkv[r0:r0 + seq, C + c0:C + c0 + dh]
            v = qkv[r0:r0 + seq, 2 * C + c0:2 * C + c0 + dh]
            s = jax.lax.dot_general(q, k, (((1,), (1,)), ((), ())),
                                    preferred_element_type=jnp.float32)  # (T, T)
            s = s - jnp.max(s, axis=-1, keepdims=True)
            p = jnp.exp(s)
            p = p * pl.reciprocal(jnp.sum(p, axis=-1, keepdims=True), approx=True)
            o = _dot(p.astype(DOT_DT), v)                  # (T, dh)
            # accumulate this head's slice of the output projection
            acc = acc + _dot(o.astype(DOT_DT), wo[c0:c0 + dh, :])
        rows.append(acc)
    x = jnp.concatenate(rows, axis=0)                      # (B*T, C)

    # ---- pre-LN MLP ----
    y = _layernorm_val(x, ln2g_ref[...], ln2b_ref[...])
    hmid = _dot(y.astype(DOT_DT), fc1w_ref[...]) + fc1b_ref[...]   # (B*T, 4C)
    hmid = _gelu(hmid)
    x = x + _dot(hmid.astype(DOT_DT), fc2w_ref[...]) + fc2b_ref[...]
    o_ref[...] = x


def _layernorm_kernel(x_ref, g_ref, b_ref, o_ref, *, eps):
    o_ref[...] = _layernorm_val(x_ref[...], g_ref[...], b_ref[...], eps)


# ------------------------------ wrappers (glue) ------------------------------
def log_mel_spectrogram(audio, dft_w, mel_fb2):
    # audio: (B, L) -> (B*T_mel, N_MELS) slab (whisper layout transposed, flattened)
    B, L = audio.shape
    pad = N_FFT // 2
    ap = jnp.pad(audio, ((0, 0), (pad, pad)), mode="reflect")  # torch.stft center=True
    n_keep = L // HOP                                          # whisper drops last frame
    frames = jnp.stack([ap[:, t * HOP: t * HOP + N_FFT] for t in range(n_keep)],
                       axis=1).reshape(B * n_keep, N_FFT)
    return pl.pallas_call(
        _logmel_kernel,
        out_shape=jax.ShapeDtypeStruct((B * n_keep, N_MELS), F32),
    )(frames, dft_w, mel_fb2)


def frontend(mel2d, p):
    return pl.pallas_call(
        functools.partial(_frontend_kernel, batch=BATCH, t_in=T_MEL, t_out=N_CTX),
        out_shape=jax.ShapeDtypeStruct((BATCH * N_CTX, N_STATE), F32),
    )(mel2d, p["conv1_w"], p["conv1_b"], p["conv2_w"], p["conv2_b"], p["pos_emb"])


def residual_block(x, blk):
    return pl.pallas_call(
        functools.partial(_block_kernel, batch=BATCH, seq=N_CTX,
                          heads=N_HEAD, dh=N_STATE // N_HEAD),
        out_shape=jax.ShapeDtypeStruct(x.shape, F32),
    )(x, blk["attn_ln_g"], blk["attn_ln_b"], blk["wqkv"], blk["bqkv"],
      blk["wo"], blk["bo"], blk["mlp_ln_g"], blk["mlp_ln_b"],
      blk["fc1_w"], blk["fc1_b"], blk["fc2_w"], blk["fc2_b"])


def layernorm_op(x, g, b):
    return pl.pallas_call(
        functools.partial(_layernorm_kernel, eps=1e-5),
        out_shape=jax.ShapeDtypeStruct(x.shape, F32),
    )(x, g, b)


# ------------------------------ parameter setup ------------------------------
def sinusoids(length, channels, max_timescale=10000.0):
    log_inc = math.log(max_timescale) / (channels // 2 - 1)
    inv_ts = jnp.exp(-log_inc * jnp.arange(channels // 2, dtype=F32))
    scaled = jnp.arange(length, dtype=F32)[:, None] * inv_ts[None, :]
    return jnp.concatenate([jnp.sin(scaled), jnp.cos(scaled)], axis=1)


def make_mel_filterbank(n_mels, n_freq):
    # TODO(synk): whisper uses precomputed librosa mel filters (checkpoint asset);
    # here we build a deterministic synthetic triangular filterbank instead.
    pts = jnp.linspace(0.0, float(n_freq - 1), n_mels + 2)
    f = jnp.arange(n_freq, dtype=F32)
    rows = []
    for m in range(n_mels):
        left, center, right = pts[m], pts[m + 1], pts[m + 2]
        up = (f - left) / (center - left)
        down = (right - f) / (right - center)
        rows.append(jnp.maximum(jnp.minimum(up, down), 0.0))
    return jnp.stack(rows, axis=1)                      # (n_freq, n_mels)


def init_params(key):
    # TODO(synk): real Whisper loads checkpoint weights; synthetic weights here.
    keys = iter(jax.random.split(key, 64))

    def nrm(shape, scale=0.02):
        return scale * jax.random.normal(next(keys), shape, F32)

    # DFT matrix with periodic-Hann window folded in, cos and -sin stacked.
    n = jnp.arange(N_FFT, dtype=F32)[:, None]
    f = jnp.arange(N_FREQ, dtype=F32)[None, :]
    ang = 2.0 * jnp.pi * n * f / N_FFT
    window = 0.5 - 0.5 * jnp.cos(2.0 * jnp.pi * jnp.arange(N_FFT, dtype=F32) / N_FFT)
    dft_w = window[:, None] * jnp.concatenate([jnp.cos(ang), -jnp.sin(ang)], axis=1)
    fb = make_mel_filterbank(N_MELS, N_FREQ)
    mel_fb2 = jnp.concatenate([fb, fb], axis=0)         # (2*N_FREQ, N_MELS)

    conv1_w = nrm((N_STATE, N_MELS, 3))                 # PyTorch (Cout, Cin, K)
    conv2_w = nrm((N_STATE, N_STATE, 3))
    p = {
        "dft_w": dft_w, "mel_fb2": mel_fb2,
        "conv1_w": jnp.transpose(conv1_w, (2, 1, 0)).astype(DOT_DT),  # (K, Cin, Cout)
        "conv1_b": nrm((1, N_STATE)),
        "conv2_w": jnp.transpose(conv2_w, (2, 1, 0)).astype(DOT_DT),
        "conv2_b": nrm((1, N_STATE)),
        "pos_emb": sinusoids(N_CTX, N_STATE),
        "ln_post_g": jnp.ones((1, N_STATE), F32),
        "ln_post_b": jnp.zeros((1, N_STATE), F32),
        "blocks": [],
    }
    scale = float(N_STATE // N_HEAD) ** -0.25           # folded into q/k weights
    for _ in range(N_LAYER):
        q_w, k_w, v_w = nrm((N_STATE, N_STATE)), nrm((N_STATE, N_STATE)), nrm((N_STATE, N_STATE))
        q_b, v_b = nrm((N_STATE,)), nrm((N_STATE,))     # whisper: key has no bias
        wqkv = jnp.concatenate([q_w * scale, k_w * scale, v_w], axis=1).astype(DOT_DT)
        bqkv = jnp.concatenate([q_b * scale, jnp.zeros((N_STATE,), F32), v_b]
                               ).reshape(1, 3 * N_STATE)
        p["blocks"].append({
            "attn_ln_g": jnp.ones((1, N_STATE), F32),
            "attn_ln_b": jnp.zeros((1, N_STATE), F32),
            "wqkv": wqkv, "bqkv": bqkv,
            "wo": nrm((N_STATE, N_STATE)).astype(DOT_DT), "bo": nrm((1, N_STATE)),
            "mlp_ln_g": jnp.ones((1, N_STATE), F32),
            "mlp_ln_b": jnp.zeros((1, N_STATE), F32),
            "fc1_w": nrm((N_STATE, 4 * N_STATE)).astype(DOT_DT),
            "fc1_b": nrm((1, 4 * N_STATE)),
            "fc2_w": nrm((4 * N_STATE, N_STATE)).astype(DOT_DT),
            "fc2_b": nrm((1, N_STATE)),
        })
    return p


# ------------------------------ forward pass ------------------------------
def whisper_audio_encoder(params, audio):
    mel = log_mel_spectrogram(audio, params["dft_w"], params["mel_fb2"])  # (B*T, M)
    x = frontend(mel, params)                                             # (B*N_CTX, C)
    for blk in params["blocks"]:
        x = residual_block(x, blk)
    x = layernorm_op(x, params["ln_post_g"], params["ln_post_b"])
    return x.reshape(BATCH, N_CTX, N_STATE)


# ------------------------------ main ------------------------------
if __name__ == "__main__":
    key = jax.random.PRNGKey(0)
    k_audio, k_param = jax.random.split(key)
    audio = 0.1 * jax.random.normal(k_audio, (BATCH, AUDIO_LEN), F32)
    params = init_params(k_param)

    fwd = jax.jit(whisper_audio_encoder)
    out = jax.block_until_ready(fwd(params, audio))

    assert out.shape == (BATCH, N_CTX, N_STATE), out.shape
    assert jnp.all(jnp.isfinite(out))
    print("KERNEL_OK")
</pallas_src>

<mosaic_0001>
module attributes {stable_mosaic.version = 11 : i64} {
  func.func @_block_kernel(%arg0: memref<16x32xf32, #tpu.memory_space<vmem>>, %arg1: memref<1x32xf32, #tpu.memory_space<vmem>>, %arg2: memref<1x32xf32, #tpu.memory_space<vmem>>, %arg3: memref<32x96xbf16, #tpu.memory_space<vmem>>, %arg4: memref<1x96xf32, #tpu.memory_space<vmem>>, %arg5: memref<32x32xbf16, #tpu.memory_space<vmem>>, %arg6: memref<1x32xf32, #tpu.memory_space<vmem>>, %arg7: memref<1x32xf32, #tpu.memory_space<vmem>>, %arg8: memref<1x32xf32, #tpu.memory_space<vmem>>, %arg9: memref<32x128xbf16, #tpu.memory_space<vmem>>, %arg10: memref<1x128xf32, #tpu.memory_space<vmem>>, %arg11: memref<128x32xbf16, #tpu.memory_space<vmem>>, %arg12: memref<1x32xf32, #tpu.memory_space<vmem>>, %arg13: memref<16x32xf32, #tpu.memory_space<vmem>>) attributes {dimension_semantics = [], scalar_prefetch = 0 : i64, scratch_operands = 0 : i64, tpu.core_type = #tpu.core_type<tc>} {
    %c0 = arith.constant 0 : index
    %c0_0 = arith.constant 0 : index
    %0 = vector.load %arg0[%c0, %c0_0] : memref<16x32xf32, #tpu.memory_space<vmem>>, vector<16x32xf32>
    %c0_1 = arith.constant 0 : index
    %c0_2 = arith.constant 0 : index
    %1 = vector.load %arg1[%c0_1, %c0_2] : memref<1x32xf32, #tpu.memory_space<vmem>>, vector<1x32xf32>
    %c0_3 = arith.constant 0 : index
    %c0_4 = arith.constant 0 : index
    %2 = vector.load %arg2[%c0_3, %c0_4] : memref<1x32xf32, #tpu.memory_space<vmem>>, vector<1x32xf32>
    %cst = arith.constant dense<0.000000e+00> : vector<16xf32>
    %3 = vector.multi_reduction <add>, %0, %cst [1] : vector<16x32xf32> to vector<16xf32>
    %4 = vector.shape_cast %3 : vector<16xf32> to vector<16x1xf32>
    %cst_5 = arith.constant 3.200000e+01 : f32
    %5 = vector.broadcast %cst_5 : f32 to vector<16x1xf32>
    %6 = arith.divf %4, %5 : vector<16x1xf32>
    %7 = vector.broadcast %6 : vector<16x1xf32> to vector<16x32xf32>
    %8 = arith.subf %0, %7 : vector<16x32xf32>
    %9 = arith.mulf %8, %8 : vector<16x32xf32>
    %cst_6 = arith.constant dense<0.000000e+00> : vector<16xf32>
    %10 = vector.multi_reduction <add>, %9, %cst_6 [1] : vector<16x32xf32> to vector<16xf32>
    %11 = vector.shape_cast %10 : vector<16xf32> to vector<16x1xf32>
    %cst_7 = arith.constant 3.200000e+01 : f32
    %12 = vector.broadcast %cst_7 : f32 to vector<16x1xf32>
    %13 = arith.divf %11, %12 : vector<16x1xf32>
    %14 = vector.broadcast %6 : vector<16x1xf32> to vector<16x32xf32>
    %15 = arith.subf %0, %14 : vector<16x32xf32>
    %cst_8 = arith.constant 9.99999974E-6 : f32
    %16 = vector.broadcast %cst_8 : f32 to vector<16x1xf32>
    %17 = arith.addf %13, %16 : vector<16x1xf32>
    %18 = math.rsqrt %17 : vector<16x1xf32>
    %19 = vector.broadcast %18 : vector<16x1xf32> to vector<16x32xf32>
    %20 = arith.mulf %15, %19 : vector<16x32xf32>
    %21 = vector.broadcast %1 : vector<1x32xf32> to vector<16x32xf32>
    %22 = arith.mulf %20, %21 : vector<16x32xf32>
    %23 = vector.broadcast %2 : vector<1x32xf32> to vector<16x32xf32>
    %24 = arith.addf %22, %23 : vector<16x32xf32>
    %25 = arith.truncf %24 : vector<16x32xf32> to vector<16x32xbf16>
    %c0_9 = arith.constant 0 : index
    %c0_10 = arith.constant 0 : index
    %26 = vector.load %arg3[%c0_9, %c0_10] : memref<32x96xbf16, #tpu.memory_space<vmem>>, vector<32x96xbf16>
    %cst_11 = arith.constant dense<0.000000e+00> : vector<16x96xf32>
    %27 = tpu.matmul %25, %26, %cst_11 {dimension_numbers = #tpu.dot_dimension_numbers<[1], [0], [0], [1], [0, 0, 1, 1], [], []>} : vector<16x32xbf16>, vector<32x96xbf16>, vector<16x96xf32> -> vector<16x96xf32>
    %c0_12 = arith.constant 0 : index
    %c0_13 = arith.constant 0 : index
    %28 = vector.load %arg4[%c0_12, %c0_13] : memref<1x96xf32, #tpu.memory_space<vmem>>, vector<1x96xf32>
    %29 = vector.broadcast %28 : vector<1x96xf32> to vector<16x96xf32>
    %30 = arith.addf %27, %29 : vector<16x96xf32>
    %31 = arith.truncf %30 : vector<16x96xf32> to vector<16x96xbf16>
    %c0_14 = arith.constant 0 : index
    %c0_15 = arith.constant 0 : index
    %32 = vector.load %arg5[%c0_14, %c0_15] : memref<32x32xbf16, #tpu.memory_space<vmem>>, vector<32x32xbf16>
    %c0_16 = arith.constant 0 : index
    %c0_17 = arith.constant 0 : index
    %33 = vector.load %arg6[%c0_16, %c0_17] : memref<1x32xf32, #tpu.memory_space<vmem>>, vector<1x32xf32>
    %34 = vector.extract_strided_slice %0 {offsets = [0, 0], sizes = [8, 32], strides = [1, 1]} : vector<16x32xf32> to vector<8x32xf32>
    %35 = vector.broadcast %33 : vector<1x32xf32> to vector<8x32xf32>
    %36 = arith.addf %34, %35 : vector<8x32xf32>
    %37 = vector.extract_strided_slice %31 {offsets = [0, 0], sizes = [8, 8], strides = [1, 1]} : vector<16x96xbf16> to vector<8x8xbf16>
    %38 = vector.extract_strided_slice %31 {offsets = [0, 32], sizes = [8, 8], strides = [1, 1]} : vector<16x96xbf16> to vector<8x8xbf16>
    %39 = vector.extract_strided_slice %31 {offsets = [0, 64], sizes = [8, 8], strides = [1, 1]} : vector<16x96xbf16> to vector<8x8xbf16>
    %cst_18 = arith.constant dense<0.000000e+00> : vector<8x8xf32>
    %40 = tpu.matmul %37, %38, %cst_18 {dimension_numbers = #tpu.dot_dimension_numbers<[1], [1], [0], [0], [0, 0, 1, 0], [], []>} : vector<8x8xbf16>, vector<8x8xbf16>, vector<8x8xf32> -> vector<8x8xf32>
    %cst_19 = arith.constant dense<0xFF800000> : vector<8xf32>
    %41 = vector.multi_reduction <maximumf>, %40, %cst_19 [1] : vector<8x8xf32> to vector<8xf32>
    %42 = vector.shape_cast %41 : vector<8xf32> to vector<8x1xf32>
    %43 = vector.broadcast %42 : vector<8x1xf32> to vector<8x8xf32>
    %44 = arith.subf %40, %43 : vector<8x8xf32>
    %45 = math.exp %44 : vector<8x8xf32>
    %cst_20 = arith.constant dense<0.000000e+00> : vector<8xf32>
    %46 = vector.multi_reduction <add>, %45, %cst_20 [1] : vector<8x8xf32> to vector<8xf32>
    %47 = vector.shape_cast %46 : vector<8xf32> to vector<8x1xf32>
    %48 = tpu.reciprocal %47 {approx = true} : vector<8x1xf32> -> vector<8x1xf32>
    %49 = vector.broadcast %48 : vector<8x1xf32> to vector<8x8xf32>
    %50 = arith.mulf %45, %49 : vector<8x8xf32>
    %51 = arith.truncf %50 : vector<8x8xf32> to vector<8x8xbf16>
    %cst_21 = arith.constant dense<0.000000e+00> : vector<8x8xf32>
    %52 = tpu.matmul %51, %39, %cst_21 {dimension_numbers = #tpu.dot_dimension_numbers<[1], [0], [0], [1], [0, 0, 1, 1], [], []>} : vector<8x8xbf16>, vector<8x8xbf16>, vector<8x8xf32> -> vector<8x8xf32>
    %53 = arith.truncf %52 : vector<8x8xf32> to vector<8x8xbf16>
    %54 = vector.extract_strided_slice %32 {offsets = [0, 0], sizes = [8, 32], strides = [1, 1]} : vector<32x32xbf16> to vector<8x32xbf16>
    %cst_22 = arith.constant dense<0.000000e+00> : vector<8x32xf32>
    %55 = tpu.matmul %53, %54, %cst_22 {dimension_numbers = #tpu.dot_dimension_numbers<[1], [0], [0], [1], [0, 0, 1, 1], [], []>} : vector<8x8xbf16>, vector<8x32xbf16>, vector<8x32xf32> -> vector<8x32xf32>
    %56 = arith.addf %36, %55 : vector<8x32xf32>
    %57 = vector.extract_strided_slice %31 {offsets = [0, 8], sizes = [8, 8], strides = [1, 1]} : vector<16x96xbf16> to vector<8x8xbf16>
    %58 = vector.extract_strided_slice %31 {offsets = [0, 40], sizes = [8, 8], strides = [1, 1]} : vector<16x96xbf16> to vector<8x8xbf16>
    %59 = vector.extract_strided_slice %31 {offsets = [0, 72], sizes = [8, 8], strides = [1, 1]} : vector<16x96xbf16> to vector<8x8xbf16>
    %cst_23 = arith.constant dense<0.000000e+00> : vector<8x8xf32>
    %60 = tpu.matmul %57, %58, %cst_23 {dimension_numbers = #tpu.dot_dimension_numbers<[1], [1], [0], [0], [0, 0, 1, 0], [], []>} : vector<8x8xbf16>, vector<8x8xbf16>, vector<8x8xf32> -> vector<8x8xf32>
    %cst_24 = arith.constant dense<0xFF800000> : vector<8xf32>
    %61 = vector.multi_reduction <maximumf>, %60, %cst_24 [1] : vector<8x8xf32> to vector<8xf32>
    %62 = vector.shape_cast %61 : vector<8xf32> to vector<8x1xf32>
    %63 = vector.broadcast %62 : vector<8x1xf32> to vector<8x8xf32>
    %64 = arith.subf %60, %63 : vector<8x8xf32>
    %65 = math.exp %64 : vector<8x8xf32>
    %cst_25 = arith.constant dense<0.000000e+00> : vector<8xf32>
    %66 = vector.multi_reduction <add>, %65, %cst_25 [1] : vector<8x8xf32> to vector<8xf32>
    %67 = vector.shape_cast %66 : vector<8xf32> to vector<8x1xf32>
    %68 = tpu.reciprocal %67 {approx = true} : vector<8x1xf32> -> vector<8x1xf32>
    %69 = vector.broadcast %68 : vector<8x1xf32> to vector<8x8xf32>
    %70 = arith.mulf %65, %69 : vector<8x8xf32>
    %71 = arith.truncf %70 : vector<8x8xf32> to vector<8x8xbf16>
    %cst_26 = arith.constant dense<0.000000e+00> : vector<8x8xf32>
    %72 = tpu.matmul %71, %59, %cst_26 {dimension_numbers = #tpu.dot_dimension_numbers<[1], [0], [0], [1], [0, 0, 1, 1], [], []>} : vector<8x8xbf16>, vector<8x8xbf16>, vector<8x8xf32> -> vector<8x8xf32>
    %73 = arith.truncf %72 : vector<8x8xf32> to vector<8x8xbf16>
    %74 = vector.extract_strided_slice %32 {offsets = [8, 0], sizes = [8, 32], strides = [1, 1]} : vector<32x32xbf16> to vector<8x32xbf16>
    %cst_27 = arith.constant dense<0.000000e+00> : vector<8x32xf32>
    %75 = tpu.matmul %73, %74, %cst_27 {dimension_numbers = #tpu.dot_dimension_numbers<[1], [0], [0], [1], [0, 0, 1, 1], [], []>} : vector<8x8xbf16>, vector<8x32xbf16>, vector<8x32xf32> -> vector<8x32xf32>
    %76 = arith.addf %56, %75 : vector<8x32xf32>
    %77 = vector.extract_strided_slice %31 {offsets = [0, 16], sizes = [8, 8], strides = [1, 1]} : vector<16x96xbf16> to vector<8x8xbf16>
    %78 = vector.extract_strided_slice %31 {offsets = [0, 48], sizes = [8, 8], strides = [1, 1]} : vector<16x96xbf16> to vector<8x8xbf16>
    %79 = vector.extract_strided_slice %31 {offsets = [0, 80], sizes = [8, 8], strides = [1, 1]} : vector<16x96xbf16> to vector<8x8xbf16>
    %cst_28 = arith.constant dense<0.000000e+00> : vector<8x8xf32>
    %80 = tpu.matmul %77, %78, %cst_28 {dimension_numbers = #tpu.dot_dimension_numbers<[1], [1], [0], [0], [0, 0, 1, 0], [], []>} : vector<8x8xbf16>, vector<8x8xbf16>, vector<8x8xf32> -> vector<8x8xf32>
    %cst_29 = arith.constant dense<0xFF800000> : vector<8xf32>
    %81 = vector.multi_reduction <maximumf>, %80, %cst_29 [1] : vector<8x8xf32> to vector<8xf32>
    %82 = vector.shape_cast %81 : vector<8xf32> to vector<8x1xf32>
    %83 = vector.broadcast %82 : vector<8x1xf32> to vector<8x8xf32>
    %84 = arith.subf %80, %83 : vector<8x8xf32>
    %85 = math.exp %84 : vector<8x8xf32>
    %cst_30 = arith.constant dense<0.000000e+00> : vector<8xf32>
    %86 = vector.multi_reduction <add>, %85, %cst_30 [1] : vector<8x8xf32> to vector<8xf32>
    %87 = vector.shape_cast %86 : vector<8xf32> to vector<8x1xf32>
    %88 = tpu.reciprocal %87 {approx = true} : vector<8x1xf32> -> vector<8x1xf32>
    %89 = vector.broadcast %88 : vector<8x1xf32> to vector<8x8xf32>
    %90 = arith.mulf %85, %89 : vector<8x8xf32>
    %91 = arith.truncf %90 : vector<8x8xf32> to vector<8x8xbf16>
    %cst_31 = arith.constant dense<0.000000e+00> : vector<8x8xf32>
    %92 = tpu.matmul %91, %79, %cst_31 {dimension_numbers = #tpu.dot_dimension_numbers<[1], [0], [0], [1], [0, 0, 1, 1], [], []>} : vector<8x8xbf16>, vector<8x8xbf16>, vector<8x8xf32> -> vector<8x8xf32>
    %93 = arith.truncf %92 : vector<8x8xf32> to vector<8x8xbf16>
    %94 = vector.extract_strided_slice %32 {offsets = [16, 0], sizes = [8, 32], strides = [1, 1]} : vector<32x32xbf16> to vector<8x32xbf16>
    %cst_32 = arith.constant dense<0.000000e+00> : vector<8x32xf32>
    %95 = tpu.matmul %93, %94, %cst_32 {dimension_numbers = #tpu.dot_dimension_numbers<[1], [0], [0], [1], [0, 0, 1, 1], [], []>} : vector<8x8xbf16>, vector<8x32xbf16>, vector<8x32xf32> -> vector<8x32xf32>
    %96 = arith.addf %76, %95 : vector<8x32xf32>
    %97 = vector.extract_strided_slice %31 {offsets = [0, 24], sizes = [8, 8], strides = [1, 1]} : vector<16x96xbf16> to vector<8x8xbf16>
    %98 = vector.extract_strided_slice %31 {offsets = [0, 56], sizes = [8, 8], strides = [1, 1]} : vector<16x96xbf16> to vector<8x8xbf16>
    %99 = vector.extract_strided_slice %31 {offsets = [0, 88], sizes = [8, 8], strides = [1, 1]} : vector<16x96xbf16> to vector<8x8xbf16>
    %cst_33 = arith.constant dense<0.000000e+00> : vector<8x8xf32>
    %100 = tpu.matmul %97, %98, %cst_33 {dimension_numbers = #tpu.dot_dimension_numbers<[1], [1], [0], [0], [0, 0, 1, 0], [], []>} : vector<8x8xbf16>, vector<8x8xbf16>, vector<8x8xf32> -> vector<8x8xf32>
    %cst_34 = arith.constant dense<0xFF800000> : vector<8xf32>
    %101 = vector.multi_reduction <maximumf>, %100, %cst_34 [1] : vector<8x8xf32> to vector<8xf32>
    %102 = vector.shape_cast %101 : vector<8xf32> to vector<8x1xf32>
    %103 = vector.broadcast %102 : vector<8x1xf32> to vector<8x8xf32>
    %104 = arith.subf %100, %103 : vector<8x8xf32>
    %105 = math.exp %104 : vector<8x8xf32>
    %cst_35 = arith.constant dense<0.000000e+00> : vector<8xf32>
    %106 = vector.multi_reduction <add>, %105, %cst_35 [1] : vector<8x8xf32> to vector<8xf32>
    %107 = vector.shape_cast %106 : vector<8xf32> to vector<8x1xf32>
    %108 = tpu.reciprocal %107 {approx = true} : vector<8x1xf32> -> vector<8x1xf32>
    %109 = vector.broadcast %108 : vector<8x1xf32> to vector<8x8xf32>
    %110 = arith.mulf %105, %109 : vector<8x8xf32>
    %111 = arith.truncf %110 : vector<8x8xf32> to vector<8x8xbf16>
    %cst_36 = arith.constant dense<0.000000e+00> : vector<8x8xf32>
    %112 = tpu.matmul %111, %99, %cst_36 {dimension_numbers = #tpu.dot_dimension_numbers<[1], [0], [0], [1], [0, 0, 1, 1], [], []>} : vector<8x8xbf16>, vector<8x8xbf16>, vector<8x8xf32> -> vector<8x8xf32>
    %113 = arith.truncf %112 : vector<8x8xf32> to vector<8x8xbf16>
    %114 = vector.extract_strided_slice %32 {offsets = [24, 0], sizes = [8, 32], strides = [1, 1]} : vector<32x32xbf16> to vector<8x32xbf16>
    %cst_37 = arith.constant dense<0.000000e+00> : vector<8x32xf32>
    %115 = tpu.matmul %113, %114, %cst_37 {dimension_numbers = #tpu.dot_dimension_numbers<[1], [0], [0], [1], [0, 0, 1, 1], [], []>} : vector<8x8xbf16>, vector<8x32xbf16>, vector<8x32xf32> -> vector<8x32xf32>
    %116 = arith.addf %96, %115 : vector<8x32xf32>
    %117 = vector.extract_strided_slice %0 {offsets = [8, 0], sizes = [8, 32], strides = [1, 1]} : vector<16x32xf32> to vector<8x32xf32>
    %118 = vector.broadcast %33 : vector<1x32xf32> to vector<8x32xf32>
    %119 = arith.addf %117, %118 : vector<8x32xf32>
    %120 = vector.extract_strided_slice %31 {offsets = [8, 0], sizes = [8, 8], strides = [1, 1]} : vector<16x96xbf16> to vector<8x8xbf16>
    %121 = vector.extract_strided_slice %31 {offsets = [8, 32], sizes = [8, 8], strides = [1, 1]} : vector<16x96xbf16> to vector<8x8xbf16>
    %122 = vector.extract_strided_slice %31 {offsets = [8, 64], sizes = [8, 8], strides = [1, 1]} : vector<16x96xbf16> to vector<8x8xbf16>
    %cst_38 = arith.constant dense<0.000000e+00> : vector<8x8xf32>
    %123 = tpu.matmul %120, %121, %cst_38 {dimension_numbers = #tpu.dot_dimension_numbers<[1], [1], [0], [0], [0, 0, 1, 0], [], []>} : vector<8x8xbf16>, vector<8x8xbf16>, vector<8x8xf32> -> vector<8x8xf32>
    %cst_39 = arith.constant dense<0xFF800000> : vector<8xf32>
    %124 = vector.multi_reduction <maximumf>, %123, %cst_39 [1] : vector<8x8xf32> to vector<8xf32>
    %125 = vector.shape_cast %124 : vector<8xf32> to vector<8x1xf32>
    %126 = vector.broadcast %125 : vector<8x1xf32> to vector<8x8xf32>
    %127 = arith.subf %123, %126 : vector<8x8xf32>
    %128 = math.exp %127 : vector<8x8xf32>
    %cst_40 = arith.constant dense<0.000000e+00> : vector<8xf32>
    %129 = vector.multi_reduction <add>, %128, %cst_40 [1] : vector<8x8xf32> to vector<8xf32>
    %130 = vector.shape_cast %129 : vector<8xf32> to vector<8x1xf32>
    %131 = tpu.reciprocal %130 {approx = true} : vector<8x1xf32> -> vector<8x1xf32>
    %132 = vector.broadcast %131 : vector<8x1xf32> to vector<8x8xf32>
    %133 = arith.mulf %128, %132 : vector<8x8xf32>
    %134 = arith.truncf %133 : vector<8x8xf32> to vector<8x8xbf16>
    %cst_41 = arith.constant dense<0.000000e+00> : vector<8x8xf32>
    %135 = tpu.matmul %134, %122, %cst_41 {dimension_numbers = #tpu.dot_dimension_numbers<[1], [0], [0], [1], [0, 0, 1, 1], [], []>} : vector<8x8xbf16>, vector<8x8xbf16>, vector<8x8xf32> -> vector<8x8xf32>
    %136 = arith.truncf %135 : vector<8x8xf32> to vector<8x8xbf16>
    %137 = vector.extract_strided_slice %32 {offsets = [0, 0], sizes = [8, 32], strides = [1, 1]} : vector<32x32xbf16> to vector<8x32xbf16>
    %cst_42 = arith.constant dense<0.000000e+00> : vector<8x32xf32>
    %138 = tpu.matmul %136, %137, %cst_42 {dimension_numbers = #tpu.dot_dimension_numbers<[1], [0], [0], [1], [0, 0, 1, 1], [], []>} : vector<8x8xbf16>, vector<8x32xbf16>, vector<8x32xf32> -> vector<8x32xf32>
    %139 = arith.addf %119, %138 : vector<8x32xf32>
    %140 = vector.extract_strided_slice %31 {offsets = [8, 8], sizes = [8, 8], strides = [1, 1]} : vector<16x96xbf16> to vector<8x8xbf16>
    %141 = vector.extract_strided_slice %31 {offsets = [8, 40], sizes = [8, 8], strides = [1, 1]} : vector<16x96xbf16> to vector<8x8xbf16>
    %142 = vector.extract_strided_slice %31 {offsets = [8, 72], sizes = [8, 8], strides = [1, 1]} : vector<16x96xbf16> to vector<8x8xbf16>
    %cst_43 = arith.constant dense<0.000000e+00> : vector<8x8xf32>
    %143 = tpu.matmul %140, %141, %cst_43 {dimension_numbers = #tpu.dot_dimension_numbers<[1], [1], [0], [0], [0, 0, 1, 0], [], []>} : vector<8x8xbf16>, vector<8x8xbf16>, vector<8x8xf32> -> vector<8x8xf32>
    %cst_44 = arith.constant dense<0xFF800000> : vector<8xf32>
    %144 = vector.multi_reduction <maximumf>, %143, %cst_44 [1] : vector<8x8xf32> to vector<8xf32>
    %145 = vector.shape_cast %144 : vector<8xf32> to vector<8x1xf32>
    %146 = vector.broadcast %145 : vector<8x1xf32> to vector<8x8xf32>
    %147 = arith.subf %143, %146 : vector<8x8xf32>
    %148 = math.exp %147 : vector<8x8xf32>
    %cst_45 = arith.constant dense<0.000000e+00> : vector<8xf32>
    %149 = vector.multi_reduction <add>, %148, %cst_45 [1] : vector<8x8xf32> to vector<8xf32>
    %150 = vector.shape_cast %149 : vector<8xf32> to vector<8x1xf32>
    %151 = tpu.reciprocal %150 {approx = true} : vector<8x1xf32> -> vector<8x1xf32>
    %152 = vector.broadcast %151 : vector<8x1xf32> to vector<8x8xf32>
    %153 = arith.mulf %148, %152 : vector<8x8xf32>
    %154 = arith.truncf %153 : vector<8x8xf32> to vector<8x8xbf16>
    %cst_46 = arith.constant dense<0.000000e+00> : vector<8x8xf32>
    %155 = tpu.matmul %154, %142, %cst_46 {dimension_numbers = #tpu.dot_dimension_numbers<[1], [0], [0], [1], [0, 0, 1, 1], [], []>} : vector<8x8xbf16>, vector<8x8xbf16>, vector<8x8xf32> -> vector<8x8xf32>
    %156 = arith.truncf %155 : vector<8x8xf32> to vector<8x8xbf16>
    %157 = vector.extract_strided_slice %32 {offsets = [8, 0], sizes = [8, 32], strides = [1, 1]} : vector<32x32xbf16> to vector<8x32xbf16>
    %cst_47 = arith.constant dense<0.000000e+00> : vector<8x32xf32>
    %158 = tpu.matmul %156, %157, %cst_47 {dimension_numbers = #tpu.dot_dimension_numbers<[1], [0], [0], [1], [0, 0, 1, 1], [], []>} : vector<8x8xbf16>, vector<8x32xbf16>, vector<8x32xf32> -> vector<8x32xf32>
    %159 = arith.addf %139, %158 : vector<8x32xf32>
    %160 = vector.extract_strided_slice %31 {offsets = [8, 16], sizes = [8, 8], strides = [1, 1]} : vector<16x96xbf16> to vector<8x8xbf16>
    %161 = vector.extract_strided_slice %31 {offsets = [8, 48], sizes = [8, 8], strides = [1, 1]} : vector<16x96xbf16> to vector<8x8xbf16>
    %162 = vector.extract_strided_slice %31 {offsets = [8, 80], sizes = [8, 8], strides = [1, 1]} : vector<16x96xbf16> to vector<8x8xbf16>
    %cst_48 = arith.constant dense<0.000000e+00> : vector<8x8xf32>
    %163 = tpu.matmul %160, %161, %cst_48 {dimension_numbers = #tpu.dot_dimension_numbers<[1], [1], [0], [0], [0, 0, 1, 0], [], []>} : vector<8x8xbf16>, vector<8x8xbf16>, vector<8x8xf32> -> vector<8x8xf32>
    %cst_49 = arith.constant dense<0xFF800000> : vector<8xf32>
    %164 = vector.multi_reduction <maximumf>, %163, %cst_49 [1] : vector<8x8xf32> to vector<8xf32>
    %165 = vector.shape_cast %164 : vector<8xf32> to vector<8x1xf32>
    %166 = vector.broadcast %165 : vector<8x1xf32> to vector<8x8xf32>
    %167 = arith.subf %163, %166 : vector<8x8xf32>
    %168 = math.exp %167 : vector<8x8xf32>
    %cst_50 = arith.constant dense<0.000000e+00> : vector<8xf32>
    %169 = vector.multi_reduction <add>, %168, %cst_50 [1] : vector<8x8xf32> to vector<8xf32>
    %170 = vector.shape_cast %169 : vector<8xf32> to vector<8x1xf32>
    %171 = tpu.reciprocal %170 {approx = true} : vector<8x1xf32> -> vector<8x1xf32>
    %172 = vector.broadcast %171 : vector<8x1xf32> to vector<8x8xf32>
    %173 = arith.mulf %168, %172 : vector<8x8xf32>
    %174 = arith.truncf %173 : vector<8x8xf32> to vector<8x8xbf16>
    %cst_51 = arith.constant dense<0.000000e+00> : vector<8x8xf32>
    %175 = tpu.matmul %174, %162, %cst_51 {dimension_numbers = #tpu.dot_dimension_numbers<[1], [0], [0], [1], [0, 0, 1, 1], [], []>} : vector<8x8xbf16>, vector<8x8xbf16>, vector<8x8xf32> -> vector<8x8xf32>
    %176 = arith.truncf %175 : vector<8x8xf32> to vector<8x8xbf16>
    %177 = vector.extract_strided_slice %32 {offsets = [16, 0], sizes = [8, 32], strides = [1, 1]} : vector<32x32xbf16> to vector<8x32xbf16>
    %cst_52 = arith.constant dense<0.000000e+00> : vector<8x32xf32>
    %178 = tpu.matmul %176, %177, %cst_52 {dimension_numbers = #tpu.dot_dimension_numbers<[1], [0], [0], [1], [0, 0, 1, 1], [], []>} : vector<8x8xbf16>, vector<8x32xbf16>, vector<8x32xf32> -> vector<8x32xf32>
    %179 = arith.addf %159, %178 : vector<8x32xf32>
    %180 = vector.extract_strided_slice %31 {offsets = [8, 24], sizes = [8, 8], strides = [1, 1]} : vector<16x96xbf16> to vector<8x8xbf16>
    %181 = vector.extract_strided_slice %31 {offsets = [8, 56], sizes = [8, 8], strides = [1, 1]} : vector<16x96xbf16> to vector<8x8xbf16>
    %182 = vector.extract_strided_slice %31 {offsets = [8, 88], sizes = [8, 8], strides = [1, 1]} : vector<16x96xbf16> to vector<8x8xbf16>
    %cst_53 = arith.constant dense<0.000000e+00> : vector<8x8xf32>
    %183 = tpu.matmul %180, %181, %cst_53 {dimension_numbers = #tpu.dot_dimension_numbers<[1], [1], [0], [0], [0, 0, 1, 0], [], []>} : vector<8x8xbf16>, vector<8x8xbf16>, vector<8x8xf32> -> vector<8x8xf32>
    %cst_54 = arith.constant dense<0xFF800000> : vector<8xf32>
    %184 = vector.multi_reduction <maximumf>, %183, %cst_54 [1] : vector<8x8xf32> to vector<8xf32>
    %185 = vector.shape_cast %184 : vector<8xf32> to vector<8x1xf32>
    %186 = vector.broadcast %185 : vector<8x1xf32> to vector<8x8xf32>
    %187 = arith.subf %183, %186 : vector<8x8xf32>
    %188 = math.exp %187 : vector<8x8xf32>
    %cst_55 = arith.constant dense<0.000000e+00> : vector<8xf32>
    %189 = vector.multi_reduction <add>, %188, %cst_55 [1] : vector<8x8xf32> to vector<8xf32>
    %190 = vector.shape_cast %189 : vector<8xf32> to vector<8x1xf32>
    %191 = tpu.reciprocal %190 {approx = true} : vector<8x1xf32> -> vector<8x1xf32>
    %192 = vector.broadcast %191 : vector<8x1xf32> to vector<8x8xf32>
    %193 = arith.mulf %188, %192 : vector<8x8xf32>
    %194 = arith.truncf %193 : vector<8x8xf32> to vector<8x8xbf16>
    %cst_56 = arith.constant dense<0.000000e+00> : vector<8x8xf32>
    %195 = tpu.matmul %194, %182, %cst_56 {dimension_numbers = #tpu.dot_dimension_numbers<[1], [0], [0], [1], [0, 0, 1, 1], [], []>} : vector<8x8xbf16>, vector<8x8xbf16>, vector<8x8xf32> -> vector<8x8xf32>
    %196 = arith.truncf %195 : vector<8x8xf32> to vector<8x8xbf16>
    %197 = vector.extract_strided_slice %32 {offsets = [24, 0], sizes = [8, 32], strides = [1, 1]} : vector<32x32xbf16> to vector<8x32xbf16>
    %cst_57 = arith.constant dense<0.000000e+00> : vector<8x32xf32>
    %198 = tpu.matmul %196, %197, %cst_57 {dimension_numbers = #tpu.dot_dimension_numbers<[1], [0], [0], [1], [0, 0, 1, 1], [], []>} : vector<8x8xbf16>, vector<8x32xbf16>, vector<8x32xf32> -> vector<8x32xf32>
    %199 = arith.addf %179, %198 : vector<8x32xf32>
    %200 = tpu.concatenate %116, %199 in 0 : vector<8x32xf32>, vector<8x32xf32> -> vector<16x32xf32>
    %c0_58 = arith.constant 0 : index
    %c0_59 = arith.constant 0 : index
    %201 = vector.load %arg7[%c0_58, %c0_59] : memref<1x32xf32, #tpu.memory_space<vmem>>, vector<1x32xf32>
    %c0_60 = arith.constant 0 : index
    %c0_61 = arith.constant 0 : index
    %202 = vector.load %arg8[%c0_60, %c0_61] : memref<1x32xf32, #tpu.memory_space<vmem>>, vector<1x32xf32>
    %cst_62 = arith.constant dense<0.000000e+00> : vector<16xf32>
    %203 = vector.multi_reduction <add>, %200, %cst_62 [1] : vector<16x32xf32> to vector<16xf32>
    %204 = vector.shape_cast %203 : vector<16xf32> to vector<16x1xf32>
    %cst_63 = arith.constant 3.200000e+01 : f32
    %205 = vector.broadcast %cst_63 : f32 to vector<16x1xf32>
    %206 = arith.divf %204, %205 : vector<16x1xf32>
    %207 = vector.broadcast %206 : vector<16x1xf32> to vector<16x32xf32>
    %208 = arith.subf %200, %207 : vector<16x32xf32>
    %209 = arith.mulf %208, %208 : vector<16x32xf32>
    %cst_64 = arith.constant dense<0.000000e+00> : vector<16xf32>
    %210 = vector.multi_reduction <add>, %209, %cst_64 [1] : vector<16x32xf32> to vector<16xf32>
    %211 = vector.shape_cast %210 : vector<16xf32> to vector<16x1xf32>
    %cst_65 = arith.constant 3.200000e+01 : f32
    %212 = vector.broadcast %cst_65 : f32 to vector<16x1xf32>
    %213 = arith.divf %211, %212 : vector<16x1xf32>
    %214 = vector.broadcast %206 : vector<16x1xf32> to vector<16x32xf32>
    %215 = arith.subf %200, %214 : vector<16x32xf32>
    %cst_66 = arith.constant 9.99999974E-6 : f32
    %216 = vector.broadcast %cst_66 : f32 to vector<16x1xf32>
    %217 = arith.addf %213, %216 : vector<16x1xf32>
    %218 = math.rsqrt %217 : vector<16x1xf32>
    %219 = vector.broadcast %218 : vector<16x1xf32> to vector<16x32xf32>
    %220 = arith.mulf %215, %219 : vector<16x32xf32>
    %221 = vector.broadcast %201 : vector<1x32xf32> to vector<16x32xf32>
    %222 = arith.mulf %220, %221 : vector<16x32xf32>
    %223 = vector.broadcast %202 : vector<1x32xf32> to vector<16x32xf32>
    %224 = arith.addf %222, %223 : vector<16x32xf32>
    %225 = arith.truncf %224 : vector<16x32xf32> to vector<16x32xbf16>
    %c0_67 = arith.constant 0 : index
    %c0_68 = arith.constant 0 : index
    %226 = vector.load %arg9[%c0_67, %c0_68] : memref<32x128xbf16, #tpu.memory_space<vmem>>, vector<32x128xbf16>
    %cst_69 = arith.constant dense<0.000000e+00> : vector<16x128xf32>
    %227 = tpu.matmul %225, %226, %cst_69 {dimension_numbers = #tpu.dot_dimension_numbers<[1], [0], [0], [1], [0, 0, 1, 1], [], []>} : vector<16x32xbf16>, vector<32x128xbf16>, vector<16x128xf32> -> vector<16x128xf32>
    %c0_70 = arith.constant 0 : index
    %c0_71 = arith.constant 0 : index
    %228 = vector.load %arg10[%c0_70, %c0_71] : memref<1x128xf32, #tpu.memory_space<vmem>>, vector<1x128xf32>
    %229 = vector.broadcast %228 : vector<1x128xf32> to vector<16x128xf32>
    %230 = arith.addf %227, %229 : vector<16x128xf32>
    %cst_72 = arith.constant 5.000000e-01 : f32
    %231 = vector.broadcast %cst_72 : f32 to vector<16x128xf32>
    %232 = arith.mulf %231, %230 : vector<16x128xf32>
    %cst_73 = arith.constant 0.707106769 : f32
    %233 = vector.broadcast %cst_73 : f32 to vector<16x128xf32>
    %234 = arith.mulf %230, %233 : vector<16x128xf32>
    %235 = math.absf %234 : vector<16x128xf32>
    %cst_74 = arith.constant 0.327591091 : f32
    %236 = vector.broadcast %cst_74 : f32 to vector<16x128xf32>
    %237 = arith.mulf %236, %235 : vector<16x128xf32>
    %cst_75 = arith.constant 1.000000e+00 : f32
    %238 = vector.broadcast %cst_75 : f32 to vector<16x128xf32>
    %239 = arith.addf %238, %237 : vector<16x128xf32>
    %cst_76 = arith.constant 1.000000e+00 : f32
    %240 = vector.broadcast %cst_76 : f32 to vector<16x128xf32>
    %241 = arith.divf %240, %239 : vector<16x128xf32>
    %cst_77 = arith.constant 1.06140542 : f32
    %242 = vector.broadcast %cst_77 : f32 to vector<16x128xf32>
    %243 = arith.mulf %241, %242 : vector<16x128xf32>
    %cst_78 = arith.constant -1.45315206 : f32
    %244 = vector.broadcast %cst_78 : f32 to vector<16x128xf32>
    %245 = arith.addf %244, %243 : vector<16x128xf32>
    %246 = arith.mulf %241, %245 : vector<16x128xf32>
    %cst_79 = arith.constant 1.42141378 : f32
    %247 = vector.broadcast %cst_79 : f32 to vector<16x128xf32>
    %248 = arith.addf %247, %246 : vector<16x128xf32>
    %249 = arith.mulf %241, %248 : vector<16x128xf32>
    %cst_80 = arith.constant -0.284496725 : f32
    %250 = vector.broadcast %cst_80 : f32 to vector<16x128xf32>
    %251 = arith.addf %250, %249 : vector<16x128xf32>
    %252 = arith.mulf %241, %251 : vector<16x128xf32>
    %cst_81 = arith.constant 0.254829586 : f32
    %253 = vector.broadcast %cst_81 : f32 to vector<16x128xf32>
    %254 = arith.addf %253, %252 : vector<16x128xf32>
    %255 = arith.mulf %241, %254 : vector<16x128xf32>
    %cst_82 = arith.constant 0.000000e+00 : f32
    %256 = vector.broadcast %cst_82 : f32 to vector<16x128xf32>
    %257 = arith.subf %256, %235 : vector<16x128xf32>
    %258 = arith.mulf %257, %235 : vector<16x128xf32>
    %259 = math.exp %258 : vector<16x128xf32>
    %260 = arith.mulf %255, %259 : vector<16x128xf32>
    %cst_83 = arith.constant 1.000000e+00 : f32
    %261 = vector.broadcast %cst_83 : f32 to vector<16x128xf32>
    %262 = arith.subf %261, %260 : vector<16x128xf32>
    %cst_84 = arith.constant 0.000000e+00 : f32
    %263 = vector.broadcast %cst_84 : f32 to vector<16x128xf32>
    %264 = arith.cmpf oge, %234, %263 : vector<16x128xf32>
    %cst_85 = arith.constant 0.000000e+00 : f32
    %265 = vector.broadcast %cst_85 : f32 to vector<16x128xf32>
    %266 = arith.subf %265, %262 : vector<16x128xf32>
    %267 = arith.select %264, %262, %266 : vector<16x128xi1>, vector<16x128xf32>
    %cst_86 = arith.constant 1.000000e+00 : f32
    %268 = vector.broadcast %cst_86 : f32 to vector<16x128xf32>
    %269 = arith.addf %268, %267 : vector<16x128xf32>
    %270 = arith.mulf %232, %269 : vector<16x128xf32>
    %271 = arith.truncf %270 : vector<16x128xf32> to vector<16x128xbf16>
    %c0_87 = arith.constant 0 : index
    %c0_88 = arith.constant 0 : index
    %272 = vector.load %arg11[%c0_87, %c0_88] : memref<128x32xbf16, #tpu.memory_space<vmem>>, vector<128x32xbf16>
    %cst_89 = arith.constant dense<0.000000e+00> : vector<16x32xf32>
    %273 = tpu.matmul %271, %272, %cst_89 {dimension_numbers = #tpu.dot_dimension_numbers<[1], [0], [0], [1], [0, 0, 1, 1], [], []>} : vector<16x128xbf16>, vector<128x32xbf16>, vector<16x32xf32> -> vector<16x32xf32>
    %274 = arith.addf %200, %273 : vector<16x32xf32>
    %c0_90 = arith.constant 0 : index
    %c0_91 = arith.constant 0 : index
    %275 = vector.load %arg12[%c0_90, %c0_91] : memref<1x32xf32, #tpu.memory_space<vmem>>, vector<1x32xf32>
    %276 = vector.broadcast %275 : vector<1x32xf32> to vector<16x32xf32>
    %277 = arith.addf %274, %276 : vector<16x32xf32>
    %c0_92 = arith.constant 0 : index
    %c0_93 = arith.constant 0 : index
    %278 = vector.load %arg13[%c0_92, %c0_93] : memref<16x32xf32, #tpu.memory_space<vmem>>, vector<16x32xf32>
    tpu.vector_store %arg13[%c0_92, %c0_93], %277 {strides = array<i32>} : memref<16x32xf32, #tpu.memory_space<vmem>>, vector<16x32xf32>,
    return
  }
}

module attributes {stable_mosaic.version = 11 : i64} {
  func.func @_frontend_kernel(%arg0: memref<32x16xf32, #tpu.memory_space<vmem>>, %arg1: memref<3x16x32xbf16, #tpu.memory_space<vmem>>, %arg2: memref<1x32xf32, #tpu.memory_space<vmem>>, %arg3: memref<3x32x32xbf16, #tpu.memory_space<vmem>>, %arg4: memref<1x32xf32, #tpu.memory_space<vmem>>, %arg5: memref<8x32xf32, #tpu.memory_space<vmem>>, %arg6: memref<16x32xf32, #tpu.memory_space<vmem>>) attributes {dimension_semantics = [], scalar_prefetch = 0 : i64, scratch_operands = 0 : i64, tpu.core_type = #tpu.core_type<tc>} {
    %c0 = arith.constant 0 : index
    %c0_0 = arith.constant 0 : index
    %0 = vector.load %arg5[%c0, %c0_0] : memref<8x32xf32, #tpu.memory_space<vmem>>, vector<8x32xf32>
    %c0_1 = arith.constant 0 : index
    %c0_2 = arith.constant 0 : index
    %1 = vector.load %arg2[%c0_1, %c0_2] : memref<1x32xf32, #tpu.memory_space<vmem>>, vector<1x32xf32>
    %c0_3 = arith.constant 0 : index
    %c0_4 = arith.constant 0 : index
    %2 = vector.load %arg4[%c0_3, %c0_4] : memref<1x32xf32, #tpu.memory_space<vmem>>, vector<1x32xf32>
    %c0_5 = arith.constant 0 : index
    %c0_6 = arith.constant 0 : index
    %c0_7 = arith.constant 0 : index
    %3 = vector.load %arg1[%c0_5, %c0_6, %c0_7] : memref<3x16x32xbf16, #tpu.memory_space<vmem>>, vector<1x16x32xbf16>
    %4 = vector.shape_cast %3 : vector<1x16x32xbf16> to vector<16x32xbf16>
    %c1 = arith.constant 1 : index
    %c0_8 = arith.constant 0 : index
    %c0_9 = arith.constant 0 : index
    %5 = vector.load %arg1[%c1, %c0_8, %c0_9] : memref<3x16x32xbf16, #tpu.memory_space<vmem>>, vector<1x16x32xbf16>
    %6 = vector.shape_cast %5 : vector<1x16x32xbf16> to vector<16x32xbf16>
    %c2 = arith.constant 2 : index
    %c0_10 = arith.constant 0 : index
    %c0_11 = arith.constant 0 : index
    %7 = vector.load %arg1[%c2, %c0_10, %c0_11] : memref<3x16x32xbf16, #tpu.memory_space<vmem>>, vector<1x16x32xbf16>
    %8 = vector.shape_cast %7 : vector<1x16x32xbf16> to vector<16x32xbf16>
    %c0_12 = arith.constant 0 : index
    %c0_13 = arith.constant 0 : index
    %c0_14 = arith.constant 0 : index
    %9 = vector.load %arg3[%c0_12, %c0_13, %c0_14] : memref<3x32x32xbf16, #tpu.memory_space<vmem>>, vector<1x32x32xbf16>
    %10 = vector.shape_cast %9 : vector<1x32x32xbf16> to vector<32x32xbf16>
    %c1_15 = arith.constant 1 : index
    %c0_16 = arith.constant 0 : index
    %c0_17 = arith.constant 0 : index
    %11 = vector.load %arg3[%c1_15, %c0_16, %c0_17] : memref<3x32x32xbf16, #tpu.memory_space<vmem>>, vector<1x32x32xbf16>
    %12 = vector.shape_cast %11 : vector<1x32x32xbf16> to vector<32x32xbf16>
    %c2_18 = arith.constant 2 : index
    %c0_19 = arith.constant 0 : index
    %c0_20 = arith.constant 0 : index
    %13 = vector.load %arg3[%c2_18, %c0_19, %c0_20] : memref<3x32x32xbf16, #tpu.memory_space<vmem>>, vector<1x32x32xbf16>
    %14 = vector.shape_cast %13 : vector<1x32x32xbf16> to vector<32x32xbf16>
    %15 = tpu.iota {dimensions = array<i32: 0>} : vector<8x16xi32>
    %16 = tpu.iota {dimensions = array<i32: 1>} : vector<8x16xi32>
    %c2_i32 = arith.constant 2 : i32
    %17 = vector.broadcast %c2_i32 : i32 to vector<8x16xi32>
    %18 = arith.muli %17, %15 : vector<8x16xi32>
    %c1_i32 = arith.constant 1 : i32
    %19 = vector.broadcast %c1_i32 : i32 to vector<8x16xi32>
    %20 = arith.subi %18, %19 : vector<8x16xi32>
    %21 = arith.cmpi eq, %16, %20 : vector<8x16xi32>
    %cst = arith.constant 1.000000e+00 : f32
    %cst_21 = arith.constant 0.000000e+00 : f32
    %22 = vector.broadcast %cst : f32 to vector<8x16xf32>
    %23 = vector.broadcast %cst_21 : f32 to vector<8x16xf32>
    %24 = arith.select %21, %22, %23 : vector<8x16xi1>, vector<8x16xf32>
    %25 = arith.truncf %24 : vector<8x16xf32> to vector<8x16xbf16>
    %c2_i32_22 = arith.constant 2 : i32
    %26 = vector.broadcast %c2_i32_22 : i32 to vector<8x16xi32>
    %27 = arith.muli %26, %15 : vector<8x16xi32>
    %28 = arith.cmpi eq, %16, %27 : vector<8x16xi32>
    %cst_23 = arith.constant 1.000000e+00 : f32
    %cst_24 = arith.constant 0.000000e+00 : f32
    %29 = vector.broadcast %cst_23 : f32 to vector<8x16xf32>
    %30 = vector.broadcast %cst_24 : f32 to vector<8x16xf32>
    %31 = arith.select %28, %29, %30 : vector<8x16xi1>, vector<8x16xf32>
    %32 = arith.truncf %31 : vector<8x16xf32> to vector<8x16xbf16>
    %c2_i32_25 = arith.constant 2 : i32
    %33 = vector.broadcast %c2_i32_25 : i32 to vector<8x16xi32>
    %34 = arith.muli %33, %15 : vector<8x16xi32>
    %c1_i32_26 = arith.constant 1 : i32
    %35 = vector.broadcast %c1_i32_26 : i32 to vector<8x16xi32>
    %36 = arith.addi %34, %35 : vector<8x16xi32>
    %37 = arith.cmpi eq, %16, %36 : vector<8x16xi32>
    %cst_27 = arith.constant 1.000000e+00 : f32
    %cst_28 = arith.constant 0.000000e+00 : f32
    %38 = vector.broadcast %cst_27 : f32 to vector<8x16xf32>
    %39 = vector.broadcast %cst_28 : f32 to vector<8x16xf32>
    %40 = arith.select %37, %38, %39 : vector<8x16xi1>, vector<8x16xf32>
    %41 = arith.truncf %40 : vector<8x16xf32> to vector<8x16xbf16>
    %c0_29 = arith.constant 0 : index
    %c0_30 = arith.constant 0 : index
    %42 = vector.load %arg0[%c0_29, %c0_30] : memref<32x16xf32, #tpu.memory_space<vmem>>, vector<16x16xf32>
    %43 = arith.truncf %42 : vector<16x16xf32> to vector<16x16xbf16>
    %cst_31 = arith.constant 0.000000e+00 : bf16
    %44 = vector.broadcast %cst_31 : bf16 to vector<1x16xbf16>
    %45 = vector.extract_strided_slice %43 {offsets = [0, 0], sizes = [15, 16], strides = [1, 1]} : vector<16x16xbf16> to vector<15x16xbf16>
    %46 = tpu.concatenate %44, %45 in 0 : vector<1x16xbf16>, vector<15x16xbf16> -> vector<16x16xbf16>
    %47 = vector.extract_strided_slice %43 {offsets = [1, 0], sizes = [15, 16], strides = [1, 1]} : vector<16x16xbf16> to vector<15x16xbf16>
    %48 = tpu.concatenate %47, %44 in 0 : vector<15x16xbf16>, vector<1x16xbf16> -> vector<16x16xbf16>
    %cst_32 = arith.constant dense<0.000000e+00> : vector<16x32xf32>
    %49 = tpu.matmul %46, %4, %cst_32 {dimension_numbers = #tpu.dot_dimension_numbers<[1], [0], [0], [1], [0, 0, 1, 1], [], []>} : vector<16x16xbf16>, vector<16x32xbf16>, vector<16x32xf32> -> vector<16x32xf32>
    %cst_33 = arith.constant dense<0.000000e+00> : vector<16x32xf32>
    %50 = tpu.matmul %43, %6, %cst_33 {dimension_numbers = #tpu.dot_dimension_numbers<[1], [0], [0], [1], [0, 0, 1, 1], [], []>} : vector<16x16xbf16>, vector<16x32xbf16>, vector<16x32xf32> -> vector<16x32xf32>
    %51 = arith.addf %49, %50 : vector<16x32xf32>
    %cst_34 = arith.constant dense<0.000000e+00> : vector<16x32xf32>
    %52 = tpu.matmul %48, %8, %cst_34 {dimension_numbers = #tpu.dot_dimension_numbers<[1], [0], [0], [1], [0, 0, 1, 1], [], []>} : vector<16x16xbf16>, vector<16x32xbf16>, vector<16x32xf32> -> vector<16x32xf32>
    %53 = arith.addf %51, %52 : vector<16x32xf32>
    %54 = vector.broadcast %1 : vector<1x32xf32> to vector<16x32xf32>
    %55 = arith.addf %53, %54 : vector<16x32xf32>
    %cst_35 = arith.constant 5.000000e-01 : f32
    %56 = vector.broadcast %cst_35 : f32 to vector<16x32xf32>
    %57 = arith.mulf %56, %55 : vector<16x32xf32>
    %cst_36 = arith.constant 0.707106769 : f32
    %58 = vector.broadcast %cst_36 : f32 to vector<16x32xf32>
    %59 = arith.mulf %55, %58 : vector<16x32xf32>
    %60 = math.absf %59 : vector<16x32xf32>
    %cst_37 = arith.constant 0.327591091 : f32
    %61 = vector.broadcast %cst_37 : f32 to vector<16x32xf32>
    %62 = arith.mulf %61, %60 : vector<16x32xf32>
    %cst_38 = arith.constant 1.000000e+00 : f32
    %63 = vector.broadcast %cst_38 : f32 to vector<16x32xf32>
    %64 = arith.addf %63, %62 : vector<16x32xf32>
    %cst_39 = arith.constant 1.000000e+00 : f32
    %65 = vector.broadcast %cst_39 : f32 to vector<16x32xf32>
    %66 = arith.divf %65, %64 : vector<16x32xf32>
    %cst_40 = arith.constant 1.06140542 : f32
    %67 = vector.broadcast %cst_40 : f32 to vector<16x32xf32>
    %68 = arith.mulf %66, %67 : vector<16x32xf32>
    %cst_41 = arith.constant -1.45315206 : f32
    %69 = vector.broadcast %cst_41 : f32 to vector<16x32xf32>
    %70 = arith.addf %69, %68 : vector<16x32xf32>
    %71 = arith.mulf %66, %70 : vector<16x32xf32>
    %cst_42 = arith.constant 1.42141378 : f32
    %72 = vector.broadcast %cst_42 : f32 to vector<16x32xf32>
    %73 = arith.addf %72, %71 : vector<16x32xf32>
    %74 = arith.mulf %66, %73 : vector<16x32xf32>
    %cst_43 = arith.constant -0.284496725 : f32
    %75 = vector.broadcast %cst_43 : f32 to vector<16x32xf32>
    %76 = arith.addf %75, %74 : vector<16x32xf32>
    %77 = arith.mulf %66, %76 : vector<16x32xf32>
    %cst_44 = arith.constant 0.254829586 : f32
    %78 = vector.broadcast %cst_44 : f32 to vector<16x32xf32>
    %79 = arith.addf %78, %77 : vector<16x32xf32>
    %80 = arith.mulf %66, %79 : vector<16x32xf32>
    %cst_45 = arith.constant 0.000000e+00 : f32
    %81 = vector.broadcast %cst_45 : f32 to vector<16x32xf32>
    %82 = arith.subf %81, %60 : vector<16x32xf32>
    %83 = arith.mulf %82, %60 : vector<16x32xf32>
    %84 = math.exp %83 : vector<16x32xf32>
    %85 = arith.mulf %80, %84 : vector<16x32xf32>
    %cst_46 = arith.constant 1.000000e+00 : f32
    %86 = vector.broadcast %cst_46 : f32 to vector<16x32xf32>
    %87 = arith.subf %86, %85 : vector<16x32xf32>
    %cst_47 = arith.constant 0.000000e+00 : f32
    %88 = vector.broadcast %cst_47 : f32 to vector<16x32xf32>
    %89 = arith.cmpf oge, %59, %88 : vector<16x32xf32>
    %cst_48 = arith.constant 0.000000e+00 : f32
    %90 = vector.broadcast %cst_48 : f32 to vector<16x32xf32>
    %91 = arith.subf %90, %87 : vector<16x32xf32>
    %92 = arith.select %89, %87, %91 : vector<16x32xi1>, vector<16x32xf32>
    %cst_49 = arith.constant 1.000000e+00 : f32
    %93 = vector.broadcast %cst_49 : f32 to vector<16x32xf32>
    %94 = arith.addf %93, %92 : vector<16x32xf32>
    %95 = arith.mulf %57, %94 : vector<16x32xf32>
    %96 = arith.truncf %95 : vector<16x32xf32> to vector<16x32xbf16>
    %cst_50 = arith.constant dense<0.000000e+00> : vector<8x32xf32>
    %97 = tpu.matmul %25, %96, %cst_50 {dimension_numbers = #tpu.dot_dimension_numbers<[1], [0], [0], [1], [0, 0, 1, 1], [], []>} : vector<8x16xbf16>, vector<16x32xbf16>, vector<8x32xf32> -> vector<8x32xf32>
    %98 = arith.truncf %97 : vector<8x32xf32> to vector<8x32xbf16>
    %cst_51 = arith.constant dense<0.000000e+00> : vector<8x32xf32>
    %99 = tpu.matmul %32, %96, %cst_51 {dimension_numbers = #tpu.dot_dimension_numbers<[1], [0], [0], [1], [0, 0, 1, 1], [], []>} : vector<8x16xbf16>, vector<16x32xbf16>, vector<8x32xf32> -> vector<8x32xf32>
    %100 = arith.truncf %99 : vector<8x32xf32> to vector<8x32xbf16>
    %cst_52 = arith.constant dense<0.000000e+00> : vector<8x32xf32>
    %101 = tpu.matmul %41, %96, %cst_52 {dimension_numbers = #tpu.dot_dimension_numbers<[1], [0], [0], [1], [0, 0, 1, 1], [], []>} : vector<8x16xbf16>, vector<16x32xbf16>, vector<8x32xf32> -> vector<8x32xf32>
    %102 = arith.truncf %101 : vector<8x32xf32> to vector<8x32xbf16>
    %cst_53 = arith.constant dense<0.000000e+00> : vector<8x32xf32>
    %103 = tpu.matmul %98, %10, %cst_53 {dimension_numbers = #tpu.dot_dimension_numbers<[1], [0], [0], [1], [0, 0, 1, 1], [], []>} : vector<8x32xbf16>, vector<32x32xbf16>, vector<8x32xf32> -> vector<8x32xf32>
    %cst_54 = arith.constant dense<0.000000e+00> : vector<8x32xf32>
    %104 = tpu.matmul %100, %12, %cst_54 {dimension_numbers = #tpu.dot_dimension_numbers<[1], [0], [0], [1], [0, 0, 1, 1], [], []>} : vector<8x32xbf16>, vector<32x32xbf16>, vector<8x32xf32> -> vector<8x32xf32>
    %105 = arith.addf %103, %104 : vector<8x32xf32>
    %cst_55 = arith.constant dense<0.000000e+00> : vector<8x32xf32>
    %106 = tpu.matmul %102, %14, %cst_55 {dimension_numbers = #tpu.dot_dimension_numbers<[1], [0], [0], [1], [0, 0, 1, 1], [], []>} : vector<8x32xbf16>, vector<32x32xbf16>, vector<8x32xf32> -> vector<8x32xf32>
    %107 = arith.addf %105, %106 : vector<8x32xf32>
    %108 = vector.broadcast %2 : vector<1x32xf32> to vector<8x32xf32>
    %109 = arith.addf %107, %108 : vector<8x32xf32>
    %cst_56 = arith.constant 5.000000e-01 : f32
    %110 = vector.broadcast %cst_56 : f32 to vector<8x32xf32>
    %111 = arith.mulf %110, %109 : vector<8x32xf32>
    %cst_57 = arith.constant 0.707106769 : f32
    %112 = vector.broadcast %cst_57 : f32 to vector<8x32xf32>
    %113 = arith.mulf %109, %112 : vector<8x32xf32>
    %114 = math.absf %113 : vector<8x32xf32>
    %cst_58 = arith.constant 0.327591091 : f32
    %115 = vector.broadcast %cst_58 : f32 to vector<8x32xf32>
    %116 = arith.mulf %115, %114 : vector<8x32xf32>
    %cst_59 = arith.constant 1.000000e+00 : f32
    %117 = vector.broadcast %cst_59 : f32 to vector<8x32xf32>
    %118 = arith.addf %117, %116 : vector<8x32xf32>
    %cst_60 = arith.constant 1.000000e+00 : f32
    %119 = vector.broadcast %cst_60 : f32 to vector<8x32xf32>
    %120 = arith.divf %119, %118 : vector<8x32xf32>
    %cst_61 = arith.constant 1.06140542 : f32
    %121 = vector.broadcast %cst_61 : f32 to vector<8x32xf32>
    %122 = arith.mulf %120, %121 : vector<8x32xf32>
    %cst_62 = arith.constant -1.45315206 : f32
    %123 = vector.broadcast %cst_62 : f32 to vector<8x32xf32>
    %124 = arith.addf %123, %122 : vector<8x32xf32>
    %125 = arith.mulf %120, %124 : vector<8x32xf32>
    %cst_63 = arith.constant 1.42141378 : f32
    %126 = vector.broadcast %cst_63 : f32 to vector<8x32xf32>
    %127 = arith.addf %126, %125 : vector<8x32xf32>
    %128 = arith.mulf %120, %127 : vector<8x32xf32>
    %cst_64 = arith.constant -0.284496725 : f32
    %129 = vector.broadcast %cst_64 : f32 to vector<8x32xf32>
    %130 = arith.addf %129, %128 : vector<8x32xf32>
    %131 = arith.mulf %120, %130 : vector<8x32xf32>
    %cst_65 = arith.constant 0.254829586 : f32
    %132 = vector.broadcast %cst_65 : f32 to vector<8x32xf32>
    %133 = arith.addf %132, %131 : vector<8x32xf32>
    %134 = arith.mulf %120, %133 : vector<8x32xf32>
    %cst_66 = arith.constant 0.000000e+00 : f32
    %135 = vector.broadcast %cst_66 : f32 to vector<8x32xf32>
    %136 = arith.subf %135, %114 : vector<8x32xf32>
    %137 = arith.mulf %136, %114 : vector<8x32xf32>
    %138 = math.exp %137 : vector<8x32xf32>
    %139 = arith.mulf %134, %138 : vector<8x32xf32>
    %cst_67 = arith.constant 1.000000e+00 : f32
    %140 = vector.broadcast %cst_67 : f32 to vector<8x32xf32>
    %141 = arith.subf %140, %139 : vector<8x32xf32>
    %cst_68 = arith.constant 0.000000e+00 : f32
    %142 = vector.broadcast %cst_68 : f32 to vector<8x32xf32>
    %143 = arith.cmpf oge, %113, %142 : vector<8x32xf32>
    %cst_69 = arith.constant 0.000000e+00 : f32
    %144 = vector.broadcast %cst_69 : f32 to vector<8x32xf32>
    %145 = arith.subf %144, %141 : vector<8x32xf32>
    %146 = arith.select %143, %141, %145 : vector<8x32xi1>, vector<8x32xf32>
    %cst_70 = arith.constant 1.000000e+00 : f32
    %147 = vector.broadcast %cst_70 : f32 to vector<8x32xf32>
    %148 = arith.addf %147, %146 : vector<8x32xf32>
    %149 = arith.mulf %111, %148 : vector<8x32xf32>
    %150 = arith.addf %149, %0 : vector<8x32xf32>
    %c0_71 = arith.constant 0 : index
    %c0_72 = arith.constant 0 : index
    %151 = vector.load %arg6[%c0_71, %c0_72] : memref<16x32xf32, #tpu.memory_space<vmem>>, vector<8x32xf32>
    tpu.vector_store %arg6[%c0_71, %c0_72], %150 {strides = array<i32>} : memref<16x32xf32, #tpu.memory_space<vmem>>, vector<8x32xf32>,
    %c16 = arith.constant 16 : index
    %c0_73 = arith.constant 0 : index
    %152 = vector.load %arg0[%c16, %c0_73] : memref<32x16xf32, #tpu.memory_space<vmem>>, vector<16x16xf32>
    %153 = arith.truncf %152 : vector<16x16xf32> to vector<16x16xbf16>
    %cst_74 = arith.constant 0.000000e+00 : bf16
    %154 = vector.broadcast %cst_74 : bf16 to vector<1x16xbf16>
    %155 = vector.extract_strided_slice %153 {offsets = [0, 0], sizes = [15, 16], strides = [1, 1]} : vector<16x16xbf16> to vector<15x16xbf16>
    %156 = tpu.concatenate %154, %155 in 0 : vector<1x16xbf16>, vector<15x16xbf16> -> vector<16x16xbf16>
    %157 = vector.extract_strided_slice %153 {offsets = [1, 0], sizes = [15, 16], strides = [1, 1]} : vector<16x16xbf16> to vector<15x16xbf16>
    %158 = tpu.concatenate %157, %154 in 0 : vector<15x16xbf16>, vector<1x16xbf16> -> vector<16x16xbf16>
    %cst_75 = arith.constant dense<0.000000e+00> : vector<16x32xf32>
    %159 = tpu.matmul %156, %4, %cst_75 {dimension_numbers = #tpu.dot_dimension_numbers<[1], [0], [0], [1], [0, 0, 1, 1], [], []>} : vector<16x16xbf16>, vector<16x32xbf16>, vector<16x32xf32> -> vector<16x32xf32>
    %cst_76 = arith.constant dense<0.000000e+00> : vector<16x32xf32>
    %160 = tpu.matmul %153, %6, %cst_76 {dimension_numbers = #tpu.dot_dimension_numbers<[1], [0], [0], [1], [0, 0, 1, 1], [], []>} : vector<16x16xbf16>, vector<16x32xbf16>, vector<16x32xf32> -> vector<16x32xf32>
    %161 = arith.addf %159, %160 : vector<16x32xf32>
    %cst_77 = arith.constant dense<0.000000e+00> : vector<16x32xf32>
    %162 = tpu.matmul %158, %8, %cst_77 {dimension_numbers = #tpu.dot_dimension_numbers<[1], [0], [0], [1], [0, 0, 1, 1], [], []>} : vector<16x16xbf16>, vector<16x32xbf16>, vector<16x32xf32> -> vector<16x32xf32>
    %163 = arith.addf %161, %162 : vector<16x32xf32>
    %164 = vector.broadcast %1 : vector<1x32xf32> to vector<16x32xf32>
    %165 = arith.addf %163, %164 : vector<16x32xf32>
    %cst_78 = arith.constant 5.000000e-01 : f32
    %166 = vector.broadcast %cst_78 : f32 to vector<16x32xf32>
    %167 = arith.mulf %166, %165 : vector<16x32xf32>
    %cst_79 = arith.constant 0.707106769 : f32
    %168 = vector.broadcast %cst_79 : f32 to vector<16x32xf32>
    %169 = arith.mulf %165, %168 : vector<16x32xf32>
    %170 = math.absf %169 : vector<16x32xf32>
    %cst_80 = arith.constant 0.327591091 : f32
    %171 = vector.broadcast %cst_80 : f32 to vector<16x32xf32>
    %172 = arith.mulf %171, %170 : vector<16x32xf32>
    %cst_81 = arith.constant 1.000000e+00 : f32
    %173 = vector.broadcast %cst_81 : f32 to vector<16x32xf32>
    %174 = arith.addf %173, %172 : vector<16x32xf32>
    %cst_82 = arith.constant 1.000000e+00 : f32
    %175 = vector.broadcast %cst_82 : f32 to vector<16x32xf32>
    %176 = arith.divf %175, %174 : vector<16x32xf32>
    %cst_83 = arith.constant 1.06140542 : f32
    %177 = vector.broadcast %cst_83 : f32 to vector<16x32xf32>
    %178 = arith.mulf %176, %177 : vector<16x32xf32>
    %cst_84 = arith.constant -1.45315206 : f32
    %179 = vector.broadcast %cst_84 : f32 to vector<16x32xf32>
    %180 = arith.addf %179, %178 : vector<16x32xf32>
    %181 = arith.mulf %176, %180 : vector<16x32xf32>
    %cst_85 = arith.constant 1.42141378 : f32
    %182 = vector.broadcast %cst_85 : f32 to vector<16x32xf32>
    %183 = arith.addf %182, %181 : vector<16x32xf32>
    %184 = arith.mulf %176, %183 : vector<16x32xf32>
    %cst_86 = arith.constant -0.284496725 : f32
    %185 = vector.broadcast %cst_86 : f32 to vector<16x32xf32>
    %186 = arith.addf %185, %184 : vector<16x32xf32>
    %187 = arith.mulf %176, %186 : vector<16x32xf32>
    %cst_87 = arith.constant 0.254829586 : f32
    %188 = vector.broadcast %cst_87 : f32 to vector<16x32xf32>
    %189 = arith.addf %188, %187 : vector<16x32xf32>
    %190 = arith.mulf %176, %189 : vector<16x32xf32>
    %cst_88 = arith.constant 0.000000e+00 : f32
    %191 = vector.broadcast %cst_88 : f32 to vector<16x32xf32>
    %192 = arith.subf %191, %170 : vector<16x32xf32>
    %193 = arith.mulf %192, %170 : vector<16x32xf32>
    %194 = math.exp %193 : vector<16x32xf32>
    %195 = arith.mulf %190, %194 : vector<16x32xf32>
    %cst_89 = arith.constant 1.000000e+00 : f32
    %196 = vector.broadcast %cst_89 : f32 to vector<16x32xf32>
    %197 = arith.subf %196, %195 : vector<16x32xf32>
    %cst_90 = arith.constant 0.000000e+00 : f32
    %198 = vector.broadcast %cst_90 : f32 to vector<16x32xf32>
    %199 = arith.cmpf oge, %169, %198 : vector<16x32xf32>
    %cst_91 = arith.constant 0.000000e+00 : f32
    %200 = vector.broadcast %cst_91 : f32 to vector<16x32xf32>
    %201 = arith.subf %200, %197 : vector<16x32xf32>
    %202 = arith.select %199, %197, %201 : vector<16x32xi1>, vector<16x32xf32>
    %cst_92 = arith.constant 1.000000e+00 : f32
    %203 = vector.broadcast %cst_92 : f32 to vector<16x32xf32>
    %204 = arith.addf %203, %202 : vector<16x32xf32>
    %205 = arith.mulf %167, %204 : vector<16x32xf32>
    %206 = arith.truncf %205 : vector<16x32xf32> to vector<16x32xbf16>
    %cst_93 = arith.constant dense<0.000000e+00> : vector<8x32xf32>
    %207 = tpu.matmul %25, %206, %cst_93 {dimension_numbers = #tpu.dot_dimension_numbers<[1], [0], [0], [1], [0, 0, 1, 1], [], []>} : vector<8x16xbf16>, vector<16x32xbf16>, vector<8x32xf32> -> vector<8x32xf32>
    %208 = arith.truncf %207 : vector<8x32xf32> to vector<8x32xbf16>
    %cst_94 = arith.constant dense<0.000000e+00> : vector<8x32xf32>
    %209 = tpu.matmul %32, %206, %cst_94 {dimension_numbers = #tpu.dot_dimension_numbers<[1], [0], [0], [1], [0, 0, 1, 1], [], []>} : vector<8x16xbf16>, vector<16x32xbf16>, vector<8x32xf32> -> vector<8x32xf32>
    %210 = arith.truncf %209 : vector<8x32xf32> to vector<8x32xbf16>
    %cst_95 = arith.constant dense<0.000000e+00> : vector<8x32xf32>
    %211 = tpu.matmul %41, %206, %cst_95 {dimension_numbers = #tpu.dot_dimension_numbers<[1], [0], [0], [1], [0, 0, 1, 1], [], []>} : vector<8x16xbf16>, vector<16x32xbf16>, vector<8x32xf32> -> vector<8x32xf32>
    %212 = arith.truncf %211 : vector<8x32xf32> to vector<8x32xbf16>
    %cst_96 = arith.constant dense<0.000000e+00> : vector<8x32xf32>
    %213 = tpu.matmul %208, %10, %cst_96 {dimension_numbers = #tpu.dot_dimension_numbers<[1], [0], [0], [1], [0, 0, 1, 1], [], []>} : vector<8x32xbf16>, vector<32x32xbf16>, vector<8x32xf32> -> vector<8x32xf32>
    %cst_97 = arith.constant dense<0.000000e+00> : vector<8x32xf32>
    %214 = tpu.matmul %210, %12, %cst_97 {dimension_numbers = #tpu.dot_dimension_numbers<[1], [0], [0], [1], [0, 0, 1, 1], [], []>} : vector<8x32xbf16>, vector<32x32xbf16>, vector<8x32xf32> -> vector<8x32xf32>
    %215 = arith.addf %213, %214 : vector<8x32xf32>
    %cst_98 = arith.constant dense<0.000000e+00> : vector<8x32xf32>
    %216 = tpu.matmul %212, %14, %cst_98 {dimension_numbers = #tpu.dot_dimension_numbers<[1], [0], [0], [1], [0, 0, 1, 1], [], []>} : vector<8x32xbf16>, vector<32x32xbf16>, vector<8x32xf32> -> vector<8x32xf32>
    %217 = arith.addf %215, %216 : vector<8x32xf32>
    %218 = vector.broadcast %2 : vector<1x32xf32> to vector<8x32xf32>
    %219 = arith.addf %217, %218 : vector<8x32xf32>
    %cst_99 = arith.constant 5.000000e-01 : f32
    %220 = vector.broadcast %cst_99 : f32 to vector<8x32xf32>
    %221 = arith.mulf %220, %219 : vector<8x32xf32>
    %cst_100 = arith.constant 0.707106769 : f32
    %222 = vector.broadcast %cst_100 : f32 to vector<8x32xf32>
    %223 = arith.mulf %219, %222 : vector<8x32xf32>
    %224 = math.absf %223 : vector<8x32xf32>
    %cst_101 = arith.constant 0.327591091 : f32
    %225 = vector.broadcast %cst_101 : f32 to vector<8x32xf32>
    %226 = arith.mulf %225, %224 : vector<8x32xf32>
    %cst_102 = arith.constant 1.000000e+00 : f32
    %227 = vector.broadcast %cst_102 : f32 to vector<8x32xf32>
    %228 = arith.addf %227, %226 : vector<8x32xf32>
    %cst_103 = arith.constant 1.000000e+00 : f32
    %229 = vector.broadcast %cst_103 : f32 to vector<8x32xf32>
    %230 = arith.divf %229, %228 : vector<8x32xf32>
    %cst_104 = arith.constant 1.06140542 : f32
    %231 = vector.broadcast %cst_104 : f32 to vector<8x32xf32>
    %232 = arith.mulf %230, %231 : vector<8x32xf32>
    %cst_105 = arith.constant -1.45315206 : f32
    %233 = vector.broadcast %cst_105 : f32 to vector<8x32xf32>
    %234 = arith.addf %233, %232 : vector<8x32xf32>
    %235 = arith.mulf %230, %234 : vector<8x32xf32>
    %cst_106 = arith.constant 1.42141378 : f32
    %236 = vector.broadcast %cst_106 : f32 to vector<8x32xf32>
    %237 = arith.addf %236, %235 : vector<8x32xf32>
    %238 = arith.mulf %230, %237 : vector<8x32xf32>
    %cst_107 = arith.constant -0.284496725 : f32
    %239 = vector.broadcast %cst_107 : f32 to vector<8x32xf32>
    %240 = arith.addf %239, %238 : vector<8x32xf32>
    %241 = arith.mulf %230, %240 : vector<8x32xf32>
    %cst_108 = arith.constant 0.254829586 : f32
    %242 = vector.broadcast %cst_108 : f32 to vector<8x32xf32>
    %243 = arith.addf %242, %241 : vector<8x32xf32>
    %244 = arith.mulf %230, %243 : vector<8x32xf32>
    %cst_109 = arith.constant 0.000000e+00 : f32
    %245 = vector.broadcast %cst_109 : f32 to vector<8x32xf32>
    %246 = arith.subf %245, %224 : vector<8x32xf32>
    %247 = arith.mulf %246, %224 : vector<8x32xf32>
    %248 = math.exp %247 : vector<8x32xf32>
    %249 = arith.mulf %244, %248 : vector<8x32xf32>
    %cst_110 = arith.constant 1.000000e+00 : f32
    %250 = vector.broadcast %cst_110 : f32 to vector<8x32xf32>
    %251 = arith.subf %250, %249 : vector<8x32xf32>
    %cst_111 = arith.constant 0.000000e+00 : f32
    %252 = vector.broadcast %cst_111 : f32 to vector<8x32xf32>
    %253 = arith.cmpf oge, %223, %252 : vector<8x32xf32>
    %cst_112 = arith.constant 0.000000e+00 : f32
    %254 = vector.broadcast %cst_112 : f32 to vector<8x32xf32>
    %255 = arith.subf %254, %251 : vector<8x32xf32>
    %256 = arith.select %253, %251, %255 : vector<8x32xi1>, vector<8x32xf32>
    %cst_113 = arith.constant 1.000000e+00 : f32
    %257 = vector.broadcast %cst_113 : f32 to vector<8x32xf32>
    %258 = arith.addf %257, %256 : vector<8x32xf32>
    %259 = arith.mulf %221, %258 : vector<8x32xf32>
    %260 = arith.addf %259, %0 : vector<8x32xf32>
    %c8 = arith.constant 8 : index
    %c0_114 = arith.constant 0 : index
    %261 = vector.load %arg6[%c8, %c0_114] : memref<16x32xf32, #tpu.memory_space<vmem>>, vector<8x32xf32>
    tpu.vector_store %arg6[%c8, %c0_114], %260 {strides = array<i32>} : memref<16x32xf32, #tpu.memory_space<vmem>>, vector<8x32xf32>,
    return
  }
}

module attributes {stable_mosaic.version = 11 : i64} {
  func.func @_logmel_kernel(%arg0: memref<32x64xf32, #tpu.memory_space<vmem>>, %arg1: memref<64x66xf32, #tpu.memory_space<vmem>>, %arg2: memref<66x16xf32, #tpu.memory_space<vmem>>, %arg3: memref<32x16xf32, #tpu.memory_space<vmem>>) attributes {dimension_semantics = [], scalar_prefetch = 0 : i64, scratch_operands = 0 : i64, tpu.core_type = #tpu.core_type<tc>} {
    %c0 = arith.constant 0 : index
    %c0_0 = arith.constant 0 : index
    %0 = vector.load %arg0[%c0, %c0_0] : memref<32x64xf32, #tpu.memory_space<vmem>>, vector<32x64xf32>
    %c0_1 = arith.constant 0 : index
    %c0_2 = arith.constant 0 : index
    %1 = vector.load %arg1[%c0_1, %c0_2] : memref<64x66xf32, #tpu.memory_space<vmem>>, vector<64x66xf32>
    %cst = arith.constant dense<0.000000e+00> : vector<32x66xf32>
    %2 = tpu.matmul %0, %1, %cst {dimension_numbers = #tpu.dot_dimension_numbers<[1], [0], [0], [1], [0, 0, 1, 1], [], []>} : vector<32x64xf32>, vector<64x66xf32>, vector<32x66xf32> -> vector<32x66xf32>
    %3 = arith.mulf %2, %2 : vector<32x66xf32>
    %c0_3 = arith.constant 0 : index
    %c0_4 = arith.constant 0 : index
    %4 = vector.load %arg2[%c0_3, %c0_4] : memref<66x16xf32, #tpu.memory_space<vmem>>, vector<66x16xf32>
    %cst_5 = arith.constant dense<0.000000e+00> : vector<32x16xf32>
    %5 = tpu.matmul %3, %4, %cst_5 {dimension_numbers = #tpu.dot_dimension_numbers<[1], [0], [0], [1], [0, 0, 1, 1], [], []>} : vector<32x66xf32>, vector<66x16xf32>, vector<32x16xf32> -> vector<32x16xf32>
    %cst_6 = arith.constant 1.000000e-10 : f32
    %6 = vector.broadcast %cst_6 : f32 to vector<32x16xf32>
    %7 = arith.maximumf %5, %6 : vector<32x16xf32>
    %8 = math.log %7 : vector<32x16xf32>
    %cst_7 = arith.constant 0.434294492 : f32
    %9 = vector.broadcast %cst_7 : f32 to vector<32x16xf32>
    %10 = arith.mulf %8, %9 : vector<32x16xf32>
    %11 = vector.shape_cast %10 : vector<32x16xf32> to vector<1x32x16xf32>
    %cst_8 = arith.constant dense<0xFF800000> : vector<1xf32>
    %12 = vector.multi_reduction <maximumf>, %11, %cst_8 [1, 2] : vector<1x32x16xf32> to vector<1xf32>
    %13 = vector.shape_cast %12 : vector<1xf32> to vector<1x1x1xf32>
    %14 = vector.extract %13[0, 0, 0] : f32 from vector<1x1x1xf32>
    %cst_9 = arith.constant 8.000000e+00 : f32
    %15 = arith.subf %14, %cst_9 : f32
    %16 = vector.broadcast %15 : f32 to vector<32x16xf32>
    %17 = arith.maximumf %10, %16 : vector<32x16xf32>
    %cst_10 = arith.constant 4.000000e+00 : f32
    %18 = vector.broadcast %cst_10 : f32 to vector<32x16xf32>
    %19 = arith.addf %17, %18 : vector<32x16xf32>
    %cst_11 = arith.constant 4.000000e+00 : f32
    %20 = vector.broadcast %cst_11 : f32 to vector<32x16xf32>
    %21 = arith.divf %19, %20 : vector<32x16xf32>
    %c0_12 = arith.constant 0 : index
    %c0_13 = arith.constant 0 : index
    %22 = vector.load %arg3[%c0_12, %c0_13] : memref<32x16xf32, #tpu.memory_space<vmem>>, vector<32x16xf32>
    tpu.vector_store %arg3[%c0_12, %c0_13], %21 {strides = array<i32>} : memref<32x16xf32, #tpu.memory_space<vmem>>, vector<32x16xf32>,
    return
  }
}

module attributes {stable_mosaic.version = 11 : i64} {
  func.func @_layernorm_kernel(%arg0: memref<16x32xf32, #tpu.memory_space<vmem>>, %arg1: memref<1x32xf32, #tpu.memory_space<vmem>>, %arg2: memref<1x32xf32, #tpu.memory_space<vmem>>, %arg3: memref<16x32xf32, #tpu.memory_space<vmem>>) attributes {dimension_semantics = [], scalar_prefetch = 0 : i64, scratch_operands = 0 : i64, tpu.core_type = #tpu.core_type<tc>} {
    %c0 = arith.constant 0 : index
    %c0_0 = arith.constant 0 : index
    %0 = vector.load %arg0[%c0, %c0_0] : memref<16x32xf32, #tpu.memory_space<vmem>>, vector<16x32xf32>
    %c0_1 = arith.constant 0 : index
    %c0_2 = arith.constant 0 : index
    %1 = vector.load %arg1[%c0_1, %c0_2] : memref<1x32xf32, #tpu.memory_space<vmem>>, vector<1x32xf32>
    %c0_3 = arith.constant 0 : index
    %c0_4 = arith.constant 0 : index
    %2 = vector.load %arg2[%c0_3, %c0_4] : memref<1x32xf32, #tpu.memory_space<vmem>>, vector<1x32xf32>
    %cst = arith.constant dense<0.000000e+00> : vector<16xf32>
    %3 = vector.multi_reduction <add>, %0, %cst [1] : vector<16x32xf32> to vector<16xf32>
    %4 = vector.shape_cast %3 : vector<16xf32> to vector<16x1xf32>
    %cst_5 = arith.constant 3.200000e+01 : f32
    %5 = vector.broadcast %cst_5 : f32 to vector<16x1xf32>
    %6 = arith.divf %4, %5 : vector<16x1xf32>
    %7 = vector.broadcast %6 : vector<16x1xf32> to vector<16x32xf32>
    %8 = arith.subf %0, %7 : vector<16x32xf32>
    %9 = arith.mulf %8, %8 : vector<16x32xf32>
    %cst_6 = arith.constant dense<0.000000e+00> : vector<16xf32>
    %10 = vector.multi_reduction <add>, %9, %cst_6 [1] : vector<16x32xf32> to vector<16xf32>
    %11 = vector.shape_cast %10 : vector<16xf32> to vector<16x1xf32>
    %cst_7 = arith.constant 3.200000e+01 : f32
    %12 = vector.broadcast %cst_7 : f32 to vector<16x1xf32>
    %13 = arith.divf %11, %12 : vector<16x1xf32>
    %14 = vector.broadcast %6 : vector<16x1xf32> to vector<16x32xf32>
    %15 = arith.subf %0, %14 : vector<16x32xf32>
    %cst_8 = arith.constant 9.99999974E-6 : f32
    %16 = vector.broadcast %cst_8 : f32 to vector<16x1xf32>
    %17 = arith.addf %13, %16 : vector<16x1xf32>
    %18 = math.rsqrt %17 : vector<16x1xf32>
    %19 = vector.broadcast %18 : vector<16x1xf32> to vector<16x32xf32>
    %20 = arith.mulf %15, %19 : vector<16x32xf32>
    %21 = vector.broadcast %1 : vector<1x32xf32> to vector<16x32xf32>
    %22 = arith.mulf %20, %21 : vector<16x32xf32>
    %23 = vector.broadcast %2 : vector<1x32xf32> to vector<16x32xf32>
    %24 = arith.addf %22, %23 : vector<16x32xf32>
    %c0_9 = arith.constant 0 : index
    %c0_10 = arith.constant 0 : index
    %25 = vector.load %arg3[%c0_9, %c0_10] : memref<16x32xf32, #tpu.memory_space<vmem>>, vector<16x32xf32>
    tpu.vector_store %arg3[%c0_9, %c0_10], %24 {strides = array<i32>} : memref<16x32xf32, #tpu.memory_space<vmem>>, vector<16x32xf32>,
    return
  }
}

</mosaic_0001>

<llo_original>
// kernel: whisper_audio_encoder.9
$region0: #{whisper_audio_encoder.9}
  #allocation0 [shape = 'u32[]', space=smem, size = 0x4, offset = 0x4, fixed_abs, tag = 'smem constant byte address 0x4 - core index']
  #allocation1 [shape = 'u32[144,128]{1,0:T(1,128)}', space=vmem, size = 0x12000, scoped, tag = 'internal scratch']
  %s0 = inlined_call_operand.vmem [shape: f32[16,32], index: 0, kind: input, shape index: {}]
  %s1 = inlined_call_operand.vmem [shape: f32[1,32], index: 1, kind: input, shape index: {}]
  %s2 = inlined_call_operand.vmem [shape: f32[1,32], index: 2, kind: input, shape index: {}]
  %s3 = inlined_call_operand.hbm [shape: f32[16,32], index: 3, kind: output, shape index: {}]
  %s4 = sld [smem:[#allocation0]]
  $region22: #{whisper_audio_encoder.9} parent=0
    _
  %s6 = ssub.s32 1, %s4
  %s7 = scalar_select 0, %s6, %s4
  $region1: #{whisper_audio_encoder.9} parent=0
    #allocation2 [shape = 'u8[8192]{0}', space=vmem, size = 0x2000, scoped, tag = 'output window, operand 0, single buffered']
    #allocation3 [shape = 's32[1]{0}', space=sflag, size = 0x4, scoped, tag = 'scoped memory for whisper_audio_encoder.9']
    %8 = vsyncpa [#allocation3], 0
    // Predicated region
    $region2: #{whisper_audio_encoder.9} parent=1 // pred_check
      _
    $region3: #{whisper_audio_encoder.9} parent=1 // pred_check_branch
      %10 = sbr.rel (0) target = $region5
    $region4: #{whisper_audio_encoder.9} parent=1 // pred_region
      _
    $region5: #{whisper_audio_encoder.9} parent=1 // pred_fallthru
      _
    // Predicated region
    $region6: #{whisper_audio_encoder.9} parent=1 // pred_check
      _
    $region7: #{whisper_audio_encoder.9} parent=1 // pred_check_branch
      %12 = sbr.rel (0) target = $region9
    $region8: #{whisper_audio_encoder.9} parent=1 // pred_region
      _
    $region9: #{whisper_audio_encoder.9} parent=1 // pred_fallthru
      _
    // Predicated region
    $region10: #{whisper_audio_encoder.9} parent=1 // pred_check
      _
    $region11: #{whisper_audio_encoder.9} parent=1 // pred_check_branch
      %14 = sbr.rel (0) target = $region13
    $region12: #{whisper_audio_encoder.9} parent=1 // pred_region
      _
    $region13: #{whisper_audio_encoder.9} parent=1 // pred_fallthru
      _
    %v15 = vld [vmem:[%s0] sm:$0xff]
    %v16 = vld [vmem:[%s0 + $0x8] sm:$0xff]
    %v17 = vld [vmem:[%s1] sm:$0x1]
    %v18 = vld [vmem:[%s2] sm:$0x1]
    %vm19 = vcmask 261120
    %v20 = vsel %vm19, %v15, 0.0
    %21 = vadd.xlane.f32.xlu0 %v20
    %v22 = vpop.xlane.xlu0 %21
    %v23 = vsel %vm19, %v16, 0.0
    %24 = vadd.xlane.f32.xlu0 %v23
    %v25 = vpop.xlane.xlu0 %24
    %v26 = vrcp.pop 32.0
    %v27 = vmul.f32 %v22, %v26
    %v28 = vmul.f32 %v25, %v26
    %v29 = vsub.f32 %v15, %v27
    %v30 = vsub.f32 %v16, %v28
    %v31 = vmul.f32 %v29, %v29
    %v32 = vmul.f32 %v30, %v30
    %v33 = vsel %vm19, %v31, 0.0
    %34 = vadd.xlane.f32.xlu0 %v33
    %v35 = vpop.xlane.xlu0 %34
    %v36 = vsel %vm19, %v32, 0.0
    %37 = vadd.xlane.f32.xlu0 %v36
    %v38 = vpop.xlane.xlu0 %37
    %v39 = vmul.f32 %v35, %v26
    %v40 = vmul.f32 %v38, %v26
    %v41 = vadd.f32 %v39, 1e-05
    %v42 = vadd.f32 %v40, 1e-05
    %v43 = vrsqrt.pop %v41
    %v44 = vrsqrt.pop %v42
    %v45 = vmul.f32 %v29, %v43
    %v46 = vmul.f32 %v30, %v44
    %v48 = vlaneseq
    %v49 = vshrl.u32 %v48, 7
    %v50 = vsub.s32 0, %v49
    %v51 = vrot.slane %v17, %v50
    %v53 = vmul.f32 %v45, %v51
    %v54 = vmul.f32 %v46, %v51
    %v56 = vlaneseq
    %v57 = vshrl.u32 %v56, 7
    %v58 = vsub.s32 0, %v57
    %v59 = vrot.slane %v18, %v58
    %v61 = vadd.f32 %v53, %v59
    %v62 = vadd.f32 %v54, %v59
    %63 = vst.msk [vmem:[#allocation2] sm:$0xff] %vm19, %v61
    %64 = vst.msk [vmem:[#allocation2 + $0x8] sm:$0xff] %vm19, %v62
    // Predicated region
    $region14: #{whisper_audio_encoder.9} parent=1 // pred_check
      _
    $region15: #{whisper_audio_encoder.9} parent=1 // pred_check_branch
      %66 = sbr.rel (0) target = $region17
    $region16: #{whisper_audio_encoder.9} parent=1 // pred_region
      %s68 = ssub.s32 256, 256
      %69 = vsyncadd [#allocation3], %s68
      %s70 = sshll.u32 [#allocation2], 4
      %s71 = int_to_ptr.vmem [resolvable:$true] %s70
      %76 = dma.vmem_to_hbm [thread:$0]  %s71, 256, %s3, [#allocation3], 128, 128, 8
    $region17: #{whisper_audio_encoder.9} parent=1 // pred_fallthru
      _
    // Predicated region
    $region18: #{whisper_audio_encoder.9} parent=1 // pred_check
      _
    $region19: #{whisper_audio_encoder.9} parent=1 // pred_check_branch
      %78 = sbr.rel (0) target = $region21
    $region20: #{whisper_audio_encoder.9} parent=1 // pred_region
      %79 = dma.done [#allocation3], 256
    $region21: #{whisper_audio_encoder.9} parent=1 // pred_fallthru
      _
    %80 = vsyncpa [#allocation3], 1

// kernel: whisper_audio_encoder.5
$region0: #{whisper_audio_encoder.5}
  #allocation0 [shape = 'u32[]', space=smem, size = 0x4, offset = 0x4, fixed_abs, tag = 'smem constant byte address 0x4 - core index']
  #allocation1 [shape = 'u32[144,128]{1,0:T(1,128)}', space=vmem, size = 0x12000, scoped, tag = 'internal scratch']
  %s0 = inlined_call_operand.vmem [shape: f32[32,64], index: 0, kind: input, shape index: {}]
  %s1 = inlined_call_operand.vmem [shape: f32[64,66], index: 1, kind: input, shape index: {}]
  %s2 = inlined_call_operand.vmem [shape: f32[66,16], index: 2, kind: input, shape index: {}]
  %s3 = inlined_call_operand.vmem [shape: f32[32,16], index: 3, kind: output, shape index: {}]
  %s4 = sld [smem:[#allocation0]]
  $region22: #{whisper_audio_encoder.5} parent=0
    _
  %s6 = ssub.s32 1, %s4
  %s7 = scalar_select 0, %s6, %s4
  // Predicated region
  $region2: #{whisper_audio_encoder.5} parent=0 // pred_check
    _
  $region3: #{whisper_audio_encoder.5} parent=0 // pred_check_branch
    %9 = sbr.rel (0) target = $region5
  $region4: #{whisper_audio_encoder.5} parent=0 // pred_region
    _
  $region5: #{whisper_audio_encoder.5} parent=0 // pred_fallthru
    _
  // Predicated region
  $region6: #{whisper_audio_encoder.5} parent=0 // pred_check
    _
  $region7: #{whisper_audio_encoder.5} parent=0 // pred_check_branch
    %11 = sbr.rel (0) target = $region9
  $region8: #{whisper_audio_encoder.5} parent=0 // pred_region
    _
  $region9: #{whisper_audio_encoder.5} parent=0 // pred_fallthru
    _
  // Predicated region
  $region10: #{whisper_audio_encoder.5} parent=0 // pred_check
    _
  $region11: #{whisper_audio_encoder.5} parent=0 // pred_check_branch
    %13 = sbr.rel (0) target = $region13
  $region12: #{whisper_audio_encoder.5} parent=0 // pred_region
    _
  $region13: #{whisper_audio_encoder.5} parent=0 // pred_fallthru
    _
  %v14 = vld [vmem:[%s0] sm:$0xff]
  %v15 = vld [vmem:[%s0 + $0x8] sm:$0xff]
  %v16 = vld [vmem:[%s0 + $0x10] sm:$0xff]
  %v17 = vld [vmem:[%s0 + $0x18] sm:$0xff]
  %v18 = vld [vmem:[%s1] sm:$0xff]
  %v19 = vld [vmem:[%s1 + $0x8] sm:$0xff]
  %v20 = vld [vmem:[%s1 + $0x10] sm:$0xff]
  %v21 = vld [vmem:[%s1 + $0x18] sm:$0xff]
  %v22 = vld [vmem:[%s1 + $0x20] sm:$0xff]
  %v23 = vld [vmem:[%s1 + $0x28] sm:$0xff]
  %v24 = vld [vmem:[%s1 + $0x30] sm:$0xff]
  %v25 = vld [vmem:[%s1 + $0x38] sm:$0xff]
  %vm26 = vcmask 523264
  %v28 = vsel %vm26, %v14, 0
  %v31 = vsel %vm26, %v15, 0
  %v34 = vsel %vm26, %v16, 0
  %v37 = vsel %vm26, %v17, 0
  %39 = vmatprep.subr.mxu0 0.0
  %40 = vmatpush1.msra.mxu0 %v18
  %41 = vmatprep.subr.mxu0 0.0
  %42 = vmatpush1.msra.mxu0 %v19
  %43 = vmatprep.subr.mxu0 0.0
  %44 = vmatpush1.msra.mxu0 %v20
  %45 = vmatprep.subr.mxu0 0.0
  %46 = vmatpush1.msra.mxu0 %v21
  %47 = vmatprep.subr.mxu0 0.0
  %48 = vmatpush1.msra.mxu0 %v22
  %49 = vmatprep.subr.mxu0 0.0
  %50 = vmatpush1.msra.mxu0 %v23
  %51 = vmatprep.subr.mxu0 0.0
  %52 = vmatpush1.msra.mxu0 %v24
  %53 = vmatprep.subr.mxu0 0.0
  %54 = vmatpush1.msra.mxu0 %v25
  %55 = vmatprep.subr.mxu0 0.0
  %56 = vmatpush1.msra.mxu0 0.0
  %57 = vmatprep.subr.mxu0 0.0
  %58 = vmatpush1.msra.mxu0 0.0
  %59 = vmatprep.subr.mxu0 0.0
  %60 = vmatpush1.msra.mxu0 0.0
  %61 = vmatprep.subr.mxu0 0.0
  %62 = vmatpush1.msra.mxu0 0.0
  %63 = vmatprep.subr.mxu0 0.0
  %64 = vmatpush1.msra.mxu0 0.0
  %65 = vmatprep.subr.mxu0 0.0
  %66 = vmatpush1.msra.mxu0 0.0
  %67 = vmatprep.subr.mxu0 0.0
  %68 = vmatpush1.msra.mxu0 0.0
  %69 = vmatprep.subr.mxu0 0.0
  %70 = vmatpush1.msra.mxu0 0.0
  %71 = vmatprep.subr.mxu0 0.0
  %72 = vmatpush1.msra.mxu0 0.0
  %73 = vmatprep.subr.mxu0 0.0
  %74 = vmatpush1.msra.mxu0 0.0
  %75 = vmatprep.subr.mxu0 0.0
  %76 = vmatpush1.msra.mxu0 0.0
  %77 = vmatprep.subr.mxu0 0.0
  %78 = vmatpush1.msra.mxu0 0.0
  %79 = vmatprep.subr.mxu0 0.0
  %80 = vmatpush1.msra.mxu0 0.0
  %81 = vmatprep.subr.mxu0 0.0
  %82 = vmatpush1.msra.mxu0 0.0
  %83 = vmatprep.subr.mxu0 0.0
  %84 = vmatpush1.msra.mxu0 0.0
  %85 = vmatprep.subr.mxu0 0.0
  %86 = vmatpush1.msra.mxu0 0.0
  %87 = vmatprep.subr.mxu0 0.0
  %88 = vmatpush1.msra.mxu0 0.0
  %89 = vmatprep.subr.mxu0 0.0
  %90 = vmatpush1.msra.mxu0 0.0
  %91 = vmatprep.subr.mxu0 0.0
  %92 = vmatpush1.msra.mxu0 0.0
  %93 = vmatprep.subr.mxu0 0.0
  %94 = vmatpush1.msra.mxu0 0.0
  %95 = vmatprep.subr.mxu0 0.0
  %96 = vmatpush1.msra.mxu0 0.0
  %97 = vmatprep.subr.mxu0 0.0
  %98 = vmatpush1.msra.mxu0 0.0
  %99 = vmatprep.subr.mxu0 0.0
  %100 = vmatpush1.msra.mxu0 0.0
  %101 = vmatprep.subr.mxu0 0.0
  %102 = vmatpush1.msra.mxu0 0.0
  %103 = vmatprep.mubr.f32.mxu0 0.0
  %104 = vmatmul.mubr.f32.gmra.mrb[0].mxu0 %v28
  %v105 = vpop.f32.mrb[0].mxu0
  %v106 = vadd.f32 0.0, %v105
  %v107 = vpop.f32.mrb[0].mxu0
  %108 = vmatprep.mubr.f32.mxu0 0.0
  %109 = vmatmul.mubr.f32.gmra.mrb[0].mxu0 %v31
  %v110 = vpop.f32.mrb[0].mxu0
  %v111 = vadd.f32 0.0, %v110
  %v112 = vpop.f32.mrb[0].mxu0
  %113 = vmatprep.mubr.f32.mxu0 0.0
  %114 = vmatmul.mubr.f32.gmra.mrb[0].mxu0 %v34
  %v115 = vpop.f32.mrb[0].mxu0
  %v116 = vadd.f32 0.0, %v115
  %v117 = vpop.f32.mrb[0].mxu0
  %118 = vmatprep.mubr.f32.mxu0 0.0
  %119 = vmatmul.mubr.f32.gmra.mrb[0].mxu0 %v37
  %v120 = vpop.f32.mrb[0].mxu0
  %v121 = vadd.f32 0.0, %v120
  %v122 = vpop.f32.mrb[0].mxu0
  %123 = vdwg.mxu0
  %v124 = vmul.f32 %v106, %v106
  %v125 = vmul.f32 %v111, %v111
  %v126 = vmul.f32 %v116, %v116
  %v127 = vmul.f32 %v121, %v121
  %v128 = vld [vmem:[%s2] sm:$0xff]
  %v129 = vld [vmem:[%s2 + $0x8] sm:$0xff]
  %v130 = vld [vmem:[%s2 + $0x10] sm:$0xff]
  %v131 = vld [vmem:[%s2 + $0x18] sm:$0xff]
  %v132 = vld [vmem:[%s2 + $0x20] sm:$0xff]
  %v133 = vld [vmem:[%s2 + $0x28] sm:$0xff]
  %v134 = vld [vmem:[%s2 + $0x30] sm:$0xff]
  %v135 = vld [vmem:[%s2 + $0x38] sm:$0xff]
  %v136 = vld [vmem:[%s2 + $0x40] sm:$0x3]
  %vm137 = vcmask 539648
  %v139 = vsel %vm137, %v124, 0
  %v142 = vsel %vm137, %v125, 0
  %v145 = vsel %vm137, %v126, 0
  %v148 = vsel %vm137, %v127, 0
  %vm150 = vcmask 1041408
  %v152 = vsel %vm150, %v136, 0
  %154 = vmatprep.subr.mxu0 0.0
  %155 = vmatpush1.msra.mxu0 %v128
  %156 = vmatprep.subr.mxu0 0.0
  %157 = vmatpush1.msra.mxu0 %v129
  %158 = vmatprep.subr.mxu0 0.0
  %159 = vmatpush1.msra.mxu0 %v130
  %160 = vmatprep.subr.mxu0 0.0
  %161 = vmatpush1.msra.mxu0 %v131
  %162 = vmatprep.subr.mxu0 0.0
  %163 = vmatpush1.msra.mxu0 %v132
  %164 = vmatprep.subr.mxu0 0.0
  %165 = vmatpush1.msra.mxu0 %v133
  %166 = vmatprep.subr.mxu0 0.0
  %167 = vmatpush1.msra.mxu0 %v134
  %168 = vmatprep.subr.mxu0 0.0
  %169 = vmatpush1.msra.mxu0 %v135
  %170 = vmatprep.subr.mxu0 0.0
  %171 = vmatpush1.msra.mxu0 %v152
  %172 = vmatprep.subr.mxu0 0.0
  %173 = vmatpush1.msra.mxu0 0.0
  %174 = vmatprep.subr.mxu0 0.0
  %175 = vmatpush1.msra.mxu0 0.0
  %176 = vmatprep.subr.mxu0 0.0
  %177 = vmatpush1.msra.mxu0 0.0
  %178 = vmatprep.subr.mxu0 0.0
  %179 = vmatpush1.msra.mxu0 0.0
  %180 = vmatprep.subr.mxu0 0.0
  %181 = vmatpush1.msra.mxu0 0.0
  %182 = vmatprep.subr.mxu0 0.0
  %183 = vmatpush1.msra.mxu0 0.0
  %184 = vmatprep.subr.mxu0 0.0
  %185 = vmatpush1.msra.mxu0 0.0
  %186 = vmatprep.subr.mxu0 0.0
  %187 = vmatpush1.msra.mxu0 0.0
  %188 = vmatprep.subr.mxu0 0.0
  %189 = vmatpush1.msra.mxu0 0.0
  %190 = vmatprep.subr.mxu0 0.0
  %191 = vmatpush1.msra.mxu0 0.0
  %192 = vmatprep.subr.mxu0 0.0
  %193 = vmatpush1.msra.mxu0 0.0
  %194 = vmatprep.subr.mxu0 0.0
  %195 = vmatpush1.msra.mxu0 0.0
  %196 = vmatprep.subr.mxu0 0.0
  %197 = vmatpush1.msra.mxu0 0.0
  %198 = vmatprep.subr.mxu0 0.0
  %199 = vmatpush1.msra.mxu0 0.0
  %200 = vmatprep.subr.mxu0 0.0
  %201 = vmatpush1.msra.mxu0 0.0
  %202 = vmatprep.subr.mxu0 0.0
  %203 = vmatpush1.msra.mxu0 0.0
  %204 = vmatprep.subr.mxu0 0.0
  %205 = vmatpush1.msra.mxu0 0.0
  %206 = vmatprep.subr.mxu0 0.0
  %207 = vmatpush1.msra.mxu0 0.0
  %208 = vmatprep.subr.mxu0 0.0
  %209 = vmatpush1.msra.mxu0 0.0
  %210 = vmatprep.subr.mxu0 0.0
  %211 = vmatpush1.msra.mxu0 0.0
  %212 = vmatprep.subr.mxu0 0.0
  %213 = vmatpush1.msra.mxu0 0.0
  %214 = vmatprep.subr.mxu0 0.0
  %215 = vmatpush1.msra.mxu0 0.0
  %216 = vmatprep.subr.mxu0 0.0
  %217 = vmatpush1.msra.mxu0 0.0
  %218 = vmatprep.mubr.f32.mxu0 0.0
  %219 = vmatmul.mubr.f32.gmra.mrb[0].mxu0 %v139
  %v220 = vpop.f32.mrb[0].mxu0
  %v221 = vadd.f32 0.0, %v220
  %v222 = vpop.f32.mrb[0].mxu0
  %223 = vmatprep.mubr.f32.mxu0 0.0
  %224 = vmatmul.mubr.f32.gmra.mrb[0].mxu0 %v142
  %v225 = vpop.f32.mrb[0].mxu0
  %v226 = vadd.f32 0.0, %v225
  %v227 = vpop.f32.mrb[0].mxu0
  %228 = vmatprep.mubr.f32.mxu0 0.0
  %229 = vmatmul.mubr.f32.gmra.mrb[0].mxu0 %v145
  %v230 = vpop.f32.mrb[0].mxu0
  %v231 = vadd.f32 0.0, %v230
  %v232 = vpop.f32.mrb[0].mxu0
  %233 = vmatprep.mubr.f32.mxu0 0.0
  %234 = vmatmul.mubr.f32.gmra.mrb[0].mxu0 %v148
  %v235 = vpop.f32.mrb[0].mxu0
  %v236 = vadd.f32 0.0, %v235
  %v237 = vpop.f32.mrb[0].mxu0
  %238 = vdwg.mxu0
  %v239 = vmax.f32 %v221, 1e-10
  %v240 = vmax.f32 %v226, 1e-10
  %v241 = vmax.f32 %v231, 1e-10
  %v242 = vmax.f32 %v236, 1e-10
  %v243 = vlog2.pop %v239
  %v244 = vmul.f32 %v243, 0.6931472
  %v245 = vlog2.pop %v240
  %v246 = vmul.f32 %v245, 0.6931472
  %v247 = vlog2.pop %v241
  %v248 = vmul.f32 %v247, 0.6931472
  %v249 = vlog2.pop %v242
  %v250 = vmul.f32 %v249, 0.6931472
  %v251 = vmul.f32 %v244, 0.4342945
  %v252 = vmul.f32 %v246, 0.4342945
  %v253 = vmul.f32 %v248, 0.4342945
  %v254 = vmul.f32 %v250, 0.4342945
  %vm255 = vcmask 130048
  %v256 = vsel %vm255, %v251, -inf
  %v257 = vsel %vm255, %v252, -inf
  %v258 = vsel %vm255, %v253, -inf
  %v259 = vsel %vm255, %v254, -inf
  %v260 = vmax.f32 %v256, %v257
  %v261 = vmax.f32 %v258, %v259
  %v262 = vmax.f32 %v260, %v261
  %263 = vmax.xlane.f32.xlu0 %v262
  %v264 = vpop.xlane.xlu0 %263
  %v265 = vrot.slane %v264, 4
  %v266 = vmax.f32 %v264, %v265
  %v267 = vrot.slane %v266, 2
  %v268 = vmax.f32 %v266, %v267
  %v269 = vrot.slane %v268, 1
  %v270 = vmax.f32 %v268, %v269
  %s271 = vtos %v270
  %s272 = ssub.f32 %s271, 8.0
  %v273 = vstv %s272
  %v274 = vmax.f32 %v251, %v273
  %v275 = vmax.f32 %v252, %v273
  %v276 = vmax.f32 %v253, %v273
  %v277 = vmax.f32 %v254, %v273
  %v278 = vadd.f32 %v274, 4.0
  %v279 = vadd.f32 %v275, 4.0
  %v280 = vadd.f32 %v276, 4.0
  %v281 = vadd.f32 %v277, 4.0
  %v282 = vrcp.pop 4.0
  %v283 = vmul.f32 %v278, %v282
  %v284 = vmul.f32 %v279, %v282
  %v285 = vmul.f32 %v280, %v282
  %v286 = vmul.f32 %v281, %v282
  %287 = vst.msk [vmem:[%s3] sm:$0xff] %vm255, %v283
  %288 = vst.msk [vmem:[%s3 + $0x8] sm:$0xff] %vm255, %v284
  %289 = vst.msk [vmem:[%s3 + $0x10] sm:$0xff] %vm255, %v285
  %290 = vst.msk [vmem:[%s3 + $0x18] sm:$0xff] %vm255, %v286
  // Predicated region
  $region14: #{whisper_audio_encoder.5} parent=0 // pred_check
    _
  $region15: #{whisper_audio_encoder.5} parent=0 // pred_check_branch
    %292 = sbr.rel (0) target = $region17
  $region16: #{whisper_audio_encoder.5} parent=0 // pred_region
    _
  $region17: #{whisper_audio_encoder.5} parent=0 // pred_fallthru
    _
  // Predicated region
  $region18: #{whisper_audio_encoder.5} parent=0 // pred_check
    _
  $region19: #{whisper_audio_encoder.5} parent=0 // pred_check_branch
    %294 = sbr.rel (0) target = $region21
  $region20: #{whisper_audio_encoder.5} parent=0 // pred_region
    _
  $region21: #{whisper_audio_encoder.5} parent=0 // pred_fallthru
    _

// kernel: whisper_audio_encoder.7
$region0: #{whisper_audio_encoder.7}
  #allocation0 [shape = 'u32[]', space=smem, size = 0x4, offset = 0x4, fixed_abs, tag = 'smem constant byte address 0x4 - core index']
  #allocation1 [shape = 'u32[144,128]{1,0:T(1,128)}', space=vmem, size = 0x12000, scoped, tag = 'internal scratch']
  %s0 = inlined_call_operand.vmem [shape: f32[16,32], index: 0, kind: input, shape index: {}]
  %s1 = inlined_call_operand.vmem [shape: f32[1,32], index: 1, kind: input, shape index: {}]
  %s2 = inlined_call_operand.vmem [shape: f32[1,32], index: 2, kind: input, shape index: {}]
  %s3 = inlined_call_operand.vmem [shape: bf16[32,96], index: 3, kind: input, shape index: {}]
  %s4 = inlined_call_operand.vmem [shape: f32[1,96], index: 4, kind: input, shape index: {}]
  %s5 = inlined_call_operand.vmem [shape: bf16[32,32], index: 5, kind: input, shape index: {}]
  %s6 = inlined_call_operand.vmem [shape: f32[1,32], index: 6, kind: input, shape index: {}]
  %s7 = inlined_call_operand.vmem [shape: f32[1,32], index: 7, kind: input, shape index: {}]
  %s8 = inlined_call_operand.vmem [shape: f32[1,32], index: 8, kind: input, shape index: {}]
  %s9 = inlined_call_operand.vmem [shape: bf16[32,128], index: 9, kind: input, shape index: {}]
  %s10 = inlined_call_operand.vmem [shape: f32[1,128], index: 10, kind: input, shape index: {}]
  %s11 = inlined_call_operand.vmem [shape: bf16[128,32], index: 11, kind: input, shape index: {}]
  %s12 = inlined_call_operand.vmem [shape: f32[1,32], index: 12, kind: input, shape index: {}]
  %s13 = inlined_call_operand.vmem [shape: f32[16,32], index: 13, kind: output, shape index: {}]
  %s14 = sld [smem:[#allocation0]]
  $region62: #{whisper_audio_encoder.7} parent=0
    _
  %s16 = ssub.s32 1, %s14
  %s17 = scalar_select 0, %s16, %s14
  // Predicated region
  $region2: #{whisper_audio_encoder.7} parent=0 // pred_check
    _
  $region3: #{whisper_audio_encoder.7} parent=0 // pred_check_branch
    %19 = sbr.rel (0) target = $region5
  $region4: #{whisper_audio_encoder.7} parent=0 // pred_region
    _
  $region5: #{whisper_audio_encoder.7} parent=0 // pred_fallthru
    _
  // Predicated region
  $region6: #{whisper_audio_encoder.7} parent=0 // pred_check
    _
  $region7: #{whisper_audio_encoder.7} parent=0 // pred_check_branch
    %21 = sbr.rel (0) target = $region9
  $region8: #{whisper_audio_encoder.7} parent=0 // pred_region
    _
  $region9: #{whisper_audio_encoder.7} parent=0 // pred_fallthru
    _
  // Predicated region
  $region10: #{whisper_audio_encoder.7} parent=0 // pred_check
    _
  $region11: #{whisper_audio_encoder.7} parent=0 // pred_check_branch
    %23 = sbr.rel (0) target = $region13
  $region12: #{whisper_audio_encoder.7} parent=0 // pred_region
    _
  $region13: #{whisper_audio_encoder.7} parent=0 // pred_fallthru
    _
  // Predicated region
  $region14: #{whisper_audio_encoder.7} parent=0 // pred_check
    _
  $region15: #{whisper_audio_encoder.7} parent=0 // pred_check_branch
    %25 = sbr.rel (0) target = $region17
  $region16: #{whisper_audio_encoder.7} parent=0 // pred_region
    _
  $region17: #{whisper_audio_encoder.7} parent=0 // pred_fallthru
    _
  // Predicated region
  $region18: #{whisper_audio_encoder.7} parent=0 // pred_check
    _
  $region19: #{whisper_audio_encoder.7} parent=0 // pred_check_branch
    %27 = sbr.rel (0) target = $region21
  $region20: #{whisper_audio_encoder.7} parent=0 // pred_region
    _
  $region21: #{whisper_audio_encoder.7} parent=0 // pred_fallthru
    _
  // Predicated region
  $region22: #{whisper_audio_encoder.7} parent=0 // pred_check
    _
  $region23: #{whisper_audio_encoder.7} parent=0 // pred_check_branch
    %29 = sbr.rel (0) target = $region25
  $region24: #{whisper_audio_encoder.7} parent=0 // pred_region
    _
  $region25: #{whisper_audio_encoder.7} parent=0 // pred_fallthru
    _
  // Predicated region
  $region26: #{whisper_audio_encoder.7} parent=0 // pred_check
    _
  $region27: #{whisper_audio_encoder.7} parent=0 // pred_check_branch
    %31 = sbr.rel (0) target = $region29
  $region28: #{whisper_audio_encoder.7} parent=0 // pred_region
    _
  $region29: #{whisper_audio_encoder.7} parent=0 // pred_fallthru
    _
  // Predicated region
  $region30: #{whisper_audio_encoder.7} parent=0 // pred_check
    _
  $region31: #{whisper_audio_encoder.7} parent=0 // pred_check_branch
    %33 = sbr.rel (0) target = $region33
  $region32: #{whisper_audio_encoder.7} parent=0 // pred_region
    _
  $region33: #{whisper_audio_encoder.7} parent=0 // pred_fallthru
    _
  // Predicated region
  $region34: #{whisper_audio_encoder.7} parent=0 // pred_check
    _
  $region35: #{whisper_audio_encoder.7} parent=0 // pred_check_branch
    %35 = sbr.rel (0) target = $region37
  $region36: #{whisper_audio_encoder.7} parent=0 // pred_region
    _
  $region37: #{whisper_audio_encoder.7} parent=0 // pred_fallthru
    _
  // Predicated region
  $region38: #{whisper_audio_encoder.7} parent=0 // pred_check
    _
  $region39: #{whisper_audio_encoder.7} parent=0 // pred_check_branch
    %37 = sbr.rel (0) target = $region41
  $region40: #{whisper_audio_encoder.7} parent=0 // pred_region
    _
  $region41: #{whisper_audio_encoder.7} parent=0 // pred_fallthru
    _
  // Predicated region
  $region42: #{whisper_audio_encoder.7} parent=0 // pred_check
    _
  $region43: #{whisper_audio_encoder.7} parent=0 // pred_check_branch
    %39 = sbr.rel (0) target = $region45
  $region44: #{whisper_audio_encoder.7} parent=0 // pred_region
    _
  $region45: #{whisper_audio_encoder.7} parent=0 // pred_fallthru
    _
  // Predicated region
  $region46: #{whisper_audio_encoder.7} parent=0 // pred_check
    _
  $region47: #{whisper_audio_encoder.7} parent=0 // pred_check_branch
    %41 = sbr.rel (0) target = $region49
  $region48: #{whisper_audio_encoder.7} parent=0 // pred_region
    _
  $region49: #{whisper_audio_encoder.7} parent=0 // pred_fallthru
    _
  // Predicated region
  $region50: #{whisper_audio_encoder.7} parent=0 // pred_check
    _
  $region51: #{whisper_audio_encoder.7} parent=0 // pred_check_branch
    %43 = sbr.rel (0) target = $region53
  $region52: #{whisper_audio_encoder.7} parent=0 // pred_region
    _
  $region53: #{whisper_audio_encoder.7} parent=0 // pred_fallthru
    _
  %v45 = vld [vmem:[%s0] sm:$0xff]
  %v46 = vld [vmem:[%s0 + $0x8] sm:$0xff]
  %v47 = vld [vmem:[%s1] sm:$0x1]
  %v48 = vld [vmem:[%s2] sm:$0x1]
  %vm49 = vcmask 261120
  %v50 = vsel %vm49, %v45, 0.0
  %51 = vadd.xlane.f32.xlu0 %v50
  %v52 = vpop.xlane.xlu0 %51
  %v53 = vsel %vm49, %v46, 0.0
  %54 = vadd.xlane.f32.xlu0 %v53
  %v55 = vpop.xlane.xlu0 %54
  %v56 = vrcp.pop 32.0
  %v57 = vmul.f32 %v52, %v56
  %v58 = vmul.f32 %v55, %v56
  %v59 = vsub.f32 %v45, %v57
  %v60 = vsub.f32 %v46, %v58
  %v61 = vmul.f32 %v59, %v59
  %v62 = vmul.f32 %v60, %v60
  %v63 = vsel %vm49, %v61, 0.0
  %64 = vadd.xlane.f32.xlu0 %v63
  %v65 = vpop.xlane.xlu0 %64
  %v66 = vsel %vm49, %v62, 0.0
  %67 = vadd.xlane.f32.xlu0 %v66
  %v68 = vpop.xlane.xlu0 %67
  %v69 = vmul.f32 %v65, %v56
  %v70 = vmul.f32 %v68, %v56
  %v71 = vadd.f32 %v69, 1e-05
  %v72 = vadd.f32 %v70, 1e-05
  %v73 = vrsqrt.pop %v71
  %v74 = vrsqrt.pop %v72
  %v75 = vmul.f32 %v59, %v73
  %v76 = vmul.f32 %v60, %v74
  %v78 = vlaneseq
  %v79 = vshrl.u32 %v78, 7
  %v80 = vsub.s32 0, %v79
  %v81 = vrot.slane %v47, %v80
  %v83 = vmul.f32 %v75, %v81
  %v84 = vmul.f32 %v76, %v81
  %v86 = vlaneseq
  %v87 = vshrl.u32 %v86, 7
  %v88 = vsub.s32 0, %v87
  %v89 = vrot.slane %v48, %v88
  %v91 = vadd.f32 %v83, %v89
  %v92 = vadd.f32 %v84, %v89
  %v93 = vpack.c.bf16 %v92, %v91
  %v94 = vld [vmem:[%s3] sm:$0xf]
  %v95 = vld [vmem:[%s3 + $0x4] sm:$0xf]
  %v96 = vld [vmem:[%s3 + $0x8] sm:$0xf]
  %v97 = vld [vmem:[%s3 + $0xc] sm:$0xf]
  %v98 = vld [vmem:[%s4] sm:$0x1]
  %v100 = vlaneseq
  %v101 = vshrl.u32 %v100, 7
  %v102 = vsub.s32 0, %v101
  %v103 = vrot.slane %v98, %v102
  %v109 = vunpack.c.l.b16 %v94
  %v110 = vunpack.c.l.b16 %v95
  %v111 = vunpack.c.l.b16 %v96
  %v112 = vunpack.c.l.b16 %v97
  %v113 = vpack.c.b16 %v110, %v109
  %v114 = vpack.c.b16 %v112, %v111
  %v118 = vsel %vm49, %v93, 0
  %120 = vmatprep.subr.bf16.mxu0 0
  %121 = vmatpush1.bf16.msra.mxu0 %v113
  %122 = vmatprep.subr.bf16.mxu0 0
  %123 = vmatpush1.bf16.msra.mxu0 %v114
  %124 = vmatprep.subr.bf16.mxu0 0
  %125 = vmatpush1.bf16.msra.mxu0 0
  %126 = vmatprep.subr.bf16.mxu0 0
  %127 = vmatpush1.bf16.msra.mxu0 0
  %128 = vmatprep.subr.bf16.mxu0 0
  %129 = vmatpush1.bf16.msra.mxu0 0
  %130 = vmatprep.subr.bf16.mxu0 0
  %131 = vmatpush1.bf16.msra.mxu0 0
  %132 = vmatprep.subr.bf16.mxu0 0
  %133 = vmatpush1.bf16.msra.mxu0 0
  %134 = vmatprep.subr.bf16.mxu0 0
  %135 = vmatpush1.bf16.msra.mxu0 0
  %136 = vmatprep.subr.bf16.mxu0 0
  %137 = vmatpush1.bf16.msra.mxu0 0
  %138 = vmatprep.subr.bf16.mxu0 0
  %139 = vmatpush1.bf16.msra.mxu0 0
  %140 = vmatprep.subr.bf16.mxu0 0
  %141 = vmatpush1.bf16.msra.mxu0 0
  %142 = vmatprep.subr.bf16.mxu0 0
  %143 = vmatpush1.bf16.msra.mxu0 0
  %144 = vmatprep.subr.bf16.mxu0 0
  %145 = vmatpush1.bf16.msra.mxu0 0
  %146 = vmatprep.subr.bf16.mxu0 0
  %147 = vmatpush1.bf16.msra.mxu0 0
  %148 = vmatprep.subr.bf16.mxu0 0
  %149 = vmatpush1.bf16.msra.mxu0 0
  %150 = vmatprep.subr.bf16.mxu0 0
  %151 = vmatpush1.bf16.msra.mxu0 0
  %152 = vmatprep.mubr.bf16.mxu0 0
  %153 = vmatmul.mubr.bf16.gmra.mrb[0].mxu0 %v118
  %v154 = vpop.f32.mrb[0].mxu0
  %v155 = vadd.f32 %v103, %v154
  %v156 = vpop.f32.mrb[0].mxu0
  %v157 = vpop.f32.mrb[0].mxu0
  %v158 = vadd.f32 %v103, %v157
  %v159 = vpop.f32.mrb[0].mxu0
  %160 = vdwg.mxu0
  %v161 = vpack.c.bf16 %v158, %v155
  %v162 = vld [vmem:[%s5] sm:$0xf]
  %v163 = vld [vmem:[%s5 + $0x4] sm:$0xf]
  %v164 = vld [vmem:[%s5 + $0x8] sm:$0xf]
  %v165 = vld [vmem:[%s5 + $0xc] sm:$0xf]
  %v166 = vld [vmem:[%s6] sm:$0x1]
  %v168 = vlaneseq
  %v169 = vshrl.u32 %v168, 7
  %v170 = vsub.s32 0, %v169
  %v171 = vrot.slane %v166, %v170
  %v173 = vadd.f32 %v45, %v171
  %175 = vrot.lane.b32.xlu0 %v161, 96
  %v176 = vpop.permute.xlu0 %175
  %vm177 = vcmask 64512
  %v179 = vsel %vm177, %v161, 0
  %v182 = vsel %vm177, %v176, 0
  %184 = vmatprep.subr.bf16.mxu0 0
  %185 = vmatpush1.bf16.xpose.msra.mxu0 %v182
  %186 = vmatprep.subr.bf16.mxu0 0
  %187 = vmatpush1.bf16.xpose.msra.mxu0 0
  %188 = vmatprep.subr.bf16.mxu0 0
  %189 = vmatpush1.bf16.xpose.msra.mxu0 0
  %190 = vmatprep.subr.bf16.mxu0 0
  %191 = vmatpush1.bf16.xpose.msra.mxu0 0
  %192 = vmatprep.subr.bf16.mxu0 0
  %193 = vmatpush1.bf16.xpose.msra.mxu0 0
  %194 = vmatprep.subr.bf16.mxu0 0
  %195 = vmatpush1.bf16.xpose.msra.mxu0 0
  %196 = vmatprep.subr.bf16.mxu0 0
  %197 = vmatpush1.bf16.xpose.msra.mxu0 0
  %198 = vmatprep.subr.bf16.mxu0 0
  %199 = vmatpush1.bf16.xpose.msra.mxu0 0
  %200 = vmatprep.subr.bf16.mxu0 0
  %201 = vmatpush1.bf16.xpose.msra.mxu0 0
  %202 = vmatprep.subr.bf16.mxu0 0
  %203 = vmatpush1.bf16.xpose.msra.mxu0 0
  %204 = vmatprep.subr.bf16.mxu0 0
  %205 = vmatpush1.bf16.xpose.msra.mxu0 0
  %206 = vmatprep.subr.bf16.mxu0 0
  %207 = vmatpush1.bf16.xpose.msra.mxu0 0
  %208 = vmatprep.subr.bf16.mxu0 0
  %209 = vmatpush1.bf16.xpose.msra.mxu0 0
  %210 = vmatprep.subr.bf16.mxu0 0
  %211 = vmatpush1.bf16.xpose.msra.mxu0 0
  %212 = vmatprep.subr.bf16.mxu0 0
  %213 = vmatpush1.bf16.xpose.msra.mxu0 0
  %214 = vmatprep.subr.bf16.mxu0 0
  %215 = vmatpush1.bf16.xpose.msra.mxu0 0
  %216 = vmatprep.mubr.bf16.mxu0 0
  %217 = vmatmul.mubr.bf16.gmra.mrb[0].mxu0 %v179
  %v218 = vpop.f32.mrb[0].mxu0
  %v219 = vadd.f32 0.0, %v218
  %v220 = vpop.f32.mrb[0].mxu0
  %v221 = vpop.f32.mrb[0].mxu0
  %v222 = vpop.f32.mrb[0].mxu0
  %223 = vdwg.mxu0
  %v224 = vsel %vm177, %v219, -inf
  %225 = vmax.xlane.f32.xlu0 %v224
  %v226 = vpop.xlane.xlu0 %225
  %v227 = vsub.f32 %v219, %v226
  %v228 = vmul.f32 %v227, 1.442695
  %v229 = vpow.pop %v228
  %v230 = vsel %vm177, %v229, 0.0
  %231 = vadd.xlane.f32.xlu0 %v230
  %v232 = vpop.xlane.xlu0 %231
  %v233 = vrcp.pop %v232
  %v234 = vmul.f32 %v229, %v233
  %v235 = vpack.c.bf16 %v234, %v234
  %236 = vrot.lane.b32.xlu0 %v161, 64
  %v237 = vpop.permute.xlu0 %236
  %v239 = vsel %vm177, %v235, 0
  %vm241 = vcmask 1043456
  %v243 = vsel %vm241, %v237, 0
  %245 = vmatprep.subr.bf16.mxu0 0
  %246 = vmatpush1.bf16.msra.mxu0 %v243
  %247 = vmatprep.subr.bf16.mxu0 0
  %248 = vmatpush1.bf16.msra.mxu0 0
  %249 = vmatprep.subr.bf16.mxu0 0
  %250 = vmatpush1.bf16.msra.mxu0 0
  %251 = vmatprep.subr.bf16.mxu0 0
  %252 = vmatpush1.bf16.msra.mxu0 0
  %253 = vmatprep.subr.bf16.mxu0 0
  %254 = vmatpush1.bf16.msra.mxu0 0
  %255 = vmatprep.subr.bf16.mxu0 0
  %256 = vmatpush1.bf16.msra.mxu0 0
  %257 = vmatprep.subr.bf16.mxu0 0
  %258 = vmatpush1.bf16.msra.mxu0 0
  %259 = vmatprep.subr.bf16.mxu0 0
  %260 = vmatpush1.bf16.msra.mxu0 0
  %261 = vmatprep.subr.bf16.mxu0 0
  %262 = vmatpush1.bf16.msra.mxu0 0
  %263 = vmatprep.subr.bf16.mxu0 0
  %264 = vmatpush1.bf16.msra.mxu0 0
  %265 = vmatprep.subr.bf16.mxu0 0
  %266 = vmatpush1.bf16.msra.mxu0 0
  %267 = vmatprep.subr.bf16.mxu0 0
  %268 = vmatpush1.bf16.msra.mxu0 0
  %269 = vmatprep.subr.bf16.mxu0 0
  %270 = vmatpush1.bf16.msra.mxu0 0
  %271 = vmatprep.subr.bf16.mxu0 0
  %272 = vmatpush1.bf16.msra.mxu0 0
  %273 = vmatprep.subr.bf16.mxu0 0
  %274 = vmatpush1.bf16.msra.mxu0 0
  %275 = vmatprep.subr.bf16.mxu0 0
  %276 = vmatpush1.bf16.msra.mxu0 0
  %277 = vmatprep.mubr.bf16.mxu0 0
  %278 = vmatmul.mubr.bf16.gmra.mrb[0].mxu0 %v239
  %v279 = vpop.f32.mrb[0].mxu0
  %v280 = vadd.f32 0.0, %v279
  %v281 = vpop.f32.mrb[0].mxu0
  %v282 = vpop.f32.mrb[0].mxu0
  %v283 = vpop.f32.mrb[0].mxu0
  %284 = vdwg.mxu0
  %v285 = vpack.c.bf16 %v280, %v280
  %v287 = vsel %vm177, %v285, 0
  %v290 = vsel %vm241, %v162, 0
  %292 = vmatprep.subr.bf16.mxu0 0
  %293 = vmatpush1.bf16.msra.mxu0 %v290
  %294 = vmatprep.subr.bf16.mxu0 0
  %295 = vmatpush1.bf16.msra.mxu0 0
  %296 = vmatprep.subr.bf16.mxu0 0
  %297 = vmatpush1.bf16.msra.mxu0 0
  %298 = vmatprep.subr.bf16.mxu0 0
  %299 = vmatpush1.bf16.msra.mxu0 0
  %300 = vmatprep.subr.bf16.mxu0 0
  %301 = vmatpush1.bf16.msra.mxu0 0
  %302 = vmatprep.subr.bf16.mxu0 0
  %303 = vmatpush1.bf16.msra.mxu0 0
  %304 = vmatprep.subr.bf16.mxu0 0
  %305 = vmatpush1.bf16.msra.mxu0 0
  %306 = vmatprep.subr.bf16.mxu0 0
  %307 = vmatpush1.bf16.msra.mxu0 0
  %308 = vmatprep.subr.bf16.mxu0 0
  %309 = vmatpush1.bf16.msra.mxu0 0
  %310 = vmatprep.subr.bf16.mxu0 0
  %311 = vmatpush1.bf16.msra.mxu0 0
  %312 = vmatprep.subr.bf16.mxu0 0
  %313 = vmatpush1.bf16.msra.mxu0 0
  %314 = vmatprep.subr.bf16.mxu0 0
  %315 = vmatpush1.bf16.msra.mxu0 0
  %316 = vmatprep.subr.bf16.mxu0 0
  %317 = vmatpush1.bf16.msra.mxu0 0
  %318 = vmatprep.subr.bf16.mxu0 0
  %319 = vmatpush1.bf16.msra.mxu0 0
  %320 = vmatprep.subr.bf16.mxu0 0
  %321 = vmatpush1.bf16.msra.mxu0 0
  %322 = vmatprep.subr.bf16.mxu0 0
  %323 = vmatpush1.bf16.msra.mxu0 0
  %324 = vmatprep.mubr.bf16.mxu0 0
  %325 = vmatmul.mubr.bf16.gmra.mrb[0].mxu0 %v287
  %v326 = vpop.f32.mrb[0].mxu0
  %v327 = vadd.f32 0.0, %v326
  %v328 = vpop.f32.mrb[0].mxu0
  %v329 = vpop.f32.mrb[0].mxu0
  %v330 = vpop.f32.mrb[0].mxu0
  %331 = vdwg.mxu0
  %v332 = vadd.f32 %v173, %v327
  %333 = vrot.lane.b32.xlu0 %v161, 120
  %v334 = vpop.permute.xlu0 %333
  %335 = vrot.lane.b32.xlu0 %v161, 88
  %v336 = vpop.permute.xlu0 %335
  %v338 = vsel %vm177, %v334, 0
  %v341 = vsel %vm177, %v336, 0
  %343 = vmatprep.subr.bf16.mxu0 0
  %344 = vmatpush1.bf16.xpose.msra.mxu0 %v341
  %345 = vmatprep.subr.bf16.mxu0 0
  %346 = vmatpush1.bf16.xpose.msra.mxu0 0
  %347 = vmatprep.subr.bf16.mxu0 0
  %348 = vmatpush1.bf16.xpose.msra.mxu0 0
  %349 = vmatprep.subr.bf16.mxu0 0
  %350 = vmatpush1.bf16.xpose.msra.mxu0 0
  %351 = vmatprep.subr.bf16.mxu0 0
  %352 = vmatpush1.bf16.xpose.msra.mxu0 0
  %353 = vmatprep.subr.bf16.mxu0 0
  %354 = vmatpush1.bf16.xpose.msra.mxu0 0
  %355 = vmatprep.subr.bf16.mxu0 0
  %356 = vmatpush1.bf16.xpose.msra.mxu0 0
  %357 = vmatprep.subr.bf16.mxu0 0
  %358 = vmatpush1.bf16.xpose.msra.mxu0 0
  %359 = vmatprep.subr.bf16.mxu0 0
  %360 = vmatpush1.bf16.xpose.msra.mxu0 0
  %361 = vmatprep.subr.bf16.mxu0 0
  %362 = vmatpush1.bf16.xpose.msra.mxu0 0
  %363 = vmatprep.subr.bf16.mxu0 0
  %364 = vmatpush1.bf16.xpose.msra.mxu0 0
  %365 = vmatprep.subr.bf16.mxu0 0
  %366 = vmatpush1.bf16.xpose.msra.mxu0 0
  %367 = vmatprep.subr.bf16.mxu0 0
  %368 = vmatpush1.bf16.xpose.msra.mxu0 0
  %369 = vmatprep.subr.bf16.mxu0 0
  %370 = vmatpush1.bf16.xpose.msra.mxu0 0
  %371 = vmatprep.subr.bf16.mxu0 0
  %372 = vmatpush1.bf16.xpose.msra.mxu0 0
  %373 = vmatprep.subr.bf16.mxu0 0
  %374 = vmatpush1.bf16.xpose.msra.mxu0 0
  %375 = vmatprep.mubr.bf16.mxu0 0
  %376 = vmatmul.mubr.bf16.gmra.mrb[0].mxu0 %v338
  %v377 = vpop.f32.mrb[0].mxu0
  %v378 = vadd.f32 0.0, %v377
  %v379 = vpop.f32.mrb[0].mxu0
  %v380 = vpop.f32.mrb[0].mxu0
  %v381 = vpop.f32.mrb[0].mxu0
  %382 = vdwg.mxu0
  %v383 = vsel %vm177, %v378, -inf
  %384 = vmax.xlane.f32.xlu0 %v383
  %v385 = vpop.xlane.xlu0 %384
  %v386 = vsub.f32 %v378, %v385
  %v387 = vmul.f32 %v386, 1.442695
  %v388 = vpow.pop %v387
  %v389 = vsel %vm177, %v388, 0.0
  %390 = vadd.xlane.f32.xlu0 %v389
  %v391 = vpop.xlane.xlu0 %390
  %v392 = vrcp.pop %v391
  %v393 = vmul.f32 %v388, %v392
  %v394 = vpack.c.bf16 %v393, %v393
  %395 = vrot.lane.b32.xlu0 %v161, 56
  %v396 = vpop.permute.xlu0 %395
  %v398 = vsel %vm177, %v394, 0
  %v401 = vsel %vm241, %v396, 0
  %403 = vmatprep.subr.bf16.mxu0 0
  %404 = vmatpush1.bf16.msra.mxu0 %v401
  %405 = vmatprep.subr.bf16.mxu0 0
  %406 = vmatpush1.bf16.msra.mxu0 0
  %407 = vmatprep.subr.bf16.mxu0 0
  %408 = vmatpush1.bf16.msra.mxu0 0
  %409 = vmatprep.subr.bf16.mxu0 0
  %410 = vmatpush1.bf16.msra.mxu0 0
  %411 = vmatprep.subr.bf16.mxu0 0
  %412 = vmatpush1.bf16.msra.mxu0 0
  %413 = vmatprep.subr.bf16.mxu0 0
  %414 = vmatpush1.bf16.msra.mxu0 0
  %415 = vmatprep.subr.bf16.mxu0 0
  %416 = vmatpush1.bf16.msra.mxu0 0
  %417 = vmatprep.subr.bf16.mxu0 0
  %418 = vmatpush1.bf16.msra.mxu0 0
  %419 = vmatprep.subr.bf16.mxu0 0
  %420 = vmatpush1.bf16.msra.mxu0 0
  %421 = vmatprep.subr.bf16.mxu0 0
  %422 = vmatpush1.bf16.msra.mxu0 0
  %423 = vmatprep.subr.bf16.mxu0 0
  %424 = vmatpush1.bf16.msra.mxu0 0
  %425 = vmatprep.subr.bf16.mxu0 0
  %426 = vmatpush1.bf16.msra.mxu0 0
  %427 = vmatprep.subr.bf16.mxu0 0
  %428 = vmatpush1.bf16.msra.mxu0 0
  %429 = vmatprep.subr.bf16.mxu0 0
  %430 = vmatpush1.bf16.msra.mxu0 0
  %431 = vmatprep.subr.bf16.mxu0 0
  %432 = vmatpush1.bf16.msra.mxu0 0
  %433 = vmatprep.subr.bf16.mxu0 0
  %434 = vmatpush1.bf16.msra.mxu0 0
  %435 = vmatprep.mubr.bf16.mxu0 0
  %436 = vmatmul.mubr.bf16.gmra.mrb[0].mxu0 %v398
  %v437 = vpop.f32.mrb[0].mxu0
  %v438 = vadd.f32 0.0, %v437
  %v439 = vpop.f32.mrb[0].mxu0
  %v440 = vpop.f32.mrb[0].mxu0
  %v441 = vpop.f32.mrb[0].mxu0
  %442 = vdwg.mxu0
  %v443 = vpack.c.bf16 %v438, %v438
  %v445 = vsel %vm177, %v443, 0
  %v448 = vsel %vm241, %v163, 0
  %450 = vmatprep.subr.bf16.mxu0 0
  %451 = vmatpush1.bf16.msra.mxu0 %v448
  %452 = vmatprep.subr.bf16.mxu0 0
  %453 = vmatpush1.bf16.msra.mxu0 0
  %454 = vmatprep.subr.bf16.mxu0 0
  %455 = vmatpush1.bf16.msra.mxu0 0
  %456 = vmatprep.subr.bf16.mxu0 0
  %457 = vmatpush1.bf16.msra.mxu0 0
  %458 = vmatprep.subr.bf16.mxu0 0
  %459 = vmatpush1.bf16.msra.mxu0 0
  %460 = vmatprep.subr.bf16.mxu0 0
  %461 = vmatpush1.bf16.msra.mxu0 0
  %462 = vmatprep.subr.bf16.mxu0 0
  %463 = vmatpush1.bf16.msra.mxu0 0
  %464 = vmatprep.subr.bf16.mxu0 0
  %465 = vmatpush1.bf16.msra.mxu0 0
  %466 = vmatprep.subr.bf16.mxu0 0
  %467 = vmatpush1.bf16.msra.mxu0 0
  %468 = vmatprep.subr.bf16.mxu0 0
  %469 = vmatpush1.bf16.msra.mxu0 0
  %470 = vmatprep.subr.bf16.mxu0 0
  %471 = vmatpush1.bf16.msra.mxu0 0
  %472 = vmatprep.subr.bf16.mxu0 0
  %473 = vmatpush1.bf16.msra.mxu0 0
  %474 = vmatprep.subr.bf16.mxu0 0
  %475 = vmatpush1.bf16.msra.mxu0 0
  %476 = vmatprep.subr.bf16.mxu0 0
  %477 = vmatpush1.bf16.msra.mxu0 0
  %478 = vmatprep.subr.bf16.mxu0 0
  %479 = vmatpush1.bf16.msra.mxu0 0
  %480 = vmatprep.subr.bf16.mxu0 0
  %481 = vmatpush1.bf16.msra.mxu0 0
  %482 = vmatprep.mubr.bf16.mxu0 0
  %483 = vmatmul.mubr.bf16.gmra.mrb[0].mxu0 %v445
  %v484 = vpop.f32.mrb[0].mxu0
  %v485 = vadd.f32 0.0, %v484
  %v486 = vpop.f32.mrb[0].mxu0
  %v487 = vpop.f32.mrb[0].mxu0
  %v488 = vpop.f32.mrb[0].mxu0
  %489 = vdwg.mxu0
  %v490 = vadd.f32 %v332, %v485
  %491 = vrot.lane.b32.xlu0 %v161, 112
  %v492 = vpop.permute.xlu0 %491
  %493 = vrot.lane.b32.xlu0 %v161, 80
  %v494 = vpop.permute.xlu0 %493
  %v496 = vsel %vm177, %v492, 0
  %v499 = vsel %vm177, %v494, 0
  %501 = vmatprep.subr.bf16.mxu0 0
  %502 = vmatpush1.bf16.xpose.msra.mxu0 %v499
  %503 = vmatprep.subr.bf16.mxu0 0
  %504 = vmatpush1.bf16.xpose.msra.mxu0 0
  %505 = vmatprep.subr.bf16.mxu0 0
  %506 = vmatpush1.bf16.xpose.msra.mxu0 0
  %507 = vmatprep.subr.bf16.mxu0 0
  %508 = vmatpush1.bf16.xpose.msra.mxu0 0
  %509 = vmatprep.subr.bf16.mxu0 0
  %510 = vmatpush1.bf16.xpose.msra.mxu0 0
  %511 = vmatprep.subr.bf16.mxu0 0
  %512 = vmatpush1.bf16.xpose.msra.mxu0 0
  %513 = vmatprep.subr.bf16.mxu0 0
  %514 = vmatpush1.bf16.xpose.msra.mxu0 0
  %515 = vmatprep.subr.bf16.mxu0 0
  %516 = vmatpush1.bf16.xpose.msra.mxu0 0
  %517 = vmatprep.subr.bf16.mxu0 0
  %518 = vmatpush1.bf16.xpose.msra.mxu0 0
  %519 = vmatprep.subr.bf16.mxu0 0
  %520 = vmatpush1.bf16.xpose.msra.mxu0 0
  %521 = vmatprep.subr.bf16.mxu0 0
  %522 = vmatpush1.bf16.xpose.msra.mxu0 0
  %523 = vmatprep.subr.bf16.mxu0 0
  %524 = vmatpush1.bf16.xpose.msra.mxu0 0
  %525 = vmatprep.subr.bf16.mxu0 0
  %526 = vmatpush1.bf16.xpose.msra.mxu0 0
  %527 = vmatprep.subr.bf16.mxu0 0
  %528 = vmatpush1.bf16.xpose.msra.mxu0 0
  %529 = vmatprep.subr.bf16.mxu0 0
  %530 = vmatpush1.bf16.xpose.msra.mxu0 0
  %531 = vmatprep.subr.bf16.mxu0 0
  %532 = vmatpush1.bf16.xpose.msra.mxu0 0
  %533 = vmatprep.mubr.bf16.mxu0 0
  %534 = vmatmul.mubr.bf16.gmra.mrb[0].mxu0 %v496
  %v535 = vpop.f32.mrb[0].mxu0
  %v536 = vadd.f32 0.0, %v535
  %v537 = vpop.f32.mrb[0].mxu0
  %v538 = vpop.f32.mrb[0].mxu0
  %v539 = vpop.f32.mrb[0].mxu0
  %540 = vdwg.mxu0
  %v541 = vsel %vm177, %v536, -inf
  %542 = vmax.xlane.f32.xlu0 %v541
  %v543 = vpop.xlane.xlu0 %542
  %v544 = vsub.f32 %v536, %v543
  %v545 = vmul.f32 %v544, 1.442695
  %v546 = vpow.pop %v545
  %v547 = vsel %vm177, %v546, 0.0
  %548 = vadd.xlane.f32.xlu0 %v547
  %v549 = vpop.xlane.xlu0 %548
  %v550 = vrcp.pop %v549
  %v551 = vmul.f32 %v546, %v550
  %v552 = vpack.c.bf16 %v551, %v551
  %553 = vrot.lane.b32.xlu0 %v161, 48
  %v554 = vpop.permute.xlu0 %553
  %v556 = vsel %vm177, %v552, 0
  %v559 = vsel %vm241, %v554, 0
  %561 = vmatprep.subr.bf16.mxu0 0
  %562 = vmatpush1.bf16.msra.mxu0 %v559
  %563 = vmatprep.subr.bf16.mxu0 0
  %564 = vmatpush1.bf16.msra.mxu0 0
  %565 = vmatprep.subr.bf16.mxu0 0
  %566 = vmatpush1.bf16.msra.mxu0 0
  %567 = vmatprep.subr.bf16.mxu0 0
  %568 = vmatpush1.bf16.msra.mxu0 0
  %569 = vmatprep.subr.bf16.mxu0 0
  %570 = vmatpush1.bf16.msra.mxu0 0
  %571 = vmatprep.subr.bf16.mxu0 0
  %572 = vmatpush1.bf16.msra.mxu0 0
  %573 = vmatprep.subr.bf16.mxu0 0
  %574 = vmatpush1.bf16.msra.mxu0 0
  %575 = vmatprep.subr.bf16.mxu0 0
  %576 = vmatpush1.bf16.msra.mxu0 0
  %577 = vmatprep.subr.bf16.mxu0 0
  %578 = vmatpush1.bf16.msra.mxu0 0
  %579 = vmatprep.subr.bf16.mxu0 0
  %580 = vmatpush1.bf16.msra.mxu0 0
  %581 = vmatprep.subr.bf16.mxu0 0
  %582 = vmatpush1.bf16.msra.mxu0 0
  %583 = vmatprep.subr.bf16.mxu0 0
  %584 = vmatpush1.bf16.msra.mxu0 0
  %585 = vmatprep.subr.bf16.mxu0 0
  %586 = vmatpush1.bf16.msra.mxu0 0
  %587 = vmatprep.subr.bf16.mxu0 0
  %588 = vmatpush1.bf16.msra.mxu0 0
  %589 = vmatprep.subr.bf16.mxu0 0
  %590 = vmatpush1.bf16.msra.mxu0 0
  %591 = vmatprep.subr.bf16.mxu0 0
  %592 = vmatpush1.bf16.msra.mxu0 0
  %593 = vmatprep.mubr.bf16.mxu0 0
  %594 = vmatmul.mubr.bf16.gmra.mrb[0].mxu0 %v556
  %v595 = vpop.f32.mrb[0].mxu0
  %v596 = vadd.f32 0.0, %v595
  %v597 = vpop.f32.mrb[0].mxu0
  %v598 = vpop.f32.mrb[0].mxu0
  %v599 = vpop.f32.mrb[0].mxu0
  %600 = vdwg.mxu0
  %v601 = vpack.c.bf16 %v596, %v596
  %v603 = vsel %vm177, %v601, 0
  %v606 = vsel %vm241, %v164, 0
  %608 = vmatprep.subr.bf16.mxu0 0
  %609 = vmatpush1.bf16.msra.mxu0 %v606
  %610 = vmatprep.subr.bf16.mxu0 0
  %611 = vmatpush1.bf16.msra.mxu0 0
  %612 = vmatprep.subr.bf16.mxu0 0
  %613 = vmatpush1.bf16.msra.mxu0 0
  %614 = vmatprep.subr.bf16.mxu0 0
  %615 = vmatpush1.bf16.msra.mxu0 0
  %616 = vmatprep.subr.bf16.mxu0 0
  %617 = vmatpush1.bf16.msra.mxu0 0
  %618 = vmatprep.subr.bf16.mxu0 0
  %619 = vmatpush1.bf16.msra.mxu0 0
  %620 = vmatprep.subr.bf16.mxu0 0
  %621 = vmatpush1.bf16.msra.mxu0 0
  %622 = vmatprep.subr.bf16.mxu0 0
  %623 = vmatpush1.bf16.msra.mxu0 0
  %624 = vmatprep.subr.bf16.mxu0 0
  %625 = vmatpush1.bf16.msra.mxu0 0
  %626 = vmatprep.subr.bf16.mxu0 0
  %627 = vmatpush1.bf16.msra.mxu0 0
  %628 = vmatprep.subr.bf16.mxu0 0
  %629 = vmatpush1.bf16.msra.mxu0 0
  %630 = vmatprep.subr.bf16.mxu0 0
  %631 = vmatpush1.bf16.msra.mxu0 0
  %632 = vmatprep.subr.bf16.mxu0 0
  %633 = vmatpush1.bf16.msra.mxu0 0
  %634 = vmatprep.subr.bf16.mxu0 0
  %635 = vmatpush1.bf16.msra.mxu0 0
  %636 = vmatprep.subr.bf16.mxu0 0
  %637 = vmatpush1.bf16.msra.mxu0 0
  %638 = vmatprep.subr.bf16.mxu0 0
  %639 = vmatpush1.bf16.msra.mxu0 0
  %640 = vmatprep.mubr.bf16.mxu0 0
  %641 = vmatmul.mubr.bf16.gmra.mrb[0].mxu0 %v603
  %v642 = vpop.f32.mrb[0].mxu0
  %v643 = vadd.f32 0.0, %v642
  %v644 = vpop.f32.mrb[0].mxu0
  %v645 = vpop.f32.mrb[0].mxu0
  %v646 = vpop.f32.mrb[0].mxu0
  %647 = vdwg.mxu0
  %v648 = vadd.f32 %v490, %v643
  %649 = vrot.lane.b32.xlu0 %v161, 104
  %v650 = vpop.permute.xlu0 %649
  %651 = vrot.lane.b32.xlu0 %v161, 72
  %v652 = vpop.permute.xlu0 %651
  %v654 = vsel %vm177, %v650, 0
  %v657 = vsel %vm177, %v652, 0
  %659 = vmatprep.subr.bf16.mxu0 0
  %660 = vmatpush1.bf16.xpose.msra.mxu0 %v657
  %661 = vmatprep.subr.bf16.mxu0 0
  %662 = vmatpush1.bf16.xpose.msra.mxu0 0
  %663 = vmatprep.subr.bf16.mxu0 0
  %664 = vmatpush1.bf16.xpose.msra.mxu0 0
  %665 = vmatprep.subr.bf16.mxu0 0
  %666 = vmatpush1.bf16.xpose.msra.mxu0 0
  %667 = vmatprep.subr.bf16.mxu0 0
  %668 = vmatpush1.bf16.xpose.msra.mxu0 0
  %669 = vmatprep.subr.bf16.mxu0 0
  %670 = vmatpush1.bf16.xpose.msra.mxu0 0
  %671 = vmatprep.subr.bf16.mxu0 0
  %672 = vmatpush1.bf16.xpose.msra.mxu0 0
  %673 = vmatprep.subr.bf16.mxu0 0
  %674 = vmatpush1.bf16.xpose.msra.mxu0 0
  %675 = vmatprep.subr.bf16.mxu0 0
  %676 = vmatpush1.bf16.xpose.msra.mxu0 0
  %677 = vmatprep.subr.bf16.mxu0 0
  %678 = vmatpush1.bf16.xpose.msra.mxu0 0
  %679 = vmatprep.subr.bf16.mxu0 0
  %680 = vmatpush1.bf16.xpose.msra.mxu0 0
  %681 = vmatprep.subr.bf16.mxu0 0
  %682 = vmatpush1.bf16.xpose.msra.mxu0 0
  %683 = vmatprep.subr.bf16.mxu0 0
  %684 = vmatpush1.bf16.xpose.msra.mxu0 0
  %685 = vmatprep.subr.bf16.mxu0 0
  %686 = vmatpush1.bf16.xpose.msra.mxu0 0
  %687 = vmatprep.subr.bf16.mxu0 0
  %688 = vmatpush1.bf16.xpose.msra.mxu0 0
  %689 = vmatprep.subr.bf16.mxu0 0
  %690 = vmatpush1.bf16.xpose.msra.mxu0 0
  %691 = vmatprep.mubr.bf16.mxu0 0
  %692 = vmatmul.mubr.bf16.gmra.mrb[0].mxu0 %v654
  %v693 = vpop.f32.mrb[0].mxu0
  %v694 = vadd.f32 0.0, %v693
  %v695 = vpop.f32.mrb[0].mxu0
  %v696 = vpop.f32.mrb[0].mxu0
  %v697 = vpop.f32.mrb[0].mxu0
  %698 = vdwg.mxu0
  %v699 = vsel %vm177, %v694, -inf
  %700 = vmax.xlane.f32.xlu0 %v699
  %v701 = vpop.xlane.xlu0 %700
  %v702 = vsub.f32 %v694, %v701
  %v703 = vmul.f32 %v702, 1.442695
  %v704 = vpow.pop %v703
  %v705 = vsel %vm177, %v704, 0.0
  %706 = vadd.xlane.f32.xlu0 %v705
  %v707 = vpop.xlane.xlu0 %706
  %v708 = vrcp.pop %v707
  %v709 = vmul.f32 %v704, %v708
  %v710 = vpack.c.bf16 %v709, %v709
  %711 = vrot.lane.b32.xlu0 %v161, 40
  %v712 = vpop.permute.xlu0 %711
  %v714 = vsel %vm177, %v710, 0
  %v717 = vsel %vm241, %v712, 0
  %719 = vmatprep.subr.bf16.mxu0 0
  %720 = vmatpush1.bf16.msra.mxu0 %v717
  %721 = vmatprep.subr.bf16.mxu0 0
  %722 = vmatpush1.bf16.msra.mxu0 0
  %723 = vmatprep.subr.bf16.mxu0 0
  %724 = vmatpush1.bf16.msra.mxu0 0
  %725 = vmatprep.subr.bf16.mxu0 0
  %726 = vmatpush1.bf16.msra.mxu0 0
  %727 = vmatprep.subr.bf16.mxu0 0
  %728 = vmatpush1.bf16.msra.mxu0 0
  %729 = vmatprep.subr.bf16.mxu0 0
  %730 = vmatpush1.bf16.msra.mxu0 0
  %731 = vmatprep.subr.bf16.mxu0 0
  %732 = vmatpush1.bf16.msra.mxu0 0
  %733 = vmatprep.subr.bf16.mxu0 0
  %734 = vmatpush1.bf16.msra.mxu0 0
  %735 = vmatprep.subr.bf16.mxu0 0
  %736 = vmatpush1.bf16.msra.mxu0 0
  %737 = vmatprep.subr.bf16.mxu0 0
  %738 = vmatpush1.bf16.msra.mxu0 0
  %739 = vmatprep.subr.bf16.mxu0 0
  %740 = vmatpush1.bf16.msra.mxu0 0
  %741 = vmatprep.subr.bf16.mxu0 0
  %742 = vmatpush1.bf16.msra.mxu0 0
  %743 = vmatprep.subr.bf16.mxu0 0
  %744 = vmatpush1.bf16.msra.mxu0 0
  %745 = vmatprep.subr.bf16.mxu0 0
  %746 = vmatpush1.bf16.msra.mxu0 0
  %747 = vmatprep.subr.bf16.mxu0 0
  %748 = vmatpush1.bf16.msra.mxu0 0
  %749 = vmatprep.subr.bf16.mxu0 0
  %750 = vmatpush1.bf16.msra.mxu0 0
  %751 = vmatprep.mubr.bf16.mxu0 0
  %752 = vmatmul.mubr.bf16.gmra.mrb[0].mxu0 %v714
  %v753 = vpop.f32.mrb[0].mxu0
  %v754 = vadd.f32 0.0, %v753
  %v755 = vpop.f32.mrb[0].mxu0
  %v756 = vpop.f32.mrb[0].mxu0
  %v757 = vpop.f32.mrb[0].mxu0
  %758 = vdwg.mxu0
  %v759 = vpack.c.bf16 %v754, %v754
  %v761 = vsel %vm177, %v759, 0
  %v764 = vsel %vm241, %v165, 0
  %766 = vmatprep.subr.bf16.mxu0 0
  %767 = vmatpush1.bf16.msra.mxu0 %v764
  %768 = vmatprep.subr.bf16.mxu0 0
  %769 = vmatpush1.bf16.msra.mxu0 0
  %770 = vmatprep.subr.bf16.mxu0 0
  %771 = vmatpush1.bf16.msra.mxu0 0
  %772 = vmatprep.subr.bf16.mxu0 0
  %773 = vmatpush1.bf16.msra.mxu0 0
  %774 = vmatprep.subr.bf16.mxu0 0
  %775 = vmatpush1.bf16.msra.mxu0 0
  %776 = vmatprep.subr.bf16.mxu0 0
  %777 = vmatpush1.bf16.msra.mxu0 0
  %778 = vmatprep.subr.bf16.mxu0 0
  %779 = vmatpush1.bf16.msra.mxu0 0
  %780 = vmatprep.subr.bf16.mxu0 0
  %781 = vmatpush1.bf16.msra.mxu0 0
  %782 = vmatprep.subr.bf16.mxu0 0
  %783 = vmatpush1.bf16.msra.mxu0 0
  %784 = vmatprep.subr.bf16.mxu0 0
  %785 = vmatpush1.bf16.msra.mxu0 0
  %786 = vmatprep.subr.bf16.mxu0 0
  %787 = vmatpush1.bf16.msra.mxu0 0
  %788 = vmatprep.subr.bf16.mxu0 0
  %789 = vmatpush1.bf16.msra.mxu0 0
  %790 = vmatprep.subr.bf16.mxu0 0
  %791 = vmatpush1.bf16.msra.mxu0 0
  %792 = vmatprep.subr.bf16.mxu0 0
  %793 = vmatpush1.bf16.msra.mxu0 0
  %794 = vmatprep.subr.bf16.mxu0 0
  %795 = vmatpush1.bf16.msra.mxu0 0
  %796 = vmatprep.subr.bf16.mxu0 0
  %797 = vmatpush1.bf16.msra.mxu0 0
  %798 = vmatprep.mubr.bf16.mxu0 0
  %799 = vmatmul.mubr.bf16.gmra.mrb[0].mxu0 %v761
  %v800 = vpop.f32.mrb[0].mxu0
  %v801 = vadd.f32 0.0, %v800
  %v802 = vpop.f32.mrb[0].mxu0
  %v803 = vpop.f32.mrb[0].mxu0
  %v804 = vpop.f32.mrb[0].mxu0
  %805 = vdwg.mxu0
  %v806 = vadd.f32 %v648, %v801
  %v807 = vadd.f32 %v46, %v171
  %v808 = vrot.slane %v161, 4
  %809 = vrot.lane.b32.xlu0 %v808, 96
  %v810 = vpop.permute.xlu0 %809
  %v812 = vsel %vm177, %v808, 0
  %v815 = vsel %vm177, %v810, 0
  %817 = vmatprep.subr.bf16.mxu0 0
  %818 = vmatpush1.bf16.xpose.msra.mxu0 %v815
  %819 = vmatprep.subr.bf16.mxu0 0
  %820 = vmatpush1.bf16.xpose.msra.mxu0 0
  %821 = vmatprep.subr.bf16.mxu0 0
  %822 = vmatpush1.bf16.xpose.msra.mxu0 0
  %823 = vmatprep.subr.bf16.mxu0 0
  %824 = vmatpush1.bf16.xpose.msra.mxu0 0
  %825 = vmatprep.subr.bf16.mxu0 0
  %826 = vmatpush1.bf16.xpose.msra.mxu0 0
  %827 = vmatprep.subr.bf16.mxu0 0
  %828 = vmatpush1.bf16.xpose.msra.mxu0 0
  %829 = vmatprep.subr.bf16.mxu0 0
  %830 = vmatpush1.bf16.xpose.msra.mxu0 0
  %831 = vmatprep.subr.bf16.mxu0 0
  %832 = vmatpush1.bf16.xpose.msra.mxu0 0
  %833 = vmatprep.subr.bf16.mxu0 0
  %834 = vmatpush1.bf16.xpose.msra.mxu0 0
  %835 = vmatprep.subr.bf16.mxu0 0
  %836 = vmatpush1.bf16.xpose.msra.mxu0 0
  %837 = vmatprep.subr.bf16.mxu0 0
  %838 = vmatpush1.bf16.xpose.msra.mxu0 0
  %839 = vmatprep.subr.bf16.mxu0 0
  %840 = vmatpush1.bf16.xpose.msra.mxu0 0
  %841 = vmatprep.subr.bf16.mxu0 0
  %842 = vmatpush1.bf16.xpose.msra.mxu0 0
  %843 = vmatprep.subr.bf16.mxu0 0
  %844 = vmatpush1.bf16.xpose.msra.mxu0 0
  %845 = vmatprep.subr.bf16.mxu0 0
  %846 = vmatpush1.bf16.xpose.msra.mxu0 0
  %847 = vmatprep.subr.bf16.mxu0 0
  %848 = vmatpush1.bf16.xpose.msra.mxu0 0
  %849 = vmatprep.mubr.bf16.mxu0 0
  %850 = vmatmul.mubr.bf16.gmra.mrb[0].mxu0 %v812
  %v851 = vpop.f32.mrb[0].mxu0
  %v852 = vadd.f32 0.0, %v851
  %v853 = vpop.f32.mrb[0].mxu0
  %v854 = vpop.f32.mrb[0].mxu0
  %v855 = vpop.f32.mrb[0].mxu0
  %856 = vdwg.mxu0
  %v857 = vsel %vm177, %v852, -inf
  %858 = vmax.xlane.f32.xlu0 %v857
  %v859 = vpop.xlane.xlu0 %858
  %v860 = vsub.f32 %v852, %v859
  %v861 = vmul.f32 %v860, 1.442695
  %v862 = vpow.pop %v861
  %v863 = vsel %vm177, %v862, 0.0
  %864 = vadd.xlane.f32.xlu0 %v863
  %v865 = vpop.xlane.xlu0 %864
  %v866 = vrcp.pop %v865
  %v867 = vmul.f32 %v862, %v866
  %v868 = vpack.c.bf16 %v867, %v867
  %869 = vrot.lane.b32.xlu0 %v808, 64
  %v870 = vpop.permute.xlu0 %869
  %v872 = vsel %vm177, %v868, 0
  %v875 = vsel %vm241, %v870, 0
  %877 = vmatprep.subr.bf16.mxu0 0
  %878 = vmatpush1.bf16.msra.mxu0 %v875
  %879 = vmatprep.subr.bf16.mxu0 0
  %880 = vmatpush1.bf16.msra.mxu0 0
  %881 = vmatprep.subr.bf16.mxu0 0
  %882 = vmatpush1.bf16.msra.mxu0 0
  %883 = vmatprep.subr.bf16.mxu0 0
  %884 = vmatpush1.bf16.msra.mxu0 0
  %885 = vmatprep.subr.bf16.mxu0 0
  %886 = vmatpush1.bf16.msra.mxu0 0
  %887 = vmatprep.subr.bf16.mxu0 0
  %888 = vmatpush1.bf16.msra.mxu0 0
  %889 = vmatprep.subr.bf16.mxu0 0
  %890 = vmatpush1.bf16.msra.mxu0 0
  %891 = vmatprep.subr.bf16.mxu0 0
  %892 = vmatpush1.bf16.msra.mxu0 0
  %893 = vmatprep.subr.bf16.mxu0 0
  %894 = vmatpush1.bf16.msra.mxu0 0
  %895 = vmatprep.subr.bf16.mxu0 0
  %896 = vmatpush1.bf16.msra.mxu0 0
  %897 = vmatprep.subr.bf16.mxu0 0
  %898 = vmatpush1.bf16.msra.mxu0 0
  %899 = vmatprep.subr.bf16.mxu0 0
  %900 = vmatpush1.bf16.msra.mxu0 0
  %901 = vmatprep.subr.bf16.mxu0 0
  %902 = vmatpush1.bf16.msra.mxu0 0
  %903 = vmatprep.subr.bf16.mxu0 0
  %904 = vmatpush1.bf16.msra.mxu0 0
  %905 = vmatprep.subr.bf16.mxu0 0
  %906 = vmatpush1.bf16.msra.mxu0 0
  %907 = vmatprep.subr.bf16.mxu0 0
  %908 = vmatpush1.bf16.msra.mxu0 0
  %909 = vmatprep.mubr.bf16.mxu0 0
  %910 = vmatmul.mubr.bf16.gmra.mrb[0].mxu0 %v872
  %v911 = vpop.f32.mrb[0].mxu0
  %v912 = vadd.f32 0.0, %v911
  %v913 = vpop.f32.mrb[0].mxu0
  %v914 = vpop.f32.mrb[0].mxu0
  %v915 = vpop.f32.mrb[0].mxu0
  %916 = vdwg.mxu0
  %v917 = vpack.c.bf16 %v912, %v912
  %v919 = vsel %vm177, %v917, 0
  %921 = vmatprep.subr.bf16.mxu0 0
  %922 = vmatpush1.bf16.msra.mxu0 %v290
  %923 = vmatprep.subr.bf16.mxu0 0
  %924 = vmatpush1.bf16.msra.mxu0 0
  %925 = vmatprep.subr.bf16.mxu0 0
  %926 = vmatpush1.bf16.msra.mxu0 0
  %927 = vmatprep.subr.bf16.mxu0 0
  %928 = vmatpush1.bf16.msra.mxu0 0
  %929 = vmatprep.subr.bf16.mxu0 0
  %930 = vmatpush1.bf16.msra.mxu0 0
  %931 = vmatprep.subr.bf16.mxu0 0
  %932 = vmatpush1.bf16.msra.mxu0 0
  %933 = vmatprep.subr.bf16.mxu0 0
  %934 = vmatpush1.bf16.msra.mxu0 0
  %935 = vmatprep.subr.bf16.mxu0 0
  %936 = vmatpush1.bf16.msra.mxu0 0
  %937 = vmatprep.subr.bf16.mxu0 0
  %938 = vmatpush1.bf16.msra.mxu0 0
  %939 = vmatprep.subr.bf16.mxu0 0
  %940 = vmatpush1.bf16.msra.mxu0 0
  %941 = vmatprep.subr.bf16.mxu0 0
  %942 = vmatpush1.bf16.msra.mxu0 0
  %943 = vmatprep.subr.bf16.mxu0 0
  %944 = vmatpush1.bf16.msra.mxu0 0
  %945 = vmatprep.subr.bf16.mxu0 0
  %946 = vmatpush1.bf16.msra.mxu0 0
  %947 = vmatprep.subr.bf16.mxu0 0
  %948 = vmatpush1.bf16.msra.mxu0 0
  %949 = vmatprep.subr.bf16.mxu0 0
  %950 = vmatpush1.bf16.msra.mxu0 0
  %951 = vmatprep.subr.bf16.mxu0 0
  %952 = vmatpush1.bf16.msra.mxu0 0
  %953 = vmatprep.mubr.bf16.mxu0 0
  %954 = vmatmul.mubr.bf16.gmra.mrb[0].mxu0 %v919
  %v955 = vpop.f32.mrb[0].mxu0
  %v956 = vadd.f32 0.0, %v955
  %v957 = vpop.f32.mrb[0].mxu0
  %v958 = vpop.f32.mrb[0].mxu0
  %v959 = vpop.f32.mrb[0].mxu0
  %960 = vdwg.mxu0
  %v961 = vadd.f32 %v807, %v956
  %962 = vrot.lane.b32.xlu0 %v808, 120
  %v963 = vpop.permute.xlu0 %962
  %964 = vrot.lane.b32.xlu0 %v808, 88
  %v965 = vpop.permute.xlu0 %964
  %v967 = vsel %vm177, %v963, 0
  %v970 = vsel %vm177, %v965, 0
  %972 = vmatprep.subr.bf16.mxu0 0
  %973 = vmatpush1.bf16.xpose.msra.mxu0 %v970
  %974 = vmatprep.subr.bf16.mxu0 0
  %975 = vmatpush1.bf16.xpose.msra.mxu0 0
  %976 = vmatprep.subr.bf16.mxu0 0
  %977 = vmatpush1.bf16.xpose.msra.mxu0 0
  %978 = vmatprep.subr.bf16.mxu0 0
  %979 = vmatpush1.bf16.xpose.msra.mxu0 0
  %980 = vmatprep.subr.bf16.mxu0 0
  %981 = vmatpush1.bf16.xpose.msra.mxu0 0
  %982 = vmatprep.subr.bf16.mxu0 0
  %983 = vmatpush1.bf16.xpose.msra.mxu0 0
  %984 = vmatprep.subr.bf16.mxu0 0
  %985 = vmatpush1.bf16.xpose.msra.mxu0 0
  %986 = vmatprep.subr.bf16.mxu0 0
  %987 = vmatpush1.bf16.xpose.msra.mxu0 0
  %988 = vmatprep.subr.bf16.mxu0 0
  %989 = vmatpush1.bf16.xpose.msra.mxu0 0
  %990 = vmatprep.subr.bf16.mxu0 0
  %991 = vmatpush1.bf16.xpose.msra.mxu0 0
  %992 = vmatprep.subr.bf16.mxu0 0
  %993 = vmatpush1.bf16.xpose.msra.mxu0 0
  %994 = vmatprep.subr.bf16.mxu0 0
  %995 = vmatpush1.bf16.xpose.msra.mxu0 0
  %996 = vmatprep.subr.bf16.mxu0 0
  %997 = vmatpush1.bf16.xpose.msra.mxu0 0
  %998 = vmatprep.subr.bf16.mxu0 0
  %999 = vmatpush1.bf16.xpose.msra.mxu0 0
  %1000 = vmatprep.subr.bf16.mxu0 0
  %1001 = vmatpush1.bf16.xpose.msra.mxu0 0
  %1002 = vmatprep.subr.bf16.mxu0 0
  %1003 = vmatpush1.bf16.xpose.msra.mxu0 0
  %1004 = vmatprep.mubr.bf16.mxu0 0
  %1005 = vmatmul.mubr.bf16.gmra.mrb[0].mxu0 %v967
  %v1006 = vpop.f32.mrb[0].mxu0
  %v1007 = vadd.f32 0.0, %v1006
  %v1008 = vpop.f32.mrb[0].mxu0
  %v1009 = vpop.f32.mrb[0].mxu0
  %v1010 = vpop.f32.mrb[0].mxu0
  %1011 = vdwg.mxu0
  %v1012 = vsel %vm177, %v1007, -inf
  %1013 = vmax.xlane.f32.xlu0 %v1012
  %v1014 = vpop.xlane.xlu0 %1013
  %v1015 = vsub.f32 %v1007, %v1014
  %v1016 = vmul.f32 %v1015, 1.442695
  %v1017 = vpow.pop %v1016
  %v1018 = vsel %vm177, %v1017, 0.0
  %1019 = vadd.xlane.f32.xlu0 %v1018
  %v1020 = vpop.xlane.xlu0 %1019
  %v1021 = vrcp.pop %v1020
  %v1022 = vmul.f32 %v1017, %v1021
  %v1023 = vpack.c.bf16 %v1022, %v1022
  %1024 = vrot.lane.b32.xlu0 %v808, 56
  %v1025 = vpop.permute.xlu0 %1024
  %v1027 = vsel %vm177, %v1023, 0
  %v1030 = vsel %vm241, %v1025, 0
  %1032 = vmatprep.subr.bf16.mxu0 0
  %1033 = vmatpush1.bf16.msra.mxu0 %v1030
  %1034 = vmatprep.subr.bf16.mxu0 0
  %1035 = vmatpush1.bf16.msra.mxu0 0
  %1036 = vmatprep.subr.bf16.mxu0 0
  %1037 = vmatpush1.bf16.msra.mxu0 0
  %1038 = vmatprep.subr.bf16.mxu0 0
  %1039 = vmatpush1.bf16.msra.mxu0 0
  %1040 = vmatprep.subr.bf16.mxu0 0
  %1041 = vmatpush1.bf16.msra.mxu0 0
  %1042 = vmatprep.subr.bf16.mxu0 0
  %1043 = vmatpush1.bf16.msra.mxu0 0
  %1044 = vmatprep.subr.bf16.mxu0 0
  %1045 = vmatpush1.bf16.msra.mxu0 0
  %1046 = vmatprep.subr.bf16.mxu0 0
  %1047 = vmatpush1.bf16.msra.mxu0 0
  %1048 = vmatprep.subr.bf16.mxu0 0
  %1049 = vmatpush1.bf16.msra.mxu0 0
  %1050 = vmatprep.subr.bf16.mxu0 0
  %1051 = vmatpush1.bf16.msra.mxu0 0
  %1052 = vmatprep.subr.bf16.mxu0 0
  %1053 = vmatpush1.bf16.msra.mxu0 0
  %1054 = vmatprep.subr.bf16.mxu0 0
  %1055 = vmatpush1.bf16.msra.mxu0 0
  %1056 = vmatprep.subr.bf16.mxu0 0
  %1057 = vmatpush1.bf16.msra.mxu0 0
  %1058 = vmatprep.subr.bf16.mxu0 0
  %1059 = vmatpush1.bf16.msra.mxu0 0
  %1060 = vmatprep.subr.bf16.mxu0 0
  %1061 = vmatpush1.bf16.msra.mxu0 0
  %1062 = vmatprep.subr.bf16.mxu0 0
  %1063 = vmatpush1.bf16.msra.mxu0 0
  %1064 = vmatprep.mubr.bf16.mxu0 0
  %1065 = vmatmul.mubr.bf16.gmra.mrb[0].mxu0 %v1027
  %v1066 = vpop.f32.mrb[0].mxu0
  %v1067 = vadd.f32 0.0, %v1066
  %v1068 = vpop.f32.mrb[0].mxu0
  %v1069 = vpop.f32.mrb[0].mxu0
  %v1070 = vpop.f32.mrb[0].mxu0
  %1071 = vdwg.mxu0
  %v1072 = vpack.c.bf16 %v1067, %v1067
  %v1074 = vsel %vm177, %v1072, 0
  %1076 = vmatprep.subr.bf16.mxu0 0
  %1077 = vmatpush1.bf16.msra.mxu0 %v448
  %1078 = vmatprep.subr.bf16.mxu0 0
  %1079 = vmatpush1.bf16.msra.mxu0 0
  %1080 = vmatprep.subr.bf16.mxu0 0
  %1081 = vmatpush1.bf16.msra.mxu0 0
  %1082 = vmatprep.subr.bf16.mxu0 0
  %1083 = vmatpush1.bf16.msra.mxu0 0
  %1084 = vmatprep.subr.bf16.mxu0 0
  %1085 = vmatpush1.bf16.msra.mxu0 0
  %1086 = vmatprep.subr.bf16.mxu0 0
  %1087 = vmatpush1.bf16.msra.mxu0 0
  %1088 = vmatprep.subr.bf16.mxu0 0
  %1089 = vmatpush1.bf16.msra.mxu0 0
  %1090 = vmatprep.subr.bf16.mxu0 0
  %1091 = vmatpush1.bf16.msra.mxu0 0
  %1092 = vmatprep.subr.bf16.mxu0 0
  %1093 = vmatpush1.bf16.msra.mxu0 0
  %1094 = vmatprep.subr.bf16.mxu0 0
  %1095 = vmatpush1.bf16.msra.mxu0 0
  %1096 = vmatprep.subr.bf16.mxu0 0
  %1097 = vmatpush1.bf16.msra.mxu0 0
  %1098 = vmatprep.subr.bf16.mxu0 0
  %1099 = vmatpush1.bf16.msra.mxu0 0
  %1100 = vmatprep.subr.bf16.mxu0 0
  %1101 = vmatpush1.bf16.msra.mxu0 0
  %1102 = vmatprep.subr.bf16.mxu0 0
  %1103 = vmatpush1.bf16.msra.mxu0 0
  %1104 = vmatprep.subr.bf16.mxu0 0
  %1105 = vmatpush1.bf16.msra.mxu0 0
  %1106 = vmatprep.subr.bf16.mxu0 0
  %1107 = vmatpush1.bf16.msra.mxu0 0
  %1108 = vmatprep.mubr.bf16.mxu0 0
  %1109 = vmatmul.mubr.bf16.gmra.mrb[0].mxu0 %v1074
  %v1110 = vpop.f32.mrb[0].mxu0
  %v1111 = vadd.f32 0.0, %v1110
  %v1112 = vpop.f32.mrb[0].mxu0
  %v1113 = vpop.f32.mrb[0].mxu0
  %v1114 = vpop.f32.mrb[0].mxu0
  %1115 = vdwg.mxu0
  %v1116 = vadd.f32 %v961, %v1111
  %1117 = vrot.lane.b32.xlu0 %v808, 112
  %v1118 = vpop.permute.xlu0 %1117
  %1119 = vrot.lane.b32.xlu0 %v808, 80
  %v1120 = vpop.permute.xlu0 %1119
  %v1122 = vsel %vm177, %v1118, 0
  %v1125 = vsel %vm177, %v1120, 0
  %1127 = vmatprep.subr.bf16.mxu0 0
  %1128 = vmatpush1.bf16.xpose.msra.mxu0 %v1125
  %1129 = vmatprep.subr.bf16.mxu0 0
  %1130 = vmatpush1.bf16.xpose.msra.mxu0 0
  %1131 = vmatprep.subr.bf16.mxu0 0
  %1132 = vmatpush1.bf16.xpose.msra.mxu0 0
  %1133 = vmatprep.subr.bf16.mxu0 0
  %1134 = vmatpush1.bf16.xpose.msra.mxu0 0
  %1135 = vmatprep.subr.bf16.mxu0 0
  %1136 = vmatpush1.bf16.xpose.msra.mxu0 0
  %1137 = vmatprep.subr.bf16.mxu0 0
  %1138 = vmatpush1.bf16.xpose.msra.mxu0 0
  %1139 = vmatprep.subr.bf16.mxu0 0
  %1140 = vmatpush1.bf16.xpose.msra.mxu0 0
  %1141 = vmatprep.subr.bf16.mxu0 0
  %1142 = vmatpush1.bf16.xpose.msra.mxu0 0
  %1143 = vmatprep.subr.bf16.mxu0 0
  %1144 = vmatpush1.bf16.xpose.msra.mxu0 0
  %1145 = vmatprep.subr.bf16.mxu0 0
  %1146 = vmatpush1.bf16.xpose.msra.mxu0 0
  %1147 = vmatprep.subr.bf16.mxu0 0
  %1148 = vmatpush1.bf16.xpose.msra.mxu0 0
  %1149 = vmatprep.subr.bf16.mxu0 0
  %1150 = vmatpush1.bf16.xpose.msra.mxu0 0
  %1151 = vmatprep.subr.bf16.mxu0 0
  %1152 = vmatpush1.bf16.xpose.msra.mxu0 0
  %1153 = vmatprep.subr.bf16.mxu0 0
  %1154 = vmatpush1.bf16.xpose.msra.mxu0 0
  %1155 = vmatprep.subr.bf16.mxu0 0
  %1156 = vmatpush1.bf16.xpose.msra.mxu0 0
  %1157 = vmatprep.subr.bf16.mxu0 0
  %1158 = vmatpush1.bf16.xpose.msra.mxu0 0
  %1159 = vmatprep.mubr.bf16.mxu0 0
  %1160 = vmatmul.mubr.bf16.gmra.mrb[0].mxu0 %v1122
  %v1161 = vpop.f32.mrb[0].mxu0
  %v1162 = vadd.f32 0.0, %v1161
  %v1163 = vpop.f32.mrb[0].mxu0
  %v1164 = vpop.f32.mrb[0].mxu0
  %v1165 = vpop.f32.mrb[0].mxu0
  %1166 = vdwg.mxu0
  %v1167 = vsel %vm177, %v1162, -inf
  %1168 = vmax.xlane.f32.xlu0 %v1167
  %v1169 = vpop.xlane.xlu0 %1168
  %v1170 = vsub.f32 %v1162, %v1169
  %v1171 = vmul.f32 %v1170, 1.442695
  %v1172 = vpow.pop %v1171
  %v1173 = vsel %vm177, %v1172, 0.0
  %1174 = vadd.xlane.f32.xlu0 %v1173
  %v1175 = vpop.xlane.xlu0 %1174
  %v1176 = vrcp.pop %v1175
  %v1177 = vmul.f32 %v1172, %v1176
  %v1178 = vpack.c.bf16 %v1177, %v1177
  %1179 = vrot.lane.b32.xlu0 %v808, 48
  %v1180 = vpop.permute.xlu0 %1179
  %v1182 = vsel %vm177, %v1178, 0
  %v1185 = vsel %vm241, %v1180, 0
  %1187 = vmatprep.subr.bf16.mxu0 0
  %1188 = vmatpush1.bf16.msra.mxu0 %v1185
  %1189 = vmatprep.subr.bf16.mxu0 0
  %1190 = vmatpush1.bf16.msra.mxu0 0
  %1191 = vmatprep.subr.bf16.mxu0 0
  %1192 = vmatpush1.bf16.msra.mxu0 0
  %1193 = vmatprep.subr.bf16.mxu0 0
  %1194 = vmatpush1.bf16.msra.mxu0 0
  %1195 = vmatprep.subr.bf16.mxu0 0
  %1196 = vmatpush1.bf16.msra.mxu0 0
  %1197 = vmatprep.subr.bf16.mxu0 0
  %1198 = vmatpush1.bf16.msra.mxu0 0
  %1199 = vmatprep.subr.bf16.mxu0 0
  %1200 = vmatpush1.bf16.msra.mxu0 0
  %1201 = vmatprep.subr.bf16.mxu0 0
  %1202 = vmatpush1.bf16.msra.mxu0 0
  %1203 = vmatprep.subr.bf16.mxu0 0
  %1204 = vmatpush1.bf16.msra.mxu0 0
  %1205 = vmatprep.subr.bf16.mxu0 0
  %1206 = vmatpush1.bf16.msra.mxu0 0
  %1207 = vmatprep.subr.bf16.mxu0 0
  %1208 = vmatpush1.bf16.msra.mxu0 0
  %1209 = vmatprep.subr.bf16.mxu0 0
  %1210 = vmatpush1.bf16.msra.mxu0 0
  %1211 = vmatprep.subr.bf16.mxu0 0
  %1212 = vmatpush1.bf16.msra.mxu0 0
  %1213 = vmatprep.subr.bf16.mxu0 0
  %1214 = vmatpush1.bf16.msra.mxu0 0
  %1215 = vmatprep.subr.bf16.mxu0 0
  %1216 = vmatpush1.bf16.msra.mxu0 0
  %1217 = vmatprep.subr.bf16.mxu0 0
  %1218 = vmatpush1.bf16.msra.mxu0 0
  %1219 = vmatprep.mubr.bf16.mxu0 0
  %1220 = vmatmul.mubr.bf16.gmra.mrb[0].mxu0 %v1182
  %v1221 = vpop.f32.mrb[0].mxu0
  %v1222 = vadd.f32 0.0, %v1221
  %v1223 = vpop.f32.mrb[0].mxu0
  %v1224 = vpop.f32.mrb[0].mxu0
  %v1225 = vpop.f32.mrb[0].mxu0
  %1226 = vdwg.mxu0
  %v1227 = vpack.c.bf16 %v1222, %v1222
  %v1229 = vsel %vm177, %v1227, 0
  %1231 = vmatprep.subr.bf16.mxu0 0
  %1232 = vmatpush1.bf16.msra.mxu0 %v606
  %1233 = vmatprep.subr.bf16.mxu0 0
  %1234 = vmatpush1.bf16.msra.mxu0 0
  %1235 = vmatprep.subr.bf16.mxu0 0
  %1236 = vmatpush1.bf16.msra.mxu0 0
  %1237 = vmatprep.subr.bf16.mxu0 0
  %1238 = vmatpush1.bf16.msra.mxu0 0
  %1239 = vmatprep.subr.bf16.mxu0 0
  %1240 = vmatpush1.bf16.msra.mxu0 0
  %1241 = vmatprep.subr.bf16.mxu0 0
  %1242 = vmatpush1.bf16.msra.mxu0 0
  %1243 = vmatprep.subr.bf16.mxu0 0
  %1244 = vmatpush1.bf16.msra.mxu0 0
  %1245 = vmatprep.subr.bf16.mxu0 0
  %1246 = vmatpush1.bf16.msra.mxu0 0
  %1247 = vmatprep.subr.bf16.mxu0 0
  %1248 = vmatpush1.bf16.msra.mxu0 0
  %1249 = vmatprep.subr.bf16.mxu0 0
  %1250 = vmatpush1.bf16.msra.mxu0 0
  %1251 = vmatprep.subr.bf16.mxu0 0
  %1252 = vmatpush1.bf16.msra.mxu0 0
  %1253 = vmatprep.subr.bf16.mxu0 0
  %1254 = vmatpush1.bf16.msra.mxu0 0
  %1255 = vmatprep.subr.bf16.mxu0 0
  %1256 = vmatpush1.bf16.msra.mxu0 0
  %1257 = vmatprep.subr.bf16.mxu0 0
  %1258 = vmatpush1.bf16.msra.mxu0 0
  %1259 = vmatprep.subr.bf16.mxu0 0
  %1260 = vmatpush1.bf16.msra.mxu0 0
  %1261 = vmatprep.subr.bf16.mxu0 0
  %1262 = vmatpush1.bf16.msra.mxu0 0
  %1263 = vmatprep.mubr.bf16.mxu0 0
  %1264 = vmatmul.mubr.bf16.gmra.mrb[0].mxu0 %v1229
  %v1265 = vpop.f32.mrb[0].mxu0
  %v1266 = vadd.f32 0.0, %v1265
  %v1267 = vpop.f32.mrb[0].mxu0
  %v1268 = vpop.f32.mrb[0].mxu0
  %v1269 = vpop.f32.mrb[0].mxu0
  %1270 = vdwg.mxu0
  %v1271 = vadd.f32 %v1116, %v1266
  %1272 = vrot.lane.b32.xlu0 %v808, 104
  %v1273 = vpop.permute.xlu0 %1272
  %1274 = vrot.lane.b32.xlu0 %v808, 72
  %v1275 = vpop.permute.xlu0 %1274
  %v1277 = vsel %vm177, %v1273, 0
  %v1280 = vsel %vm177, %v1275, 0
  %1282 = vmatprep.subr.bf16.mxu0 0
  %1283 = vmatpush1.bf16.xpose.msra.mxu0 %v1280
  %1284 = vmatprep.subr.bf16.mxu0 0
  %1285 = vmatpush1.bf16.xpose.msra.mxu0 0
  %1286 = vmatprep.subr.bf16.mxu0 0
  %1287 = vmatpush1.bf16.xpose.msra.mxu0 0
  %1288 = vmatprep.subr.bf16.mxu0 0
  %1289 = vmatpush1.bf16.xpose.msra.mxu0 0
  %1290 = vmatprep.subr.bf16.mxu0 0
  %1291 = vmatpush1.bf16.xpose.msra.mxu0 0
  %1292 = vmatprep.subr.bf16.mxu0 0
  %1293 = vmatpush1.bf16.xpose.msra.mxu0 0
  %1294 = vmatprep.subr.bf16.mxu0 0
  %1295 = vmatpush1.bf16.xpose.msra.mxu0 0
  %1296 = vmatprep.subr.bf16.mxu0 0
  %1297 = vmatpush1.bf16.xpose.msra.mxu0 0
  %1298 = vmatprep.subr.bf16.mxu0 0
  %1299 = vmatpush1.bf16.xpose.msra.mxu0 0
  %1300 = vmatprep.subr.bf16.mxu0 0
  %1301 = vmatpush1.bf16.xpose.msra.mxu0 0
  %1302 = vmatprep.subr.bf16.mxu0 0
  %1303 = vmatpush1.bf16.xpose.msra.mxu0 0
  %1304 = vmatprep.subr.bf16.mxu0 0
  %1305 = vmatpush1.bf16.xpose.msra.mxu0 0
  %1306 = vmatprep.subr.bf16.mxu0 0
  %1307 = vmatpush1.bf16.xpose.msra.mxu0 0
  %1308 = vmatprep.subr.bf16.mxu0 0
  %1309 = vmatpush1.bf16.xpose.msra.mxu0 0
  %1310 = vmatprep.subr.bf16.mxu0 0
  %1311 = vmatpush1.bf16.xpose.msra.mxu0 0
  %1312 = vmatprep.subr.bf16.mxu0 0
  %1313 = vmatpush1.bf16.xpose.msra.mxu0 0
  %1314 = vmatprep.mubr.bf16.mxu0 0
  %1315 = vmatmul.mubr.bf16.gmra.mrb[0].mxu0 %v1277
  %v1316 = vpop.f32.mrb[0].mxu0
  %v1317 = vadd.f32 0.0, %v1316
  %v1318 = vpop.f32.mrb[0].mxu0
  %v1319 = vpop.f32.mrb[0].mxu0
  %v1320 = vpop.f32.mrb[0].mxu0
  %1321 = vdwg.mxu0
  %v1322 = vsel %vm177, %v1317, -inf
  %1323 = vmax.xlane.f32.xlu0 %v1322
  %v1324 = vpop.xlane.xlu0 %1323
  %v1325 = vsub.f32 %v1317, %v1324
  %v1326 = vmul.f32 %v1325, 1.442695
  %v1327 = vpow.pop %v1326
  %v1328 = vsel %vm177, %v1327, 0.0
  %1329 = vadd.xlane.f32.xlu0 %v1328
  %v1330 = vpop.xlane.xlu0 %1329
  %v1331 = vrcp.pop %v1330
  %v1332 = vmul.f32 %v1327, %v1331
  %v1333 = vpack.c.bf16 %v1332, %v1332
  %1334 = vrot.lane.b32.xlu0 %v808, 40
  %v1335 = vpop.permute.xlu0 %1334
  %v1337 = vsel %vm177, %v1333, 0
  %v1340 = vsel %vm241, %v1335, 0
  %1342 = vmatprep.subr.bf16.mxu0 0
  %1343 = vmatpush1.bf16.msra.mxu0 %v1340
  %1344 = vmatprep.subr.bf16.mxu0 0
  %1345 = vmatpush1.bf16.msra.mxu0 0
  %1346 = vmatprep.subr.bf16.mxu0 0
  %1347 = vmatpush1.bf16.msra.mxu0 0
  %1348 = vmatprep.subr.bf16.mxu0 0
  %1349 = vmatpush1.bf16.msra.mxu0 0
  %1350 = vmatprep.subr.bf16.mxu0 0
  %1351 = vmatpush1.bf16.msra.mxu0 0
  %1352 = vmatprep.subr.bf16.mxu0 0
  %1353 = vmatpush1.bf16.msra.mxu0 0
  %1354 = vmatprep.subr.bf16.mxu0 0
  %1355 = vmatpush1.bf16.msra.mxu0 0
  %1356 = vmatprep.subr.bf16.mxu0 0
  %1357 = vmatpush1.bf16.msra.mxu0 0
  %1358 = vmatprep.subr.bf16.mxu0 0
  %1359 = vmatpush1.bf16.msra.mxu0 0
  %1360 = vmatprep.subr.bf16.mxu0 0
  %1361 = vmatpush1.bf16.msra.mxu0 0
  %1362 = vmatprep.subr.bf16.mxu0 0
  %1363 = vmatpush1.bf16.msra.mxu0 0
  %1364 = vmatprep.subr.bf16.mxu0 0
  %1365 = vmatpush1.bf16.msra.mxu0 0
  %1366 = vmatprep.subr.bf16.mxu0 0
  %1367 = vmatpush1.bf16.msra.mxu0 0
  %1368 = vmatprep.subr.bf16.mxu0 0
  %1369 = vmatpush1.bf16.msra.mxu0 0
  %1370 = vmatprep.subr.bf16.mxu0 0
  %1371 = vmatpush1.bf16.msra.mxu0 0
  %1372 = vmatprep.subr.bf16.mxu0 0
  %1373 = vmatpush1.bf16.msra.mxu0 0
  %1374 = vmatprep.mubr.bf16.mxu0 0
  %1375 = vmatmul.mubr.bf16.gmra.mrb[0].mxu0 %v1337
  %v1376 = vpop.f32.mrb[0].mxu0
  %v1377 = vadd.f32 0.0, %v1376
  %v1378 = vpop.f32.mrb[0].mxu0
  %v1379 = vpop.f32.mrb[0].mxu0
  %v1380 = vpop.f32.mrb[0].mxu0
  %1381 = vdwg.mxu0
  %v1382 = vpack.c.bf16 %v1377, %v1377
  %v1384 = vsel %vm177, %v1382, 0
  %1386 = vmatprep.subr.bf16.mxu0 0
  %1387 = vmatpush1.bf16.msra.mxu0 %v764
  %1388 = vmatprep.subr.bf16.mxu0 0
  %1389 = vmatpush1.bf16.msra.mxu0 0
  %1390 = vmatprep.subr.bf16.mxu0 0
  %1391 = vmatpush1.bf16.msra.mxu0 0
  %1392 = vmatprep.subr.bf16.mxu0 0
  %1393 = vmatpush1.bf16.msra.mxu0 0
  %1394 = vmatprep.subr.bf16.mxu0 0
  %1395 = vmatpush1.bf16.msra.mxu0 0
  %1396 = vmatprep.subr.bf16.mxu0 0
  %1397 = vmatpush1.bf16.msra.mxu0 0
  %1398 = vmatprep.subr.bf16.mxu0 0
  %1399 = vmatpush1.bf16.msra.mxu0 0
  %1400 = vmatprep.subr.bf16.mxu0 0
  %1401 = vmatpush1.bf16.msra.mxu0 0
  %1402 = vmatprep.subr.bf16.mxu0 0
  %1403 = vmatpush1.bf16.msra.mxu0 0
  %1404 = vmatprep.subr.bf16.mxu0 0
  %1405 = vmatpush1.bf16.msra.mxu0 0
  %1406 = vmatprep.subr.bf16.mxu0 0
  %1407 = vmatpush1.bf16.msra.mxu0 0
  %1408 = vmatprep.subr.bf16.mxu0 0
  %1409 = vmatpush1.bf16.msra.mxu0 0
  %1410 = vmatprep.subr.bf16.mxu0 0
  %1411 = vmatpush1.bf16.msra.mxu0 0
  %1412 = vmatprep.subr.bf16.mxu0 0
  %1413 = vmatpush1.bf16.msra.mxu0 0
  %1414 = vmatprep.subr.bf16.mxu0 0
  %1415 = vmatpush1.bf16.msra.mxu0 0
  %1416 = vmatprep.subr.bf16.mxu0 0
  %1417 = vmatpush1.bf16.msra.mxu0 0
  %1418 = vmatprep.mubr.bf16.mxu0 0
  %1419 = vmatmul.mubr.bf16.gmra.mrb[0].mxu0 %v1384
  %v1420 = vpop.f32.mrb[0].mxu0
  %v1421 = vadd.f32 0.0, %v1420
  %v1422 = vpop.f32.mrb[0].mxu0
  %v1423 = vpop.f32.mrb[0].mxu0
  %v1424 = vpop.f32.mrb[0].mxu0
  %1425 = vdwg.mxu0
  %v1426 = vadd.f32 %v1271, %v1421
  %v1427 = vld [vmem:[%s7] sm:$0x1]
  %v1428 = vld [vmem:[%s8] sm:$0x1]
  %v1429 = vsel %vm49, %v806, 0.0
  %1430 = vadd.xlane.f32.xlu0 %v1429
  %v1431 = vpop.xlane.xlu0 %1430
  %v1432 = vsel %vm49, %v1426, 0.0
  %1433 = vadd.xlane.f32.xlu0 %v1432
  %v1434 = vpop.xlane.xlu0 %1433
  %v1435 = vmul.f32 %v1431, %v56
  %v1436 = vmul.f32 %v1434, %v56
  %v1437 = vsub.f32 %v806, %v1435
  %v1438 = vsub.f32 %v1426, %v1436
  %v1439 = vmul.f32 %v1437, %v1437
  %v1440 = vmul.f32 %v1438, %v1438
  %v1441 = vsel %vm49, %v1439, 0.0
  %1442 = vadd.xlane.f32.xlu0 %v1441
  %v1443 = vpop.xlane.xlu0 %1442
  %v1444 = vsel %vm49, %v1440, 0.0
  %1445 = vadd.xlane.f32.xlu0 %v1444
  %v1446 = vpop.xlane.xlu0 %1445
  %v1447 = vmul.f32 %v1443, %v56
  %v1448 = vmul.f32 %v1446, %v56
  %v1449 = vadd.f32 %v1447, 1e-05
  %v1450 = vadd.f32 %v1448, 1e-05
  %v1451 = vrsqrt.pop %v1449
  %v1452 = vrsqrt.pop %v1450
  %v1453 = vmul.f32 %v1437, %v1451
  %v1454 = vmul.f32 %v1438, %v1452
  %v1456 = vlaneseq
  %v1457 = vshrl.u32 %v1456, 7
  %v1458 = vsub.s32 0, %v1457
  %v1459 = vrot.slane %v1427, %v1458
  %v1461 = vmul.f32 %v1453, %v1459
  %v1462 = vmul.f32 %v1454, %v1459
  %v1464 = vlaneseq
  %v1465 = vshrl.u32 %v1464, 7
  %v1466 = vsub.s32 0, %v1465
  %v1467 = vrot.slane %v1428, %v1466
  %v1469 = vadd.f32 %v1461, %v1467
  %v1470 = vadd.f32 %v1462, %v1467
  %v1471 = vpack.c.bf16 %v1470, %v1469
  %v1472 = vld [vmem:[%s9] sm:$0xf]
  %v1473 = vld [vmem:[%s9 + $0x4] sm:$0xf]
  %v1474 = vld [vmem:[%s9 + $0x8] sm:$0xf]
  %v1475 = vld [vmem:[%s9 + $0xc] sm:$0xf]
  %v1476 = vld [vmem:[%s10] sm:$0x1]
  %v1478 = vlaneseq
  %v1479 = vshrl.u32 %v1478, 7
  %v1480 = vsub.s32 0, %v1479
  %v1481 = vrot.slane %v1476, %v1480
  %v1487 = vunpack.c.l.b16 %v1472
  %v1488 = vunpack.c.l.b16 %v1473
  %v1489 = vunpack.c.l.b16 %v1474
  %v1490 = vunpack.c.l.b16 %v1475
  %v1491 = vpack.c.b16 %v1488, %v1487
  %v1492 = vpack.c.b16 %v1490, %v1489
  %v1496 = vsel %vm49, %v1471, 0
  %1498 = vmatprep.subr.bf16.mxu0 0
  %1499 = vmatpush1.bf16.msra.mxu0 %v1491
  %1500 = vmatprep.subr.bf16.mxu0 0
  %1501 = vmatpush1.bf16.msra.mxu0 %v1492
  %1502 = vmatprep.subr.bf16.mxu0 0
  %1503 = vmatpush1.bf16.msra.mxu0 0
  %1504 = vmatprep.subr.bf16.mxu0 0
  %1505 = vmatpush1.bf16.msra.mxu0 0
  %1506 = vmatprep.subr.bf16.mxu0 0
  %1507 = vmatpush1.bf16.msra.mxu0 0
  %1508 = vmatprep.subr.bf16.mxu0 0
  %1509 = vmatpush1.bf16.msra.mxu0 0
  %1510 = vmatprep.subr.bf16.mxu0 0
  %1511 = vmatpush1.bf16.msra.mxu0 0
  %1512 = vmatprep.subr.bf16.mxu0 0
  %1513 = vmatpush1.bf16.msra.mxu0 0
  %1514 = vmatprep.subr.bf16.mxu0 0
  %1515 = vmatpush1.bf16.msra.mxu0 0
  %1516 = vmatprep.subr.bf16.mxu0 0
  %1517 = vmatpush1.bf16.msra.mxu0 0
  %1518 = vmatprep.subr.bf16.mxu0 0
  %1519 = vmatpush1.bf16.msra.mxu0 0
  %1520 = vmatprep.subr.bf16.mxu0 0
  %1521 = vmatpush1.bf16.msra.mxu0 0
  %1522 = vmatprep.subr.bf16.mxu0 0
  %1523 = vmatpush1.bf16.msra.mxu0 0
  %1524 = vmatprep.subr.bf16.mxu0 0
  %1525 = vmatpush1.bf16.msra.mxu0 0
  %1526 = vmatprep.subr.bf16.mxu0 0
  %1527 = vmatpush1.bf16.msra.mxu0 0
  %1528 = vmatprep.subr.bf16.mxu0 0
  %1529 = vmatpush1.bf16.msra.mxu0 0
  %1530 = vmatprep.mubr.bf16.mxu0 0
  %1531 = vmatmul.mubr.bf16.gmra.mrb[0].mxu0 %v1496
  %v1532 = vpop.f32.mrb[0].mxu0
  %v1533 = vadd.f32 %v1481, %v1532
  %v1534 = vpop.f32.mrb[0].mxu0
  %v1535 = vpop.f32.mrb[0].mxu0
  %v1536 = vadd.f32 %v1481, %v1535
  %v1537 = vpop.f32.mrb[0].mxu0
  %1538 = vdwg.mxu0
  %v1539 = vmul.f32 %v1533, 0.5
  %v1540 = vmul.f32 %v1536, 0.5
  %v1541 = vmul.f32 %v1533, 0.70710677
  %v1542 = vmul.f32 %v1536, 0.70710677
  %v1543 = vand.u32 2147483647, %v1541
  %v1544 = vand.u32 2147483647, %v1542
  %v1545 = vmul.f32 %v1543, 0.3275911
  %v1546 = vmul.f32 %v1544, 0.3275911
  %v1547 = vadd.f32 %v1545, 1.0
  %v1548 = vadd.f32 %v1546, 1.0
  %v1549 = vrcp.pop %v1547
  %v1550 = vmul.f32 1.0, %v1549
  %v1551 = vrcp.pop %v1548
  %v1552 = vmul.f32 1.0, %v1551
  %v1553 = vmul.f32 %v1550, 1.0614054
  %v1554 = vmul.f32 %v1552, 1.0614054
  %v1555 = vadd.f32 %v1553, -1.4531521
  %v1556 = vadd.f32 %v1554, -1.4531521
  %v1557 = vmul.f32 %v1550, %v1555
  %v1558 = vmul.f32 %v1552, %v1556
  %v1559 = vadd.f32 %v1557, 1.4214138
  %v1560 = vadd.f32 %v1558, 1.4214138
  %v1561 = vmul.f32 %v1550, %v1559
  %v1562 = vmul.f32 %v1552, %v1560
  %v1563 = vadd.f32 %v1561, -0.28449672
  %v1564 = vadd.f32 %v1562, -0.28449672
  %v1565 = vmul.f32 %v1550, %v1563
  %v1566 = vmul.f32 %v1552, %v1564
  %v1567 = vadd.f32 %v1565, 0.2548296
  %v1568 = vadd.f32 %v1566, 0.2548296
  %v1569 = vmul.f32 %v1550, %v1567
  %v1570 = vmul.f32 %v1552, %v1568
  %v1571 = vsub.f32 0.0, %v1543
  %v1572 = vsub.f32 0.0, %v1544
  %v1573 = vmul.f32 %v1571, %v1543
  %v1574 = vmul.f32 %v1572, %v1544
  %v1575 = vmul.f32 %v1573, 1.442695
  %v1576 = vpow.pop %v1575
  %v1577 = vmul.f32 %v1574, 1.442695
  %v1578 = vpow.pop %v1577
  %v1579 = vmul.f32 %v1569, %v1576
  %v1580 = vmul.f32 %v1570, %v1578
  %v1581 = vsub.f32 1.0, %v1579
  %v1582 = vsub.f32 1.0, %v1580
  %vm1583 = vcmp.ge.f32.partialorder %v1541, 0.0
  %vm1584 = vcmp.ge.f32.partialorder %v1542, 0.0
  %v1585 = vsub.f32 0.0, %v1581
  %v1586 = vsub.f32 0.0, %v1582
  %v1587 = vsel %vm1583, %v1581, %v1585
  %v1588 = vsel %vm1584, %v1582, %v1586
  %v1589 = vadd.f32 %v1587, 1.0
  %v1590 = vadd.f32 %v1588, 1.0
  %v1591 = vmul.f32 %v1539, %v1589
  %v1592 = vmul.f32 %v1540, %v1590
  %v1593 = vpack.c.bf16 %v1592, %v1591
  %v1594 = vld [vmem:[%s11] sm:$0xf]
  %v1595 = vld [vmem:[%s11 + $0x4] sm:$0xf]
  %v1596 = vld [vmem:[%s11 + $0x8] sm:$0xf]
  %v1597 = vld [vmem:[%s11 + $0xc] sm:$0xf]
  %v1598 = vld [vmem:[%s11 + $0x10] sm:$0xf]
  %v1599 = vld [vmem:[%s11 + $0x14] sm:$0xf]
  %v1600 = vld [vmem:[%s11 + $0x18] sm:$0xf]
  %v1601 = vld [vmem:[%s11 + $0x1c] sm:$0xf]
  %v1602 = vld [vmem:[%s11 + $0x20] sm:$0xf]
  %v1603 = vld [vmem:[%s11 + $0x24] sm:$0xf]
  %v1604 = vld [vmem:[%s11 + $0x28] sm:$0xf]
  %v1605 = vld [vmem:[%s11 + $0x2c] sm:$0xf]
  %v1606 = vld [vmem:[%s11 + $0x30] sm:$0xf]
  %v1607 = vld [vmem:[%s11 + $0x34] sm:$0xf]
  %v1608 = vld [vmem:[%s11 + $0x38] sm:$0xf]
  %v1609 = vld [vmem:[%s11 + $0x3c] sm:$0xf]
  %v1626 = vunpack.c.l.b16 %v1594
  %v1627 = vunpack.c.l.b16 %v1595
  %v1628 = vunpack.c.l.b16 %v1596
  %v1629 = vunpack.c.l.b16 %v1597
  %v1630 = vunpack.c.l.b16 %v1598
  %v1631 = vunpack.c.l.b16 %v1599
  %v1632 = vunpack.c.l.b16 %v1600
  %v1633 = vunpack.c.l.b16 %v1601
  %v1634 = vunpack.c.l.b16 %v1602
  %v1635 = vunpack.c.l.b16 %v1603
  %v1636 = vunpack.c.l.b16 %v1604
  %v1637 = vunpack.c.l.b16 %v1605
  %v1638 = vunpack.c.l.b16 %v1606
  %v1639 = vunpack.c.l.b16 %v1607
  %v1640 = vunpack.c.l.b16 %v1608
  %v1641 = vunpack.c.l.b16 %v1609
  %v1642 = vpack.c.b16 %v1627, %v1626
  %v1643 = vpack.c.b16 %v1629, %v1628
  %v1644 = vpack.c.b16 %v1631, %v1630
  %v1645 = vpack.c.b16 %v1633, %v1632
  %v1646 = vpack.c.b16 %v1635, %v1634
  %v1647 = vpack.c.b16 %v1637, %v1636
  %v1648 = vpack.c.b16 %v1639, %v1638
  %v1649 = vpack.c.b16 %v1641, %v1640
  %1658 = vmatprep.subr.bf16.mxu0 0
  %1659 = vmatpush1.bf16.msra.mxu0 %v1642
  %1660 = vmatprep.subr.bf16.mxu0 0
  %1661 = vmatpush1.bf16.msra.mxu0 %v1643
  %1662 = vmatprep.subr.bf16.mxu0 0
  %1663 = vmatpush1.bf16.msra.mxu0 %v1644
  %1664 = vmatprep.subr.bf16.mxu0 0
  %1665 = vmatpush1.bf16.msra.mxu0 %v1645
  %1666 = vmatprep.subr.bf16.mxu0 0
  %1667 = vmatpush1.bf16.msra.mxu0 %v1646
  %1668 = vmatprep.subr.bf16.mxu0 0
  %1669 = vmatpush1.bf16.msra.mxu0 %v1647
  %1670 = vmatprep.subr.bf16.mxu0 0
  %1671 = vmatpush1.bf16.msra.mxu0 %v1648
  %1672 = vmatprep.subr.bf16.mxu0 0
  %1673 = vmatpush1.bf16.msra.mxu0 %v1649
  %1674 = vmatprep.subr.bf16.mxu0 0
  %1675 = vmatpush1.bf16.msra.mxu0 0
  %1676 = vmatprep.subr.bf16.mxu0 0
  %1677 = vmatpush1.bf16.msra.mxu0 0
  %1678 = vmatprep.subr.bf16.mxu0 0
  %1679 = vmatpush1.bf16.msra.mxu0 0
  %1680 = vmatprep.subr.bf16.mxu0 0
  %1681 = vmatpush1.bf16.msra.mxu0 0
  %1682 = vmatprep.subr.bf16.mxu0 0
  %1683 = vmatpush1.bf16.msra.mxu0 0
  %1684 = vmatprep.subr.bf16.mxu0 0
  %1685 = vmatpush1.bf16.msra.mxu0 0
  %1686 = vmatprep.subr.bf16.mxu0 0
  %1687 = vmatpush1.bf16.msra.mxu0 0
  %1688 = vmatprep.subr.bf16.mxu0 0
  %1689 = vmatpush1.bf16.msra.mxu0 0
  %1690 = vmatprep.mubr.bf16.mxu0 0
  %1691 = vmatmul.mubr.bf16.gmra.mrb[0].mxu0 %v1593
  %v1692 = vpop.f32.mrb[0].mxu0
  %v1693 = vadd.f32 0.0, %v1692
  %v1694 = vpop.f32.mrb[0].mxu0
  %v1695 = vpop.f32.mrb[0].mxu0
  %v1696 = vadd.f32 0.0, %v1695
  %v1697 = vpop.f32.mrb[0].mxu0
  %1698 = vdwg.mxu0
  %v1699 = vadd.f32 %v806, %v1693
  %v1700 = vadd.f32 %v1426, %v1696
  %v1701 = vld [vmem:[%s12] sm:$0x1]
  %v1703 = vlaneseq
  %v1704 = vshrl.u32 %v1703, 7
  %v1705 = vsub.s32 0, %v1704
  %v1706 = vrot.slane %v1701, %v1705
  %v1708 = vadd.f32 %v1699, %v1706
  %v1709 = vadd.f32 %v1700, %v1706
  %1710 = vst.msk [vmem:[%s13] sm:$0xff] %vm49, %v1708
  %1711 = vst.msk [vmem:[%s13 + $0x8] sm:$0xff] %vm49, %v1709
  // Predicated region
  $region54: #{whisper_audio_encoder.7} parent=0 // pred_check
    _
  $region55: #{whisper_audio_encoder.7} parent=0 // pred_check_branch
    %1713 = sbr.rel (0) target = $region57
  $region56: #{whisper_audio_encoder.7} parent=0 // pred_region
    _
  $region57: #{whisper_audio_encoder.7} parent=0 // pred_fallthru
    _
  // Predicated region
  $region58: #{whisper_audio_encoder.7} parent=0 // pred_check
    _
  $region59: #{whisper_audio_encoder.7} parent=0 // pred_check_branch
    %1715 = sbr.rel (0) target = $region61
  $region60: #{whisper_audio_encoder.7} parent=0 // pred_region
    _
  $region61: #{whisper_audio_encoder.7} parent=0 // pred_fallthru
    _

// kernel: whisper_audio_encoder.6
$region0: #{whisper_audio_encoder.6}
  #allocation0 [shape = 'u32[]', space=smem, size = 0x4, offset = 0x4, fixed_abs, tag = 'smem constant byte address 0x4 - core index']
  #allocation1 [shape = 'u32[144,128]{1,0:T(1,128)}', space=vmem, size = 0x12000, scoped, tag = 'internal scratch']
  %s0 = inlined_call_operand.vmem [shape: f32[32,16], index: 0, kind: input, shape index: {}]
  %s1 = inlined_call_operand.vmem [shape: bf16[3,16,32], index: 1, kind: input, shape index: {}]
  %s2 = inlined_call_operand.vmem [shape: f32[1,32], index: 2, kind: input, shape index: {}]
  %s3 = inlined_call_operand.vmem [shape: bf16[3,32,32], index: 3, kind: input, shape index: {}]
  %s4 = inlined_call_operand.vmem [shape: f32[1,32], index: 4, kind: input, shape index: {}]
  %s5 = inlined_call_operand.vmem [shape: f32[8,32], index: 5, kind: input, shape index: {}]
  %s6 = inlined_call_operand.vmem [shape: f32[16,32], index: 6, kind: output, shape index: {}]
  %s7 = sld [smem:[#allocation0]]
  $region34: #{whisper_audio_encoder.6} parent=0
    _
  %s9 = ssub.s32 1, %s7
  %s10 = scalar_select 0, %s9, %s7
  // Predicated region
  $region2: #{whisper_audio_encoder.6} parent=0 // pred_check
    _
  $region3: #{whisper_audio_encoder.6} parent=0 // pred_check_branch
    %12 = sbr.rel (0) target = $region5
  $region4: #{whisper_audio_encoder.6} parent=0 // pred_region
    _
  $region5: #{whisper_audio_encoder.6} parent=0 // pred_fallthru
    _
  // Predicated region
  $region6: #{whisper_audio_encoder.6} parent=0 // pred_check
    _
  $region7: #{whisper_audio_encoder.6} parent=0 // pred_check_branch
    %14 = sbr.rel (0) target = $region9
  $region8: #{whisper_audio_encoder.6} parent=0 // pred_region
    _
  $region9: #{whisper_audio_encoder.6} parent=0 // pred_fallthru
    _
  // Predicated region
  $region10: #{whisper_audio_encoder.6} parent=0 // pred_check
    _
  $region11: #{whisper_audio_encoder.6} parent=0 // pred_check_branch
    %16 = sbr.rel (0) target = $region13
  $region12: #{whisper_audio_encoder.6} parent=0 // pred_region
    _
  $region13: #{whisper_audio_encoder.6} parent=0 // pred_fallthru
    _
  // Predicated region
  $region14: #{whisper_audio_encoder.6} parent=0 // pred_check
    _
  $region15: #{whisper_audio_encoder.6} parent=0 // pred_check_branch
    %18 = sbr.rel (0) target = $region17
  $region16: #{whisper_audio_encoder.6} parent=0 // pred_region
    _
  $region17: #{whisper_audio_encoder.6} parent=0 // pred_fallthru
    _
  // Predicated region
  $region18: #{whisper_audio_encoder.6} parent=0 // pred_check
    _
  $region19: #{whisper_audio_encoder.6} parent=0 // pred_check_branch
    %20 = sbr.rel (0) target = $region21
  $region20: #{whisper_audio_encoder.6} parent=0 // pred_region
    _
  $region21: #{whisper_audio_encoder.6} parent=0 // pred_fallthru
    _
  // Predicated region
  $region22: #{whisper_audio_encoder.6} parent=0 // pred_check
    _
  $region23: #{whisper_audio_encoder.6} parent=0 // pred_check_branch
    %22 = sbr.rel (0) target = $region25
  $region24: #{whisper_audio_encoder.6} parent=0 // pred_region
    _
  $region25: #{whisper_audio_encoder.6} parent=0 // pred_fallthru
    _
  %v24 = vld [vmem:[%s5] sm:$0xff]
  %v25 = vld [vmem:[%s2] sm:$0x1]
  %v26 = vld [vmem:[%s4] sm:$0x1]
  %v27 = vld [vmem:[%s1] sm:$0xf]
  %v28 = vld [vmem:[%s1 + $0x4] sm:$0xf]
  %s29 = scalar_lea.vmem %s1, 8
  %v30 = vld [vmem:[%s29] sm:$0xf]
  %v31 = vld [vmem:[%s29 + $0x4] sm:$0xf]
  %s32 = scalar_lea.vmem %s1, 16
  %v33 = vld [vmem:[%s32] sm:$0xf]
  %v34 = vld [vmem:[%s32 + $0x4] sm:$0xf]
  %v35 = vld [vmem:[%s3] sm:$0xf]
  %v36 = vld [vmem:[%s3 + $0x4] sm:$0xf]
  %v37 = vld [vmem:[%s3 + $0x8] sm:$0xf]
  %v38 = vld [vmem:[%s3 + $0xc] sm:$0xf]
  %s39 = scalar_lea.vmem %s3, 16
  %v40 = vld [vmem:[%s39] sm:$0xf]
  %v41 = vld [vmem:[%s39 + $0x4] sm:$0xf]
  %v42 = vld [vmem:[%s39 + $0x8] sm:$0xf]
  %v43 = vld [vmem:[%s39 + $0xc] sm:$0xf]
  %s44 = scalar_lea.vmem %s3, 32
  %v45 = vld [vmem:[%s44] sm:$0xf]
  %v46 = vld [vmem:[%s44 + $0x4] sm:$0xf]
  %v47 = vld [vmem:[%s44 + $0x8] sm:$0xf]
  %v48 = vld [vmem:[%s44 + $0xc] sm:$0xf]
  %v49 = vlaneseq
  %v50 = vshrl.u32 %v49, 7
  %v51 = vlaneseq
  %v52 = vand.u32 %v51, 127
  %v53 = vmul.u32 %v50, 2
  %v54 = vsub.s32 %v53, 1
  %vm55 = vcmp.eq.s32.totalorder %v52, %v54
  %v56 = vsel %vm55, 1.0, 0.0
  %v57 = vpack.c.bf16 %v56, %v56
  %vm58 = vcmp.eq.s32.totalorder %v52, %v53
  %v59 = vsel %vm58, 1.0, 0.0
  %v60 = vpack.c.bf16 %v59, %v59
  %v61 = vadd.s32 %v53, 1
  %vm62 = vcmp.eq.s32.totalorder %v52, %v61
  %v63 = vsel %vm62, 1.0, 0.0
  %v64 = vpack.c.bf16 %v63, %v63
  %v65 = vld [vmem:[%s0] sm:$0xff]
  %v66 = vld [vmem:[%s0 + $0x8] sm:$0xff]
  %v67 = vpack.c.bf16 %v66, %v65
  %v69 = vshrl.u32 %v67, 16
  %v71 = vrot.slane %v69, 7
  %v72 = vshll.u32 %v67, 16
  %v74 = vor.u32 %v71, %v72
  %vm76 = vcmask 1040384
  %vm77 = vsmask.f32 256
  %vm78 = vmand %vm76, %vm77
  %v79 = vsel %vm78, 0, %v74
  %v80 = vrot.slane %v72, 1
  %v81 = vor.u32 %v69, %v80
  %vm83 = vcmask 1047552
  %vm84 = vsmask.f32 7424
  %vm85 = vmand %vm83, %vm84
  %v86 = vsel %vm85, %v81, 0
  %v89 = vunpack.c.l.b16 %v30
  %v90 = vunpack.c.l.b16 %v31
  %v91 = vpack.c.b16 %v90, %v89
  %vm93 = vcmask 130048
  %v94 = vsel %vm93, %v67, 0
  %96 = vmatprep.subr.bf16.mxu0 0
  %97 = vmatpush1.bf16.msra.mxu0 %v91
  %98 = vmatprep.subr.bf16.mxu0 0
  %99 = vmatpush1.bf16.msra.mxu0 0
  %100 = vmatprep.subr.bf16.mxu0 0
  %101 = vmatpush1.bf16.msra.mxu0 0
  %102 = vmatprep.subr.bf16.mxu0 0
  %103 = vmatpush1.bf16.msra.mxu0 0
  %104 = vmatprep.subr.bf16.mxu0 0
  %105 = vmatpush1.bf16.msra.mxu0 0
  %106 = vmatprep.subr.bf16.mxu0 0
  %107 = vmatpush1.bf16.msra.mxu0 0
  %108 = vmatprep.subr.bf16.mxu0 0
  %109 = vmatpush1.bf16.msra.mxu0 0
  %110 = vmatprep.subr.bf16.mxu0 0
  %111 = vmatpush1.bf16.msra.mxu0 0
  %112 = vmatprep.subr.bf16.mxu0 0
  %113 = vmatpush1.bf16.msra.mxu0 0
  %114 = vmatprep.subr.bf16.mxu0 0
  %115 = vmatpush1.bf16.msra.mxu0 0
  %116 = vmatprep.subr.bf16.mxu0 0
  %117 = vmatpush1.bf16.msra.mxu0 0
  %118 = vmatprep.subr.bf16.mxu0 0
  %119 = vmatpush1.bf16.msra.mxu0 0
  %120 = vmatprep.subr.bf16.mxu0 0
  %121 = vmatpush1.bf16.msra.mxu0 0
  %122 = vmatprep.subr.bf16.mxu0 0
  %123 = vmatpush1.bf16.msra.mxu0 0
  %124 = vmatprep.subr.bf16.mxu0 0
  %125 = vmatpush1.bf16.msra.mxu0 0
  %126 = vmatprep.subr.bf16.mxu0 0
  %127 = vmatpush1.bf16.msra.mxu0 0
  %128 = vmatprep.mubr.bf16.mxu0 0
  %129 = vmatmul.mubr.bf16.gmra.mrb[0].mxu0 %v94
  %v130 = vpop.f32.mrb[0].mxu0
  %v131 = vadd.f32 0.0, %v130
  %v132 = vpop.f32.mrb[0].mxu0
  %v133 = vpop.f32.mrb[0].mxu0
  %v134 = vadd.f32 0.0, %v133
  %v135 = vpop.f32.mrb[0].mxu0
  %136 = vdwg.mxu0
  %v139 = vunpack.c.l.b16 %v27
  %v140 = vunpack.c.l.b16 %v28
  %v141 = vpack.c.b16 %v140, %v139
  %v144 = vsel %vm93, %v79, 0
  %146 = vmatprep.subr.bf16.mxu0 0
  %147 = vmatpush1.bf16.msra.mxu0 %v141
  %148 = vmatprep.subr.bf16.mxu0 0
  %149 = vmatpush1.bf16.msra.mxu0 0
  %150 = vmatprep.subr.bf16.mxu0 0
  %151 = vmatpush1.bf16.msra.mxu0 0
  %152 = vmatprep.subr.bf16.mxu0 0
  %153 = vmatpush1.bf16.msra.mxu0 0
  %154 = vmatprep.subr.bf16.mxu0 0
  %155 = vmatpush1.bf16.msra.mxu0 0
  %156 = vmatprep.subr.bf16.mxu0 0
  %157 = vmatpush1.bf16.msra.mxu0 0
  %158 = vmatprep.subr.bf16.mxu0 0
  %159 = vmatpush1.bf16.msra.mxu0 0
  %160 = vmatprep.subr.bf16.mxu0 0
  %161 = vmatpush1.bf16.msra.mxu0 0
  %162 = vmatprep.subr.bf16.mxu0 0
  %163 = vmatpush1.bf16.msra.mxu0 0
  %164 = vmatprep.subr.bf16.mxu0 0
  %165 = vmatpush1.bf16.msra.mxu0 0
  %166 = vmatprep.subr.bf16.mxu0 0
  %167 = vmatpush1.bf16.msra.mxu0 0
  %168 = vmatprep.subr.bf16.mxu0 0
  %169 = vmatpush1.bf16.msra.mxu0 0
  %170 = vmatprep.subr.bf16.mxu0 0
  %171 = vmatpush1.bf16.msra.mxu0 0
  %172 = vmatprep.subr.bf16.mxu0 0
  %173 = vmatpush1.bf16.msra.mxu0 0
  %174 = vmatprep.subr.bf16.mxu0 0
  %175 = vmatpush1.bf16.msra.mxu0 0
  %176 = vmatprep.subr.bf16.mxu0 0
  %177 = vmatpush1.bf16.msra.mxu0 0
  %178 = vmatprep.mubr.bf16.mxu0 0
  %179 = vmatmul.mubr.bf16.gmra.mrb[0].mxu0 %v144
  %v180 = vpop.f32.mrb[0].mxu0
  %v181 = vadd.f32 %v131, %v180
  %v182 = vpop.f32.mrb[0].mxu0
  %v183 = vpop.f32.mrb[0].mxu0
  %v184 = vadd.f32 %v134, %v183
  %v185 = vpop.f32.mrb[0].mxu0
  %186 = vdwg.mxu0
  %v189 = vunpack.c.l.b16 %v33
  %v190 = vunpack.c.l.b16 %v34
  %v191 = vpack.c.b16 %v190, %v189
  %v194 = vsel %vm93, %v86, 0
  %196 = vmatprep.subr.bf16.mxu0 0
  %197 = vmatpush1.bf16.msra.mxu0 %v191
  %198 = vmatprep.subr.bf16.mxu0 0
  %199 = vmatpush1.bf16.msra.mxu0 0
  %200 = vmatprep.subr.bf16.mxu0 0
  %201 = vmatpush1.bf16.msra.mxu0 0
  %202 = vmatprep.subr.bf16.mxu0 0
  %203 = vmatpush1.bf16.msra.mxu0 0
  %204 = vmatprep.subr.bf16.mxu0 0
  %205 = vmatpush1.bf16.msra.mxu0 0
  %206 = vmatprep.subr.bf16.mxu0 0
  %207 = vmatpush1.bf16.msra.mxu0 0
  %208 = vmatprep.subr.bf16.mxu0 0
  %209 = vmatpush1.bf16.msra.mxu0 0
  %210 = vmatprep.subr.bf16.mxu0 0
  %211 = vmatpush1.bf16.msra.mxu0 0
  %212 = vmatprep.subr.bf16.mxu0 0
  %213 = vmatpush1.bf16.msra.mxu0 0
  %214 = vmatprep.subr.bf16.mxu0 0
  %215 = vmatpush1.bf16.msra.mxu0 0
  %216 = vmatprep.subr.bf16.mxu0 0
  %217 = vmatpush1.bf16.msra.mxu0 0
  %218 = vmatprep.subr.bf16.mxu0 0
  %219 = vmatpush1.bf16.msra.mxu0 0
  %220 = vmatprep.subr.bf16.mxu0 0
  %221 = vmatpush1.bf16.msra.mxu0 0
  %222 = vmatprep.subr.bf16.mxu0 0
  %223 = vmatpush1.bf16.msra.mxu0 0
  %224 = vmatprep.subr.bf16.mxu0 0
  %225 = vmatpush1.bf16.msra.mxu0 0
  %226 = vmatprep.subr.bf16.mxu0 0
  %227 = vmatpush1.bf16.msra.mxu0 0
  %228 = vmatprep.mubr.bf16.mxu0 0
  %229 = vmatmul.mubr.bf16.gmra.mrb[0].mxu0 %v194
  %v230 = vpop.f32.mrb[0].mxu0
  %v231 = vadd.f32 0.0, %v230
  %v232 = vpop.f32.mrb[0].mxu0
  %v233 = vpop.f32.mrb[0].mxu0
  %v234 = vadd.f32 0.0, %v233
  %v235 = vpop.f32.mrb[0].mxu0
  %236 = vdwg.mxu0
  %v237 = vadd.f32 %v181, %v231
  %v238 = vadd.f32 %v184, %v234
  %v240 = vlaneseq
  %v241 = vshrl.u32 %v240, 7
  %v242 = vsub.s32 0, %v241
  %v243 = vrot.slane %v25, %v242
  %v245 = vadd.f32 %v237, %v243
  %v246 = vadd.f32 %v238, %v243
  %v247 = vmul.f32 %v245, 0.5
  %v248 = vmul.f32 %v246, 0.5
  %v249 = vmul.f32 %v245, 0.70710677
  %v250 = vmul.f32 %v246, 0.70710677
  %v251 = vand.u32 2147483647, %v249
  %v252 = vand.u32 2147483647, %v250
  %v253 = vmul.f32 %v251, 0.3275911
  %v254 = vmul.f32 %v252, 0.3275911
  %v255 = vadd.f32 %v253, 1.0
  %v256 = vadd.f32 %v254, 1.0
  %v257 = vrcp.pop %v255
  %v258 = vmul.f32 1.0, %v257
  %v259 = vrcp.pop %v256
  %v260 = vmul.f32 1.0, %v259
  %v261 = vmul.f32 %v258, 1.0614054
  %v262 = vmul.f32 %v260, 1.0614054
  %v263 = vadd.f32 %v261, -1.4531521
  %v264 = vadd.f32 %v262, -1.4531521
  %v265 = vmul.f32 %v258, %v263
  %v266 = vmul.f32 %v260, %v264
  %v267 = vadd.f32 %v265, 1.4214138
  %v268 = vadd.f32 %v266, 1.4214138
  %v269 = vmul.f32 %v258, %v267
  %v270 = vmul.f32 %v260, %v268
  %v271 = vadd.f32 %v269, -0.28449672
  %v272 = vadd.f32 %v270, -0.28449672
  %v273 = vmul.f32 %v258, %v271
  %v274 = vmul.f32 %v260, %v272
  %v275 = vadd.f32 %v273, 0.2548296
  %v276 = vadd.f32 %v274, 0.2548296
  %v277 = vmul.f32 %v258, %v275
  %v278 = vmul.f32 %v260, %v276
  %v279 = vsub.f32 0.0, %v251
  %v280 = vsub.f32 0.0, %v252
  %v281 = vmul.f32 %v279, %v251
  %v282 = vmul.f32 %v280, %v252
  %v283 = vmul.f32 %v281, 1.442695
  %v284 = vpow.pop %v283
  %v285 = vmul.f32 %v282, 1.442695
  %v286 = vpow.pop %v285
  %v287 = vmul.f32 %v277, %v284
  %v288 = vmul.f32 %v278, %v286
  %v289 = vsub.f32 1.0, %v287
  %v290 = vsub.f32 1.0, %v288
  %vm291 = vcmp.ge.f32.partialorder %v249, 0.0
  %vm292 = vcmp.ge.f32.partialorder %v250, 0.0
  %v293 = vsub.f32 0.0, %v289
  %v294 = vsub.f32 0.0, %v290
  %v295 = vsel %vm291, %v289, %v293
  %v296 = vsel %vm292, %v290, %v294
  %v297 = vadd.f32 %v295, 1.0
  %v298 = vadd.f32 %v296, 1.0
  %v299 = vmul.f32 %v247, %v297
  %v300 = vmul.f32 %v248, %v298
  %v301 = vpack.c.bf16 %v300, %v299
  %v303 = vsel %vm93, %v57, 0
  %305 = vmatprep.subr.bf16.mxu0 0
  %306 = vmatpush1.bf16.msra.mxu0 %v301
  %307 = vmatprep.subr.bf16.mxu0 0
  %308 = vmatpush1.bf16.msra.mxu0 0
  %309 = vmatprep.subr.bf16.mxu0 0
  %310 = vmatpush1.bf16.msra.mxu0 0
  %311 = vmatprep.subr.bf16.mxu0 0
  %312 = vmatpush1.bf16.msra.mxu0 0
  %313 = vmatprep.subr.bf16.mxu0 0
  %314 = vmatpush1.bf16.msra.mxu0 0
  %315 = vmatprep.subr.bf16.mxu0 0
  %316 = vmatpush1.bf16.msra.mxu0 0
  %317 = vmatprep.subr.bf16.mxu0 0
  %318 = vmatpush1.bf16.msra.mxu0 0
  %319 = vmatprep.subr.bf16.mxu0 0
  %320 = vmatpush1.bf16.msra.mxu0 0
  %321 = vmatprep.subr.bf16.mxu0 0
  %322 = vmatpush1.bf16.msra.mxu0 0
  %323 = vmatprep.subr.bf16.mxu0 0
  %324 = vmatpush1.bf16.msra.mxu0 0
  %325 = vmatprep.subr.bf16.mxu0 0
  %326 = vmatpush1.bf16.msra.mxu0 0
  %327 = vmatprep.subr.bf16.mxu0 0
  %328 = vmatpush1.bf16.msra.mxu0 0
  %329 = vmatprep.subr.bf16.mxu0 0
  %330 = vmatpush1.bf16.msra.mxu0 0
  %331 = vmatprep.subr.bf16.mxu0 0
  %332 = vmatpush1.bf16.msra.mxu0 0
  %333 = vmatprep.subr.bf16.mxu0 0
  %334 = vmatpush1.bf16.msra.mxu0 0
  %335 = vmatprep.subr.bf16.mxu0 0
  %336 = vmatpush1.bf16.msra.mxu0 0
  %337 = vmatprep.mubr.bf16.mxu0 0
  %338 = vmatmul.mubr.bf16.gmra.mrb[0].mxu0 %v303
  %v339 = vpop.f32.mrb[0].mxu0
  %v340 = vadd.f32 0.0, %v339
  %v341 = vpop.f32.mrb[0].mxu0
  %v342 = vpop.f32.mrb[0].mxu0
  %v343 = vpop.f32.mrb[0].mxu0
  %344 = vdwg.mxu0
  %v345 = vpack.c.bf16 %v340, %v340
  %v347 = vsel %vm93, %v60, 0
  %349 = vmatprep.subr.bf16.mxu0 0
  %350 = vmatpush1.bf16.msra.mxu0 %v301
  %351 = vmatprep.subr.bf16.mxu0 0
  %352 = vmatpush1.bf16.msra.mxu0 0
  %353 = vmatprep.subr.bf16.mxu0 0
  %354 = vmatpush1.bf16.msra.mxu0 0
  %355 = vmatprep.subr.bf16.mxu0 0
  %356 = vmatpush1.bf16.msra.mxu0 0
  %357 = vmatprep.subr.bf16.mxu0 0
  %358 = vmatpush1.bf16.msra.mxu0 0
  %359 = vmatprep.subr.bf16.mxu0 0
  %360 = vmatpush1.bf16.msra.mxu0 0
  %361 = vmatprep.subr.bf16.mxu0 0
  %362 = vmatpush1.bf16.msra.mxu0 0
  %363 = vmatprep.subr.bf16.mxu0 0
  %364 = vmatpush1.bf16.msra.mxu0 0
  %365 = vmatprep.subr.bf16.mxu0 0
  %366 = vmatpush1.bf16.msra.mxu0 0
  %367 = vmatprep.subr.bf16.mxu0 0
  %368 = vmatpush1.bf16.msra.mxu0 0
  %369 = vmatprep.subr.bf16.mxu0 0
  %370 = vmatpush1.bf16.msra.mxu0 0
  %371 = vmatprep.subr.bf16.mxu0 0
  %372 = vmatpush1.bf16.msra.mxu0 0
  %373 = vmatprep.subr.bf16.mxu0 0
  %374 = vmatpush1.bf16.msra.mxu0 0
  %375 = vmatprep.subr.bf16.mxu0 0
  %376 = vmatpush1.bf16.msra.mxu0 0
  %377 = vmatprep.subr.bf16.mxu0 0
  %378 = vmatpush1.bf16.msra.mxu0 0
  %379 = vmatprep.subr.bf16.mxu0 0
  %380 = vmatpush1.bf16.msra.mxu0 0
  %381 = vmatprep.mubr.bf16.mxu0 0
  %382 = vmatmul.mubr.bf16.gmra.mrb[0].mxu0 %v347
  %v383 = vpop.f32.mrb[0].mxu0
  %v384 = vadd.f32 0.0, %v383
  %v385 = vpop.f32.mrb[0].mxu0
  %v386 = vpop.f32.mrb[0].mxu0
  %v387 = vpop.f32.mrb[0].mxu0
  %388 = vdwg.mxu0
  %v389 = vpack.c.bf16 %v384, %v384
  %v391 = vsel %vm93, %v64, 0
  %393 = vmatprep.subr.bf16.mxu0 0
  %394 = vmatpush1.bf16.msra.mxu0 %v301
  %395 = vmatprep.subr.bf16.mxu0 0
  %396 = vmatpush1.bf16.msra.mxu0 0
  %397 = vmatprep.subr.bf16.mxu0 0
  %398 = vmatpush1.bf16.msra.mxu0 0
  %399 = vmatprep.subr.bf16.mxu0 0
  %400 = vmatpush1.bf16.msra.mxu0 0
  %401 = vmatprep.subr.bf16.mxu0 0
  %402 = vmatpush1.bf16.msra.mxu0 0
  %403 = vmatprep.subr.bf16.mxu0 0
  %404 = vmatpush1.bf16.msra.mxu0 0
  %405 = vmatprep.subr.bf16.mxu0 0
  %406 = vmatpush1.bf16.msra.mxu0 0
  %407 = vmatprep.subr.bf16.mxu0 0
  %408 = vmatpush1.bf16.msra.mxu0 0
  %409 = vmatprep.subr.bf16.mxu0 0
  %410 = vmatpush1.bf16.msra.mxu0 0
  %411 = vmatprep.subr.bf16.mxu0 0
  %412 = vmatpush1.bf16.msra.mxu0 0
  %413 = vmatprep.subr.bf16.mxu0 0
  %414 = vmatpush1.bf16.msra.mxu0 0
  %415 = vmatprep.subr.bf16.mxu0 0
  %416 = vmatpush1.bf16.msra.mxu0 0
  %417 = vmatprep.subr.bf16.mxu0 0
  %418 = vmatpush1.bf16.msra.mxu0 0
  %419 = vmatprep.subr.bf16.mxu0 0
  %420 = vmatpush1.bf16.msra.mxu0 0
  %421 = vmatprep.subr.bf16.mxu0 0
  %422 = vmatpush1.bf16.msra.mxu0 0
  %423 = vmatprep.subr.bf16.mxu0 0
  %424 = vmatpush1.bf16.msra.mxu0 0
  %425 = vmatprep.mubr.bf16.mxu0 0
  %426 = vmatmul.mubr.bf16.gmra.mrb[0].mxu0 %v391
  %v427 = vpop.f32.mrb[0].mxu0
  %v428 = vadd.f32 0.0, %v427
  %v429 = vpop.f32.mrb[0].mxu0
  %v430 = vpop.f32.mrb[0].mxu0
  %v431 = vpop.f32.mrb[0].mxu0
  %432 = vdwg.mxu0
  %v433 = vpack.c.bf16 %v428, %v428
  %v438 = vunpack.c.l.b16 %v40
  %v439 = vunpack.c.l.b16 %v41
  %v440 = vunpack.c.l.b16 %v42
  %v441 = vunpack.c.l.b16 %v43
  %v442 = vpack.c.b16 %v439, %v438
  %v443 = vpack.c.b16 %v441, %v440
  %vm446 = vcmask 261120
  %v448 = vsel %vm446, %v389, 0
  %450 = vmatprep.subr.bf16.mxu0 0
  %451 = vmatpush1.bf16.msra.mxu0 %v442
  %452 = vmatprep.subr.bf16.mxu0 0
  %453 = vmatpush1.bf16.msra.mxu0 %v443
  %454 = vmatprep.subr.bf16.mxu0 0
  %455 = vmatpush1.bf16.msra.mxu0 0
  %456 = vmatprep.subr.bf16.mxu0 0
  %457 = vmatpush1.bf16.msra.mxu0 0
  %458 = vmatprep.subr.bf16.mxu0 0
  %459 = vmatpush1.bf16.msra.mxu0 0
  %460 = vmatprep.subr.bf16.mxu0 0
  %461 = vmatpush1.bf16.msra.mxu0 0
  %462 = vmatprep.subr.bf16.mxu0 0
  %463 = vmatpush1.bf16.msra.mxu0 0
  %464 = vmatprep.subr.bf16.mxu0 0
  %465 = vmatpush1.bf16.msra.mxu0 0
  %466 = vmatprep.subr.bf16.mxu0 0
  %467 = vmatpush1.bf16.msra.mxu0 0
  %468 = vmatprep.subr.bf16.mxu0 0
  %469 = vmatpush1.bf16.msra.mxu0 0
  %470 = vmatprep.subr.bf16.mxu0 0
  %471 = vmatpush1.bf16.msra.mxu0 0
  %472 = vmatprep.subr.bf16.mxu0 0
  %473 = vmatpush1.bf16.msra.mxu0 0
  %474 = vmatprep.subr.bf16.mxu0 0
  %475 = vmatpush1.bf16.msra.mxu0 0
  %476 = vmatprep.subr.bf16.mxu0 0
  %477 = vmatpush1.bf16.msra.mxu0 0
  %478 = vmatprep.subr.bf16.mxu0 0
  %479 = vmatpush1.bf16.msra.mxu0 0
  %480 = vmatprep.subr.bf16.mxu0 0
  %481 = vmatpush1.bf16.msra.mxu0 0
  %482 = vmatprep.mubr.bf16.mxu0 0
  %483 = vmatmul.mubr.bf16.gmra.mrb[0].mxu0 %v448
  %v484 = vpop.f32.mrb[0].mxu0
  %v485 = vadd.f32 0.0, %v484
  %v486 = vpop.f32.mrb[0].mxu0
  %v487 = vpop.f32.mrb[0].mxu0
  %v488 = vpop.f32.mrb[0].mxu0
  %489 = vdwg.mxu0
  %v494 = vunpack.c.l.b16 %v35
  %v495 = vunpack.c.l.b16 %v36
  %v496 = vunpack.c.l.b16 %v37
  %v497 = vunpack.c.l.b16 %v38
  %v498 = vpack.c.b16 %v495, %v494
  %v499 = vpack.c.b16 %v497, %v496
  %v503 = vsel %vm446, %v345, 0
  %505 = vmatprep.subr.bf16.mxu0 0
  %506 = vmatpush1.bf16.msra.mxu0 %v498
  %507 = vmatprep.subr.bf16.mxu0 0
  %508 = vmatpush1.bf16.msra.mxu0 %v499
  %509 = vmatprep.subr.bf16.mxu0 0
  %510 = vmatpush1.bf16.msra.mxu0 0
  %511 = vmatprep.subr.bf16.mxu0 0
  %512 = vmatpush1.bf16.msra.mxu0 0
  %513 = vmatprep.subr.bf16.mxu0 0
  %514 = vmatpush1.bf16.msra.mxu0 0
  %515 = vmatprep.subr.bf16.mxu0 0
  %516 = vmatpush1.bf16.msra.mxu0 0
  %517 = vmatprep.subr.bf16.mxu0 0
  %518 = vmatpush1.bf16.msra.mxu0 0
  %519 = vmatprep.subr.bf16.mxu0 0
  %520 = vmatpush1.bf16.msra.mxu0 0
  %521 = vmatprep.subr.bf16.mxu0 0
  %522 = vmatpush1.bf16.msra.mxu0 0
  %523 = vmatprep.subr.bf16.mxu0 0
  %524 = vmatpush1.bf16.msra.mxu0 0
  %525 = vmatprep.subr.bf16.mxu0 0
  %526 = vmatpush1.bf16.msra.mxu0 0
  %527 = vmatprep.subr.bf16.mxu0 0
  %528 = vmatpush1.bf16.msra.mxu0 0
  %529 = vmatprep.subr.bf16.mxu0 0
  %530 = vmatpush1.bf16.msra.mxu0 0
  %531 = vmatprep.subr.bf16.mxu0 0
  %532 = vmatpush1.bf16.msra.mxu0 0
  %533 = vmatprep.subr.bf16.mxu0 0
  %534 = vmatpush1.bf16.msra.mxu0 0
  %535 = vmatprep.subr.bf16.mxu0 0
  %536 = vmatpush1.bf16.msra.mxu0 0
  %537 = vmatprep.mubr.bf16.mxu0 0
  %538 = vmatmul.mubr.bf16.gmra.mrb[0].mxu0 %v503
  %v539 = vpop.f32.mrb[0].mxu0
  %v540 = vadd.f32 %v485, %v539
  %v541 = vpop.f32.mrb[0].mxu0
  %v542 = vpop.f32.mrb[0].mxu0
  %v543 = vpop.f32.mrb[0].mxu0
  %544 = vdwg.mxu0
  %v549 = vunpack.c.l.b16 %v45
  %v550 = vunpack.c.l.b16 %v46
  %v551 = vunpack.c.l.b16 %v47
  %v552 = vunpack.c.l.b16 %v48
  %v553 = vpack.c.b16 %v550, %v549
  %v554 = vpack.c.b16 %v552, %v551
  %v558 = vsel %vm446, %v433, 0
  %560 = vmatprep.subr.bf16.mxu0 0
  %561 = vmatpush1.bf16.msra.mxu0 %v553
  %562 = vmatprep.subr.bf16.mxu0 0
  %563 = vmatpush1.bf16.msra.mxu0 %v554
  %564 = vmatprep.subr.bf16.mxu0 0
  %565 = vmatpush1.bf16.msra.mxu0 0
  %566 = vmatprep.subr.bf16.mxu0 0
  %567 = vmatpush1.bf16.msra.mxu0 0
  %568 = vmatprep.subr.bf16.mxu0 0
  %569 = vmatpush1.bf16.msra.mxu0 0
  %570 = vmatprep.subr.bf16.mxu0 0
  %571 = vmatpush1.bf16.msra.mxu0 0
  %572 = vmatprep.subr.bf16.mxu0 0
  %573 = vmatpush1.bf16.msra.mxu0 0
  %574 = vmatprep.subr.bf16.mxu0 0
  %575 = vmatpush1.bf16.msra.mxu0 0
  %576 = vmatprep.subr.bf16.mxu0 0
  %577 = vmatpush1.bf16.msra.mxu0 0
  %578 = vmatprep.subr.bf16.mxu0 0
  %579 = vmatpush1.bf16.msra.mxu0 0
  %580 = vmatprep.subr.bf16.mxu0 0
  %581 = vmatpush1.bf16.msra.mxu0 0
  %582 = vmatprep.subr.bf16.mxu0 0
  %583 = vmatpush1.bf16.msra.mxu0 0
  %584 = vmatprep.subr.bf16.mxu0 0
  %585 = vmatpush1.bf16.msra.mxu0 0
  %586 = vmatprep.subr.bf16.mxu0 0
  %587 = vmatpush1.bf16.msra.mxu0 0
  %588 = vmatprep.subr.bf16.mxu0 0
  %589 = vmatpush1.bf16.msra.mxu0 0
  %590 = vmatprep.subr.bf16.mxu0 0
  %591 = vmatpush1.bf16.msra.mxu0 0
  %592 = vmatprep.mubr.bf16.mxu0 0
  %593 = vmatmul.mubr.bf16.gmra.mrb[0].mxu0 %v558
  %v594 = vpop.f32.mrb[0].mxu0
  %v595 = vadd.f32 0.0, %v594
  %v596 = vpop.f32.mrb[0].mxu0
  %v597 = vpop.f32.mrb[0].mxu0
  %v598 = vpop.f32.mrb[0].mxu0
  %599 = vdwg.mxu0
  %v600 = vadd.f32 %v540, %v595
  %v602 = vlaneseq
  %v603 = vshrl.u32 %v602, 7
  %v604 = vsub.s32 0, %v603
  %v605 = vrot.slane %v26, %v604
  %v607 = vadd.f32 %v600, %v605
  %v608 = vmul.f32 %v607, 0.5
  %v609 = vmul.f32 %v607, 0.70710677
  %v610 = vand.u32 2147483647, %v609
  %v611 = vmul.f32 %v610, 0.3275911
  %v612 = vadd.f32 %v611, 1.0
  %v613 = vrcp.pop %v612
  %v614 = vmul.f32 1.0, %v613
  %v615 = vmul.f32 %v614, 1.0614054
  %v616 = vadd.f32 %v615, -1.4531521
  %v617 = vmul.f32 %v614, %v616
  %v618 = vadd.f32 %v617, 1.4214138
  %v619 = vmul.f32 %v614, %v618
  %v620 = vadd.f32 %v619, -0.28449672
  %v621 = vmul.f32 %v614, %v620
  %v622 = vadd.f32 %v621, 0.2548296
  %v623 = vmul.f32 %v614, %v622
  %v624 = vsub.f32 0.0, %v610
  %v625 = vmul.f32 %v624, %v610
  %v626 = vmul.f32 %v625, 1.442695
  %v627 = vpow.pop %v626
  %v628 = vmul.f32 %v623, %v627
  %v629 = vsub.f32 1.0, %v628
  %vm630 = vcmp.ge.f32.partialorder %v609, 0.0
  %v631 = vsub.f32 0.0, %v629
  %v632 = vsel %vm630, %v629, %v631
  %v633 = vadd.f32 %v632, 1.0
  %v634 = vmul.f32 %v608, %v633
  %v635 = vadd.f32 %v634, %v24
  %636 = vst.msk [vmem:[%s6] sm:$0xff] %vm446, %v635
  %v637 = vld [vmem:[%s0 + $0x10] sm:$0xff]
  %v638 = vld [vmem:[%s0 + $0x18] sm:$0xff]
  %v639 = vpack.c.bf16 %v638, %v637
  %v641 = vshrl.u32 %v639, 16
  %v643 = vrot.slane %v641, 7
  %v644 = vshll.u32 %v639, 16
  %v646 = vor.u32 %v643, %v644
  %v648 = vsel %vm78, 0, %v646
  %v649 = vrot.slane %v644, 1
  %v650 = vor.u32 %v641, %v649
  %v652 = vsel %vm85, %v650, 0
  %v653 = vsel %vm93, %v639, 0
  %655 = vmatprep.subr.bf16.mxu0 0
  %656 = vmatpush1.bf16.msra.mxu0 %v91
  %657 = vmatprep.subr.bf16.mxu0 0
  %658 = vmatpush1.bf16.msra.mxu0 0
  %659 = vmatprep.subr.bf16.mxu0 0
  %660 = vmatpush1.bf16.msra.mxu0 0
  %661 = vmatprep.subr.bf16.mxu0 0
  %662 = vmatpush1.bf16.msra.mxu0 0
  %663 = vmatprep.subr.bf16.mxu0 0
  %664 = vmatpush1.bf16.msra.mxu0 0
  %665 = vmatprep.subr.bf16.mxu0 0
  %666 = vmatpush1.bf16.msra.mxu0 0
  %667 = vmatprep.subr.bf16.mxu0 0
  %668 = vmatpush1.bf16.msra.mxu0 0
  %669 = vmatprep.subr.bf16.mxu0 0
  %670 = vmatpush1.bf16.msra.mxu0 0
  %671 = vmatprep.subr.bf16.mxu0 0
  %672 = vmatpush1.bf16.msra.mxu0 0
  %673 = vmatprep.subr.bf16.mxu0 0
  %674 = vmatpush1.bf16.msra.mxu0 0
  %675 = vmatprep.subr.bf16.mxu0 0
  %676 = vmatpush1.bf16.msra.mxu0 0
  %677 = vmatprep.subr.bf16.mxu0 0
  %678 = vmatpush1.bf16.msra.mxu0 0
  %679 = vmatprep.subr.bf16.mxu0 0
  %680 = vmatpush1.bf16.msra.mxu0 0
  %681 = vmatprep.subr.bf16.mxu0 0
  %682 = vmatpush1.bf16.msra.mxu0 0
  %683 = vmatprep.subr.bf16.mxu0 0
  %684 = vmatpush1.bf16.msra.mxu0 0
  %685 = vmatprep.subr.bf16.mxu0 0
  %686 = vmatpush1.bf16.msra.mxu0 0
  %687 = vmatprep.mubr.bf16.mxu0 0
  %688 = vmatmul.mubr.bf16.gmra.mrb[0].mxu0 %v653
  %v689 = vpop.f32.mrb[0].mxu0
  %v690 = vadd.f32 0.0, %v689
  %v691 = vpop.f32.mrb[0].mxu0
  %v692 = vpop.f32.mrb[0].mxu0
  %v693 = vadd.f32 0.0, %v692
  %v694 = vpop.f32.mrb[0].mxu0
  %695 = vdwg.mxu0
  %v697 = vsel %vm93, %v648, 0
  %699 = vmatprep.subr.bf16.mxu0 0
  %700 = vmatpush1.bf16.msra.mxu0 %v141
  %701 = vmatprep.subr.bf16.mxu0 0
  %702 = vmatpush1.bf16.msra.mxu0 0
  %703 = vmatprep.subr.bf16.mxu0 0
  %704 = vmatpush1.bf16.msra.mxu0 0
  %705 = vmatprep.subr.bf16.mxu0 0
  %706 = vmatpush1.bf16.msra.mxu0 0
  %707 = vmatprep.subr.bf16.mxu0 0
  %708 = vmatpush1.bf16.msra.mxu0 0
  %709 = vmatprep.subr.bf16.mxu0 0
  %710 = vmatpush1.bf16.msra.mxu0 0
  %711 = vmatprep.subr.bf16.mxu0 0
  %712 = vmatpush1.bf16.msra.mxu0 0
  %713 = vmatprep.subr.bf16.mxu0 0
  %714 = vmatpush1.bf16.msra.mxu0 0
  %715 = vmatprep.subr.bf16.mxu0 0
  %716 = vmatpush1.bf16.msra.mxu0 0
  %717 = vmatprep.subr.bf16.mxu0 0
  %718 = vmatpush1.bf16.msra.mxu0 0
  %719 = vmatprep.subr.bf16.mxu0 0
  %720 = vmatpush1.bf16.msra.mxu0 0
  %721 = vmatprep.subr.bf16.mxu0 0
  %722 = vmatpush1.bf16.msra.mxu0 0
  %723 = vmatprep.subr.bf16.mxu0 0
  %724 = vmatpush1.bf16.msra.mxu0 0
  %725 = vmatprep.subr.bf16.mxu0 0
  %726 = vmatpush1.bf16.msra.mxu0 0
  %727 = vmatprep.subr.bf16.mxu0 0
  %728 = vmatpush1.bf16.msra.mxu0 0
  %729 = vmatprep.subr.bf16.mxu0 0
  %730 = vmatpush1.bf16.msra.mxu0 0
  %731 = vmatprep.mubr.bf16.mxu0 0
  %732 = vmatmul.mubr.bf16.gmra.mrb[0].mxu0 %v697
  %v733 = vpop.f32.mrb[0].mxu0
  %v734 = vadd.f32 %v690, %v733
  %v735 = vpop.f32.mrb[0].mxu0
  %v736 = vpop.f32.mrb[0].mxu0
  %v737 = vadd.f32 %v693, %v736
  %v738 = vpop.f32.mrb[0].mxu0
  %739 = vdwg.mxu0
  %v741 = vsel %vm93, %v652, 0
  %743 = vmatprep.subr.bf16.mxu0 0
  %744 = vmatpush1.bf16.msra.mxu0 %v191
  %745 = vmatprep.subr.bf16.mxu0 0
  %746 = vmatpush1.bf16.msra.mxu0 0
  %747 = vmatprep.subr.bf16.mxu0 0
  %748 = vmatpush1.bf16.msra.mxu0 0
  %749 = vmatprep.subr.bf16.mxu0 0
  %750 = vmatpush1.bf16.msra.mxu0 0
  %751 = vmatprep.subr.bf16.mxu0 0
  %752 = vmatpush1.bf16.msra.mxu0 0
  %753 = vmatprep.subr.bf16.mxu0 0
  %754 = vmatpush1.bf16.msra.mxu0 0
  %755 = vmatprep.subr.bf16.mxu0 0
  %756 = vmatpush1.bf16.msra.mxu0 0
  %757 = vmatprep.subr.bf16.mxu0 0
  %758 = vmatpush1.bf16.msra.mxu0 0
  %759 = vmatprep.subr.bf16.mxu0 0
  %760 = vmatpush1.bf16.msra.mxu0 0
  %761 = vmatprep.subr.bf16.mxu0 0
  %762 = vmatpush1.bf16.msra.mxu0 0
  %763 = vmatprep.subr.bf16.mxu0 0
  %764 = vmatpush1.bf16.msra.mxu0 0
  %765 = vmatprep.subr.bf16.mxu0 0
  %766 = vmatpush1.bf16.msra.mxu0 0
  %767 = vmatprep.subr.bf16.mxu0 0
  %768 = vmatpush1.bf16.msra.mxu0 0
  %769 = vmatprep.subr.bf16.mxu0 0
  %770 = vmatpush1.bf16.msra.mxu0 0
  %771 = vmatprep.subr.bf16.mxu0 0
  %772 = vmatpush1.bf16.msra.mxu0 0
  %773 = vmatprep.subr.bf16.mxu0 0
  %774 = vmatpush1.bf16.msra.mxu0 0
  %775 = vmatprep.mubr.bf16.mxu0 0
  %776 = vmatmul.mubr.bf16.gmra.mrb[0].mxu0 %v741
  %v777 = vpop.f32.mrb[0].mxu0
  %v778 = vadd.f32 0.0, %v777
  %v779 = vpop.f32.mrb[0].mxu0
  %v780 = vpop.f32.mrb[0].mxu0
  %v781 = vadd.f32 0.0, %v780
  %v782 = vpop.f32.mrb[0].mxu0
  %783 = vdwg.mxu0
  %v784 = vadd.f32 %v734, %v778
  %v785 = vadd.f32 %v737, %v781
  %v786 = vadd.f32 %v784, %v243
  %v787 = vadd.f32 %v785, %v243
  %v788 = vmul.f32 %v786, 0.5
  %v789 = vmul.f32 %v787, 0.5
  %v790 = vmul.f32 %v786, 0.70710677
  %v791 = vmul.f32 %v787, 0.70710677
  %v792 = vand.u32 2147483647, %v790
  %v793 = vand.u32 2147483647, %v791
  %v794 = vmul.f32 %v792, 0.3275911
  %v795 = vmul.f32 %v793, 0.3275911
  %v796 = vadd.f32 %v794, 1.0
  %v797 = vadd.f32 %v795, 1.0
  %v798 = vrcp.pop %v796
  %v799 = vmul.f32 1.0, %v798
  %v800 = vrcp.pop %v797
  %v801 = vmul.f32 1.0, %v800
  %v802 = vmul.f32 %v799, 1.0614054
  %v803 = vmul.f32 %v801, 1.0614054
  %v804 = vadd.f32 %v802, -1.4531521
  %v805 = vadd.f32 %v803, -1.4531521
  %v806 = vmul.f32 %v799, %v804
  %v807 = vmul.f32 %v801, %v805
  %v808 = vadd.f32 %v806, 1.4214138
  %v809 = vadd.f32 %v807, 1.4214138
  %v810 = vmul.f32 %v799, %v808
  %v811 = vmul.f32 %v801, %v809
  %v812 = vadd.f32 %v810, -0.28449672
  %v813 = vadd.f32 %v811, -0.28449672
  %v814 = vmul.f32 %v799, %v812
  %v815 = vmul.f32 %v801, %v813
  %v816 = vadd.f32 %v814, 0.2548296
  %v817 = vadd.f32 %v815, 0.2548296
  %v818 = vmul.f32 %v799, %v816
  %v819 = vmul.f32 %v801, %v817
  %v820 = vsub.f32 0.0, %v792
  %v821 = vsub.f32 0.0, %v793
  %v822 = vmul.f32 %v820, %v792
  %v823 = vmul.f32 %v821, %v793
  %v824 = vmul.f32 %v822, 1.442695
  %v825 = vpow.pop %v824
  %v826 = vmul.f32 %v823, 1.442695
  %v827 = vpow.pop %v826
  %v828 = vmul.f32 %v818, %v825
  %v829 = vmul.f32 %v819, %v827
  %v830 = vsub.f32 1.0, %v828
  %v831 = vsub.f32 1.0, %v829
  %vm832 = vcmp.ge.f32.partialorder %v790, 0.0
  %vm833 = vcmp.ge.f32.partialorder %v791, 0.0
  %v834 = vsub.f32 0.0, %v830
  %v835 = vsub.f32 0.0, %v831
  %v836 = vsel %vm832, %v830, %v834
  %v837 = vsel %vm833, %v831, %v835
  %v838 = vadd.f32 %v836, 1.0
  %v839 = vadd.f32 %v837, 1.0
  %v840 = vmul.f32 %v788, %v838
  %v841 = vmul.f32 %v789, %v839
  %v842 = vpack.c.bf16 %v841, %v840
  %843 = vmatprep.subr.bf16.mxu0 0
  %844 = vmatpush1.bf16.msra.mxu0 %v842
  %845 = vmatprep.subr.bf16.mxu0 0
  %846 = vmatpush1.bf16.msra.mxu0 0
  %847 = vmatprep.subr.bf16.mxu0 0
  %848 = vmatpush1.bf16.msra.mxu0 0
  %849 = vmatprep.subr.bf16.mxu0 0
  %850 = vmatpush1.bf16.msra.mxu0 0
  %851 = vmatprep.subr.bf16.mxu0 0
  %852 = vmatpush1.bf16.msra.mxu0 0
  %853 = vmatprep.subr.bf16.mxu0 0
  %854 = vmatpush1.bf16.msra.mxu0 0
  %855 = vmatprep.subr.bf16.mxu0 0
  %856 = vmatpush1.bf16.msra.mxu0 0
  %857 = vmatprep.subr.bf16.mxu0 0
  %858 = vmatpush1.bf16.msra.mxu0 0
  %859 = vmatprep.subr.bf16.mxu0 0
  %860 = vmatpush1.bf16.msra.mxu0 0
  %861 = vmatprep.subr.bf16.mxu0 0
  %862 = vmatpush1.bf16.msra.mxu0 0
  %863 = vmatprep.subr.bf16.mxu0 0
  %864 = vmatpush1.bf16.msra.mxu0 0
  %865 = vmatprep.subr.bf16.mxu0 0
  %866 = vmatpush1.bf16.msra.mxu0 0
  %867 = vmatprep.subr.bf16.mxu0 0
  %868 = vmatpush1.bf16.msra.mxu0 0
  %869 = vmatprep.subr.bf16.mxu0 0
  %870 = vmatpush1.bf16.msra.mxu0 0
  %871 = vmatprep.subr.bf16.mxu0 0
  %872 = vmatpush1.bf16.msra.mxu0 0
  %873 = vmatprep.subr.bf16.mxu0 0
  %874 = vmatpush1.bf16.msra.mxu0 0
  %875 = vmatprep.mubr.bf16.mxu0 0
  %876 = vmatmul.mubr.bf16.gmra.mrb[0].mxu0 %v303
  %v877 = vpop.f32.mrb[0].mxu0
  %v878 = vadd.f32 0.0, %v877
  %v879 = vpop.f32.mrb[0].mxu0
  %v880 = vpop.f32.mrb[0].mxu0
  %v881 = vpop.f32.mrb[0].mxu0
  %882 = vdwg.mxu0
  %v883 = vpack.c.bf16 %v878, %v878
  %884 = vmatprep.subr.bf16.mxu0 0
  %885 = vmatpush1.bf16.msra.mxu0 %v842
  %886 = vmatprep.subr.bf16.mxu0 0
  %887 = vmatpush1.bf16.msra.mxu0 0
  %888 = vmatprep.subr.bf16.mxu0 0
  %889 = vmatpush1.bf16.msra.mxu0 0
  %890 = vmatprep.subr.bf16.mxu0 0
  %891 = vmatpush1.bf16.msra.mxu0 0
  %892 = vmatprep.subr.bf16.mxu0 0
  %893 = vmatpush1.bf16.msra.mxu0 0
  %894 = vmatprep.subr.bf16.mxu0 0
  %895 = vmatpush1.bf16.msra.mxu0 0
  %896 = vmatprep.subr.bf16.mxu0 0
  %897 = vmatpush1.bf16.msra.mxu0 0
  %898 = vmatprep.subr.bf16.mxu0 0
  %899 = vmatpush1.bf16.msra.mxu0 0
  %900 = vmatprep.subr.bf16.mxu0 0
  %901 = vmatpush1.bf16.msra.mxu0 0
  %902 = vmatprep.subr.bf16.mxu0 0
  %903 = vmatpush1.bf16.msra.mxu0 0
  %904 = vmatprep.subr.bf16.mxu0 0
  %905 = vmatpush1.bf16.msra.mxu0 0
  %906 = vmatprep.subr.bf16.mxu0 0
  %907 = vmatpush1.bf16.msra.mxu0 0
  %908 = vmatprep.subr.bf16.mxu0 0
  %909 = vmatpush1.bf16.msra.mxu0 0
  %910 = vmatprep.subr.bf16.mxu0 0
  %911 = vmatpush1.bf16.msra.mxu0 0
  %912 = vmatprep.subr.bf16.mxu0 0
  %913 = vmatpush1.bf16.msra.mxu0 0
  %914 = vmatprep.subr.bf16.mxu0 0
  %915 = vmatpush1.bf16.msra.mxu0 0
  %916 = vmatprep.mubr.bf16.mxu0 0
  %917 = vmatmul.mubr.bf16.gmra.mrb[0].mxu0 %v347
  %v918 = vpop.f32.mrb[0].mxu0
  %v919 = vadd.f32 0.0, %v918
  %v920 = vpop.f32.mrb[0].mxu0
  %v921 = vpop.f32.mrb[0].mxu0
  %v922 = vpop.f32.mrb[0].mxu0
  %923 = vdwg.mxu0
  %v924 = vpack.c.bf16 %v919, %v919
  %925 = vmatprep.subr.bf16.mxu0 0
  %926 = vmatpush1.bf16.msra.mxu0 %v842
  %927 = vmatprep.subr.bf16.mxu0 0
  %928 = vmatpush1.bf16.msra.mxu0 0
  %929 = vmatprep.subr.bf16.mxu0 0
  %930 = vmatpush1.bf16.msra.mxu0 0
  %931 = vmatprep.subr.bf16.mxu0 0
  %932 = vmatpush1.bf16.msra.mxu0 0
  %933 = vmatprep.subr.bf16.mxu0 0
  %934 = vmatpush1.bf16.msra.mxu0 0
  %935 = vmatprep.subr.bf16.mxu0 0
  %936 = vmatpush1.bf16.msra.mxu0 0
  %937 = vmatprep.subr.bf16.mxu0 0
  %938 = vmatpush1.bf16.msra.mxu0 0
  %939 = vmatprep.subr.bf16.mxu0 0
  %940 = vmatpush1.bf16.msra.mxu0 0
  %941 = vmatprep.subr.bf16.mxu0 0
  %942 = vmatpush1.bf16.msra.mxu0 0
  %943 = vmatprep.subr.bf16.mxu0 0
  %944 = vmatpush1.bf16.msra.mxu0 0
  %945 = vmatprep.subr.bf16.mxu0 0
  %946 = vmatpush1.bf16.msra.mxu0 0
  %947 = vmatprep.subr.bf16.mxu0 0
  %948 = vmatpush1.bf16.msra.mxu0 0
  %949 = vmatprep.subr.bf16.mxu0 0
  %950 = vmatpush1.bf16.msra.mxu0 0
  %951 = vmatprep.subr.bf16.mxu0 0
  %952 = vmatpush1.bf16.msra.mxu0 0
  %953 = vmatprep.subr.bf16.mxu0 0
  %954 = vmatpush1.bf16.msra.mxu0 0
  %955 = vmatprep.subr.bf16.mxu0 0
  %956 = vmatpush1.bf16.msra.mxu0 0
  %957 = vmatprep.mubr.bf16.mxu0 0
  %958 = vmatmul.mubr.bf16.gmra.mrb[0].mxu0 %v391
  %v959 = vpop.f32.mrb[0].mxu0
  %v960 = vadd.f32 0.0, %v959
  %v961 = vpop.f32.mrb[0].mxu0
  %v962 = vpop.f32.mrb[0].mxu0
  %v963 = vpop.f32.mrb[0].mxu0
  %964 = vdwg.mxu0
  %v965 = vpack.c.bf16 %v960, %v960
  %v967 = vsel %vm446, %v924, 0
  %969 = vmatprep.subr.bf16.mxu0 0
  %970 = vmatpush1.bf16.msra.mxu0 %v442
  %971 = vmatprep.subr.bf16.mxu0 0
  %972 = vmatpush1.bf16.msra.mxu0 %v443
  %973 = vmatprep.subr.bf16.mxu0 0
  %974 = vmatpush1.bf16.msra.mxu0 0
  %975 = vmatprep.subr.bf16.mxu0 0
  %976 = vmatpush1.bf16.msra.mxu0 0
  %977 = vmatprep.subr.bf16.mxu0 0
  %978 = vmatpush1.bf16.msra.mxu0 0
  %979 = vmatprep.subr.bf16.mxu0 0
  %980 = vmatpush1.bf16.msra.mxu0 0
  %981 = vmatprep.subr.bf16.mxu0 0
  %982 = vmatpush1.bf16.msra.mxu0 0
  %983 = vmatprep.subr.bf16.mxu0 0
  %984 = vmatpush1.bf16.msra.mxu0 0
  %985 = vmatprep.subr.bf16.mxu0 0
  %986 = vmatpush1.bf16.msra.mxu0 0
  %987 = vmatprep.subr.bf16.mxu0 0
  %988 = vmatpush1.bf16.msra.mxu0 0
  %989 = vmatprep.subr.bf16.mxu0 0
  %990 = vmatpush1.bf16.msra.mxu0 0
  %991 = vmatprep.subr.bf16.mxu0 0
  %992 = vmatpush1.bf16.msra.mxu0 0
  %993 = vmatprep.subr.bf16.mxu0 0
  %994 = vmatpush1.bf16.msra.mxu0 0
  %995 = vmatprep.subr.bf16.mxu0 0
  %996 = vmatpush1.bf16.msra.mxu0 0
  %997 = vmatprep.subr.bf16.mxu0 0
  %998 = vmatpush1.bf16.msra.mxu0 0
  %999 = vmatprep.subr.bf16.mxu0 0
  %1000 = vmatpush1.bf16.msra.mxu0 0
  %1001 = vmatprep.mubr.bf16.mxu0 0
  %1002 = vmatmul.mubr.bf16.gmra.mrb[0].mxu0 %v967
  %v1003 = vpop.f32.mrb[0].mxu0
  %v1004 = vadd.f32 0.0, %v1003
  %v1005 = vpop.f32.mrb[0].mxu0
  %v1006 = vpop.f32.mrb[0].mxu0
  %v1007 = vpop.f32.mrb[0].mxu0
  %1008 = vdwg.mxu0
  %v1010 = vsel %vm446, %v883, 0
  %1012 = vmatprep.subr.bf16.mxu0 0
  %1013 = vmatpush1.bf16.msra.mxu0 %v498
  %1014 = vmatprep.subr.bf16.mxu0 0
  %1015 = vmatpush1.bf16.msra.mxu0 %v499
  %1016 = vmatprep.subr.bf16.mxu0 0
  %1017 = vmatpush1.bf16.msra.mxu0 0
  %1018 = vmatprep.subr.bf16.mxu0 0
  %1019 = vmatpush1.bf16.msra.mxu0 0
  %1020 = vmatprep.subr.bf16.mxu0 0
  %1021 = vmatpush1.bf16.msra.mxu0 0
  %1022 = vmatprep.subr.bf16.mxu0 0
  %1023 = vmatpush1.bf16.msra.mxu0 0
  %1024 = vmatprep.subr.bf16.mxu0 0
  %1025 = vmatpush1.bf16.msra.mxu0 0
  %1026 = vmatprep.subr.bf16.mxu0 0
  %1027 = vmatpush1.bf16.msra.mxu0 0
  %1028 = vmatprep.subr.bf16.mxu0 0
  %1029 = vmatpush1.bf16.msra.mxu0 0
  %1030 = vmatprep.subr.bf16.mxu0 0
  %1031 = vmatpush1.bf16.msra.mxu0 0
  %1032 = vmatprep.subr.bf16.mxu0 0
  %1033 = vmatpush1.bf16.msra.mxu0 0
  %1034 = vmatprep.subr.bf16.mxu0 0
  %1035 = vmatpush1.bf16.msra.mxu0 0
  %1036 = vmatprep.subr.bf16.mxu0 0
  %1037 = vmatpush1.bf16.msra.mxu0 0
  %1038 = vmatprep.subr.bf16.mxu0 0
  %1039 = vmatpush1.bf16.msra.mxu0 0
  %1040 = vmatprep.subr.bf16.mxu0 0
  %1041 = vmatpush1.bf16.msra.mxu0 0
  %1042 = vmatprep.subr.bf16.mxu0 0
  %1043 = vmatpush1.bf16.msra.mxu0 0
  %1044 = vmatprep.mubr.bf16.mxu0 0
  %1045 = vmatmul.mubr.bf16.gmra.mrb[0].mxu0 %v1010
  %v1046 = vpop.f32.mrb[0].mxu0
  %v1047 = vadd.f32 %v1004, %v1046
  %v1048 = vpop.f32.mrb[0].mxu0
  %v1049 = vpop.f32.mrb[0].mxu0
  %v1050 = vpop.f32.mrb[0].mxu0
  %1051 = vdwg.mxu0
  %v1053 = vsel %vm446, %v965, 0
  %1055 = vmatprep.subr.bf16.mxu0 0
  %1056 = vmatpush1.bf16.msra.mxu0 %v553
  %1057 = vmatprep.subr.bf16.mxu0 0
  %1058 = vmatpush1.bf16.msra.mxu0 %v554
  %1059 = vmatprep.subr.bf16.mxu0 0
  %1060 = vmatpush1.bf16.msra.mxu0 0
  %1061 = vmatprep.subr.bf16.mxu0 0
  %1062 = vmatpush1.bf16.msra.mxu0 0
  %1063 = vmatprep.subr.bf16.mxu0 0
  %1064 = vmatpush1.bf16.msra.mxu0 0
  %1065 = vmatprep.subr.bf16.mxu0 0
  %1066 = vmatpush1.bf16.msra.mxu0 0
  %1067 = vmatprep.subr.bf16.mxu0 0
  %1068 = vmatpush1.bf16.msra.mxu0 0
  %1069 = vmatprep.subr.bf16.mxu0 0
  %1070 = vmatpush1.bf16.msra.mxu0 0
  %1071 = vmatprep.subr.bf16.mxu0 0
  %1072 = vmatpush1.bf16.msra.mxu0 0
  %1073 = vmatprep.subr.bf16.mxu0 0
  %1074 = vmatpush1.bf16.msra.mxu0 0
  %1075 = vmatprep.subr.bf16.mxu0 0
  %1076 = vmatpush1.bf16.msra.mxu0 0
  %1077 = vmatprep.subr.bf16.mxu0 0
  %1078 = vmatpush1.bf16.msra.mxu0 0
  %1079 = vmatprep.subr.bf16.mxu0 0
  %1080 = vmatpush1.bf16.msra.mxu0 0
  %1081 = vmatprep.subr.bf16.mxu0 0
  %1082 = vmatpush1.bf16.msra.mxu0 0
  %1083 = vmatprep.subr.bf16.mxu0 0
  %1084 = vmatpush1.bf16.msra.mxu0 0
  %1085 = vmatprep.subr.bf16.mxu0 0
  %1086 = vmatpush1.bf16.msra.mxu0 0
  %1087 = vmatprep.mubr.bf16.mxu0 0
  %1088 = vmatmul.mubr.bf16.gmra.mrb[0].mxu0 %v1053
  %v1089 = vpop.f32.mrb[0].mxu0
  %v1090 = vadd.f32 0.0, %v1089
  %v1091 = vpop.f32.mrb[0].mxu0
  %v1092 = vpop.f32.mrb[0].mxu0
  %v1093 = vpop.f32.mrb[0].mxu0
  %1094 = vdwg.mxu0
  %v1095 = vadd.f32 %v1047, %v1090
  %v1096 = vadd.f32 %v1095, %v605
  %v1097 = vmul.f32 %v1096, 0.5
  %v1098 = vmul.f32 %v1096, 0.70710677
  %v1099 = vand.u32 2147483647, %v1098
  %v1100 = vmul.f32 %v1099, 0.3275911
  %v1101 = vadd.f32 %v1100, 1.0
  %v1102 = vrcp.pop %v1101
  %v1103 = vmul.f32 1.0, %v1102
  %v1104 = vmul.f32 %v1103, 1.0614054
  %v1105 = vadd.f32 %v1104, -1.4531521
  %v1106 = vmul.f32 %v1103, %v1105
  %v1107 = vadd.f32 %v1106, 1.4214138
  %v1108 = vmul.f32 %v1103, %v1107
  %v1109 = vadd.f32 %v1108, -0.28449672
  %v1110 = vmul.f32 %v1103, %v1109
  %v1111 = vadd.f32 %v1110, 0.2548296
  %v1112 = vmul.f32 %v1103, %v1111
  %v1113 = vsub.f32 0.0, %v1099
  %v1114 = vmul.f32 %v1113, %v1099
  %v1115 = vmul.f32 %v1114, 1.442695
  %v1116 = vpow.pop %v1115
  %v1117 = vmul.f32 %v1112, %v1116
  %v1118 = vsub.f32 1.0, %v1117
  %vm1119 = vcmp.ge.f32.partialorder %v1098, 0.0
  %v1120 = vsub.f32 0.0, %v1118
  %v1121 = vsel %vm1119, %v1118, %v1120
  %v1122 = vadd.f32 %v1121, 1.0
  %v1123 = vmul.f32 %v1097, %v1122
  %v1124 = vadd.f32 %v1123, %v24
  %1125 = vst.msk [vmem:[%s6 + $0x8] sm:$0xff] %vm446, %v1124
  // Predicated region
  $region26: #{whisper_audio_encoder.6} parent=0 // pred_check
    _
  $region27: #{whisper_audio_encoder.6} parent=0 // pred_check_branch
    %1127 = sbr.rel (0) target = $region29
  $region28: #{whisper_audio_encoder.6} parent=0 // pred_region
    _
  $region29: #{whisper_audio_encoder.6} parent=0 // pred_fallthru
    _
  // Predicated region
  $region30: #{whisper_audio_encoder.6} parent=0 // pred_check
    _
  $region31: #{whisper_audio_encoder.6} parent=0 // pred_check_branch
    %1129 = sbr.rel (0) target = $region33
  $region32: #{whisper_audio_encoder.6} parent=0 // pred_region
    _
  $region33: #{whisper_audio_encoder.6} parent=0 // pred_fallthru
    _

</llo_original>
